<compile_context>
chip_gen: v6e
topology: v6e:2x2x1
jax: 0.10.0
libtpu: 0.0.40
codegen_flags: <defaults>
</compile_context>

<pallas_src>
import jax
import jax.numpy as jnp
from jax.experimental import pallas as pl
from jax.experimental.pallas import tpu as pltpu


# ------------------------------ Pallas kernel ------------------------------ #

def _bottleneck_kernel(x_ref, w1_ref, b1_ref, w2_ref, b2_ref, w3_ref, b3_ref,
                       o_ref, col_ref):
    """Fused Bottleneck forward for one batch element.

    x_ref:   (1, H, W, Cin)  bf16   input (also the residual; Cin == 4*P)
    w1_ref:  (Cin, P)        bf16   1x1 conv1 weight (BN1 scale pre-folded)
    w2_ref:  (9*P, P)        bf16   3x3 conv2 weight as im2col matrix (BN2 folded)
    w3_ref:  (P, Cout)       bf16   1x1 conv3 weight (BN3 scale pre-folded)
    b*_ref:  (1, C)          f32    folded BN bias
    o_ref:   (1, H, W, Cout) bf16
    col_ref: (H, W, 9*P)     bf16   VMEM scratch: im2col patches for conv2
    """
    H, W, Cout = o_ref.shape[1], o_ref.shape[2], o_ref.shape[3]
    Cin = x_ref.shape[3]
    P = w1_ref.shape[1]

    # ---- conv1 (1x1, BN scale folded into weights) + bias + relu ----
    t1 = jnp.dot(x_ref[0].reshape(H * W, Cin), w1_ref[...],
                 preferred_element_type=jnp.float32)
    t1 = jnp.maximum(t1 + b1_ref[0], 0.0)
    t1 = t1.reshape(H, W, P).astype(jnp.bfloat16)

    # ---- conv2 (3x3, pad=1): im2col into VMEM scratch + ONE big-K matmul ----
    # Zero only the 1-pixel border ring (interior is fully overwritten below).
    # Re-done every step: per-core scratch persists across grid iterations.
    zrow = jnp.zeros((1, W, 9 * P), jnp.bfloat16)
    zcol = jnp.zeros((H, 1, 9 * P), jnp.bfloat16)
    col_ref[0:1, :, :] = zrow
    col_ref[H - 1:H, :, :] = zrow
    col_ref[:, 0:1, :] = zcol
    col_ref[:, W - 1:W, :] = zcol

    # col_ref[h, w, (ky*3+kx)*P + c] = t1_padded[h+ky, w+kx, c]
    for ky in range(3):
        for kx in range(3):
            dy, dx = ky - 1, kx - 1
            s = ky * 3 + kx
            r0, r1 = max(0, -dy), H - max(0, dy)   # valid destination rows
            c0, c1 = max(0, -dx), W - max(0, dx)   # valid destination cols
            col_ref[r0:r1, c0:c1, s * P:(s + 1) * P] = (
                t1[r0 + dy:r1 + dy, c0 + dx:c1 + dx, :])

    patches = col_ref[...].reshape(H * W, 9 * P)
    t2 = jnp.dot(patches, w2_ref[...], preferred_element_type=jnp.float32)
    t2 = jnp.maximum(t2 + b2_ref[0], 0.0)

    # ---- conv3 (1x1) + bias + residual add (f32) + relu ----
    t3 = jnp.dot(t2.astype(jnp.bfloat16), w3_ref[...],
                 preferred_element_type=jnp.float32)
    residual = x_ref[0].reshape(H * W, Cout).astype(jnp.float32)  # re-read at use
    out = jnp.maximum(t3 + b3_ref[0] + residual, 0.0)
    o_ref[0] = out.reshape(H, W, Cout).astype(o_ref.dtype)


# ------------------------------ pallas_call glue ---------------------------- #

def _fold_bn(gamma, beta, mean, var, eps=1e-5):
    scale = (gamma / jnp.sqrt(var + eps)).astype(jnp.float32)
    bias = (beta - mean * scale).astype(jnp.float32)
    return scale, bias


@jax.jit
def bottleneck_forward(x_nchw, params):
    """Bottleneck forward. x_nchw: (N, inplanes, H, W), inplanes == 4*planes.

    Returns NCHW bf16 output (bf16 I/O halves HBM traffic; residual add is
    still computed in f32 inside the kernel).
    """
    x = jnp.transpose(x_nchw, (0, 2, 3, 1)).astype(jnp.bfloat16)   # NHWC bf16
    N, H, W, Cin = x.shape

    P = params["conv1_w"].shape[0]                                 # planes
    Cout = params["conv3_w"].shape[0]                              # planes * expansion
    assert Cin == Cout, "downsample=None requires inplanes == planes*expansion"

    s1, b1 = _fold_bn(params["bn1_gamma"], params["bn1_beta"],
                      params["bn1_mean"], params["bn1_var"])
    s2, b2 = _fold_bn(params["bn2_gamma"], params["bn2_beta"],
                      params["bn2_mean"], params["bn2_var"])
    s3, b3 = _fold_bn(params["bn3_gamma"], params["bn3_beta"],
                      params["bn3_mean"], params["bn3_var"])

    # Fold BN scales into the conv weights (per output channel); cast to bf16.
    w1 = (params["conv1_w"].reshape(P, Cin) * s1[:, None]).T.astype(jnp.bfloat16)
    w2 = (jnp.transpose(params["conv2_w"], (2, 3, 1, 0)) * s2      # HWIO * s2
          ).reshape(9 * P, P).astype(jnp.bfloat16)
    w3 = (params["conv3_w"].reshape(Cout, P) * s3[:, None]).T.astype(jnp.bfloat16)

    b1 = b1.reshape(1, P)
    b2 = b2.reshape(1, P)
    b3 = b3.reshape(1, Cout)

    out = pl.pallas_call(
        _bottleneck_kernel,
        out_shape=jax.ShapeDtypeStruct((N, H, W, Cout), jnp.bfloat16),
        grid_spec=pltpu.PrefetchScalarGridSpec(
            num_scalar_prefetch=0,
            grid=(N,),
            in_specs=[
                pl.BlockSpec((1, H, W, Cin), lambda n: (n, 0, 0, 0)),
                pl.BlockSpec((Cin, P), lambda n: (0, 0)),
                pl.BlockSpec((1, P), lambda n: (0, 0)),
                pl.BlockSpec((9 * P, P), lambda n: (0, 0)),
                pl.BlockSpec((1, P), lambda n: (0, 0)),
                pl.BlockSpec((P, Cout), lambda n: (0, 0)),
                pl.BlockSpec((1, Cout), lambda n: (0, 0)),
            ],
            out_specs=pl.BlockSpec((1, H, W, Cout), lambda n: (n, 0, 0, 0)),
            scratch_shapes=[pltpu.VMEM((H, W, 9 * P), jnp.bfloat16)],
        ),
        compiler_params=pltpu.CompilerParams(
            dimension_semantics=("parallel",)),
    )(x, w1, b1, w2, b2, w3, b3)

    return jnp.transpose(out, (0, 3, 1, 2))                        # NCHW, bf16


# ------------------------- pure-JAX reference (f32) ------------------------- #

def _reference(x_nchw, params):
    x = jnp.transpose(x_nchw, (0, 2, 3, 1))

    def conv(inp, w_oihw, pad):
        w = jnp.transpose(w_oihw, (2, 3, 1, 0))
        return jax.lax.conv_general_dilated(
            inp, w, window_strides=(1, 1), padding=((pad, pad), (pad, pad)),
            dimension_numbers=("NHWC", "HWIO", "NHWC"))

    s1, b1 = _fold_bn(params["bn1_gamma"], params["bn1_beta"],
                      params["bn1_mean"], params["bn1_var"])
    s2, b2 = _fold_bn(params["bn2_gamma"], params["bn2_beta"],
                      params["bn2_mean"], params["bn2_var"])
    s3, b3 = _fold_bn(params["bn3_gamma"], params["bn3_beta"],
                      params["bn3_mean"], params["bn3_var"])

    out = jnp.maximum(conv(x, params["conv1_w"], 0) * s1 + b1, 0.0)
    out = jnp.maximum(conv(out, params["conv2_w"], 1) * s2 + b2, 0.0)
    out = conv(out, params["conv3_w"], 0) * s3 + b3 + x
    out = jnp.maximum(out, 0.0)
    return jnp.transpose(out, (0, 3, 1, 2))


if __name__ == "__main__":
    # Small module-consistent shapes: planes=4, inplanes=planes*4=16, 16x16.
    # NOTE: perf conclusions must be drawn at realistic shapes (planes>=64,
    # H=W>=56); this config only validates correctness.
    planes = 4
    expansion = 4
    inplanes = planes * expansion
    N, H, W = 2, 16, 16

    key = jax.random.PRNGKey(0)
    keys = jax.random.split(key, 16)

    x = jax.random.normal(keys[0], (N, inplanes, H, W), dtype=jnp.float32)

    params = {
        # conv weights in PyTorch OIHW layout
        "conv1_w": jax.random.normal(keys[1], (planes, inplanes, 1, 1),
                                     jnp.float32) * 0.1,
        "conv2_w": jax.random.normal(keys[2], (planes, planes, 3, 3),
                                     jnp.float32) * 0.1,
        "conv3_w": jax.random.normal(keys[3], (planes * expansion, planes, 1, 1),
                                     jnp.float32) * 0.1,
        # BatchNorm parameters / running stats (inference-mode BN)
        "bn1_gamma": 1.0 + 0.1 * jax.random.normal(keys[4], (planes,), jnp.float32),
        "bn1_beta": 0.1 * jax.random.normal(keys[5], (planes,), jnp.float32),
        "bn1_mean": 0.05 * jax.random.normal(keys[6], (planes,), jnp.float32),
        "bn1_var": jnp.abs(jax.random.normal(keys[7], (planes,), jnp.float32)) + 0.5,
        "bn2_gamma": 1.0 + 0.1 * jax.random.normal(keys[8], (planes,), jnp.float32),
        "bn2_beta": 0.1 * jax.random.normal(keys[9], (planes,), jnp.float32),
        "bn2_mean": 0.05 * jax.random.normal(keys[10], (planes,), jnp.float32),
        "bn2_var": jnp.abs(jax.random.normal(keys[11], (planes,), jnp.float32)) + 0.5,
        "bn3_gamma": 1.0 + 0.1 * jax.random.normal(keys[12], (planes * expansion,),
                                                   jnp.float32),
        "bn3_beta": 0.1 * jax.random.normal(keys[13], (planes * expansion,),
                                            jnp.float32),
        "bn3_mean": 0.05 * jax.random.normal(keys[14], (planes * expansion,),
                                             jnp.float32),
        "bn3_var": jnp.abs(jax.random.normal(keys[15], (planes * expansion,),
                                             jnp.float32)) + 0.5,
    }

    out = jax.block_until_ready(bottleneck_forward(x, params))
    ref = jax.block_until_ready(_reference(x, params))

    assert out.shape == (N, planes * expansion, H, W)
    # bf16 I/O + bf16 MXU operands (f32 accumulation) vs f32 reference.
    assert jnp.allclose(out.astype(jnp.float32), ref, atol=3e-2, rtol=3e-2), \
        "mismatch vs JAX reference"

    print("KERNEL_OK")
</pallas_src>

<mosaic_0001>
module attributes {stable_mosaic.version = 11 : i64} {
  func.func @_bottleneck_kernel(%arg0: i32, %arg1: memref<1x16x16x16xbf16, #tpu.memory_space<vmem>>, %arg2: memref<16x4xbf16, #tpu.memory_space<vmem>>, %arg3: memref<1x4xf32, #tpu.memory_space<vmem>>, %arg4: memref<36x4xbf16, #tpu.memory_space<vmem>>, %arg5: memref<1x4xf32, #tpu.memory_space<vmem>>, %arg6: memref<4x16xbf16, #tpu.memory_space<vmem>>, %arg7: memref<1x16xf32, #tpu.memory_space<vmem>>, %arg8: memref<1x16x16x16xbf16, #tpu.memory_space<vmem>>, %arg9: memref<16x16x36xbf16, #tpu.memory_space<vmem>>) attributes {dimension_semantics = [#tpu.dimension_semantics<parallel>], iteration_bounds = array<i64: 2>, scalar_prefetch = 0 : i64, scratch_operands = 1 : i64, tpu.core_type = #tpu.core_type<tc>, window_params = [{transform_indices = @transform_0, window_bounds = array<i64: 1, 16, 16, 16>}, {pipeline_mode = #tpu.pipeline_mode<synchronous>, transform_indices = @transform_1, window_bounds = array<i64: 16, 4>}, {pipeline_mode = #tpu.pipeline_mode<synchronous>, transform_indices = @transform_2, window_bounds = array<i64: 1, 4>}, {pipeline_mode = #tpu.pipeline_mode<synchronous>, transform_indices = @transform_3, window_bounds = array<i64: 36, 4>}, {pipeline_mode = #tpu.pipeline_mode<synchronous>, transform_indices = @transform_4, window_bounds = array<i64: 1, 4>}, {pipeline_mode = #tpu.pipeline_mode<synchronous>, transform_indices = @transform_5, window_bounds = array<i64: 4, 16>}, {pipeline_mode = #tpu.pipeline_mode<synchronous>, transform_indices = @transform_6, window_bounds = array<i64: 1, 16>}, {transform_indices = @transform_7, window_bounds = array<i64: 1, 16, 16, 16>}]} {
    %c0 = arith.constant 0 : index
    %c0_0 = arith.constant 0 : index
    %c0_1 = arith.constant 0 : index
    %c0_2 = arith.constant 0 : index
    %0 = vector.load %arg1[%c0, %c0_0, %c0_1, %c0_2] : memref<1x16x16x16xbf16, #tpu.memory_space<vmem>>, vector<1x16x16x16xbf16>
    %1 = vector.shape_cast %0 : vector<1x16x16x16xbf16> to vector<16x16x16xbf16>
    %2 = vector.shape_cast %1 : vector<16x16x16xbf16> to vector<256x16xbf16>
    %c0_3 = arith.constant 0 : index
    %c0_4 = arith.constant 0 : index
    %3 = vector.load %arg2[%c0_3, %c0_4] : memref<16x4xbf16, #tpu.memory_space<vmem>>, vector<16x4xbf16>
    %cst = arith.constant dense<0.000000e+00> : vector<256x4xf32>
    %4 = tpu.matmul %2, %3, %cst {dimension_numbers = #tpu.dot_dimension_numbers<[1], [0], [0], [1], [0, 0, 1, 1], [], []>} : vector<256x16xbf16>, vector<16x4xbf16>, vector<256x4xf32> -> vector<256x4xf32>
    %c0_5 = arith.constant 0 : index
    %c0_6 = arith.constant 0 : index
    %5 = vector.load %arg3[%c0_5, %c0_6] : memref<1x4xf32, #tpu.memory_space<vmem>>, vector<1x4xf32>
    %6 = vector.shape_cast %5 : vector<1x4xf32> to vector<4xf32>
    %7 = vector.shape_cast %6 : vector<4xf32> to vector<1x4xf32>
    %8 = vector.broadcast %7 : vector<1x4xf32> to vector<256x4xf32>
    %9 = arith.addf %4, %8 : vector<256x4xf32>
    %cst_7 = arith.constant 0.000000e+00 : f32
    %10 = vector.broadcast %cst_7 : f32 to vector<256x4xf32>
    %11 = arith.maximumf %9, %10 : vector<256x4xf32>
    %12 = vector.shape_cast %11 : vector<256x4xf32> to vector<16x16x4xf32>
    %13 = arith.truncf %12 : vector<16x16x4xf32> to vector<16x16x4xbf16>
    %cst_8 = arith.constant 0.000000e+00 : bf16
    %14 = vector.broadcast %cst_8 : bf16 to vector<1x16x36xbf16>
    %cst_9 = arith.constant 0.000000e+00 : bf16
    %15 = vector.broadcast %cst_9 : bf16 to vector<16x1x36xbf16>
    %c0_10 = arith.constant 0 : index
    %c0_11 = arith.constant 0 : index
    %c0_12 = arith.constant 0 : index
    %16 = vector.load %arg9[%c0_10, %c0_11, %c0_12] : memref<16x16x36xbf16, #tpu.memory_space<vmem>>, vector<1x16x36xbf16>
    tpu.vector_store %arg9[%c0_10, %c0_11, %c0_12], %14 {strides = array<i32>} : memref<16x16x36xbf16, #tpu.memory_space<vmem>>, vector<1x16x36xbf16>,
    %c15 = arith.constant 15 : index
    %c0_13 = arith.constant 0 : index
    %c0_14 = arith.constant 0 : index
    %17 = vector.load %arg9[%c15, %c0_13, %c0_14] : memref<16x16x36xbf16, #tpu.memory_space<vmem>>, vector<1x16x36xbf16>
    tpu.vector_store %arg9[%c15, %c0_13, %c0_14], %14 {strides = array<i32>} : memref<16x16x36xbf16, #tpu.memory_space<vmem>>, vector<1x16x36xbf16>,
    %c0_15 = arith.constant 0 : index
    %c0_16 = arith.constant 0 : index
    %c0_17 = arith.constant 0 : index
    %18 = vector.load %arg9[%c0_15, %c0_16, %c0_17] : memref<16x16x36xbf16, #tpu.memory_space<vmem>>, vector<16x1x36xbf16>
    tpu.vector_store %arg9[%c0_15, %c0_16, %c0_17], %15 {strides = array<i32>} : memref<16x16x36xbf16, #tpu.memory_space<vmem>>, vector<16x1x36xbf16>,
    %c0_18 = arith.constant 0 : index
    %c15_19 = arith.constant 15 : index
    %c0_20 = arith.constant 0 : index
    %19 = vector.load %arg9[%c0_18, %c15_19, %c0_20] : memref<16x16x36xbf16, #tpu.memory_space<vmem>>, vector<16x1x36xbf16>
    tpu.vector_store %arg9[%c0_18, %c15_19, %c0_20], %15 {strides = array<i32>} : memref<16x16x36xbf16, #tpu.memory_space<vmem>>, vector<16x1x36xbf16>,
    %20 = vector.extract_strided_slice %13 {offsets = [0, 0, 0], sizes = [15, 15, 4], strides = [1, 1, 1]} : vector<16x16x4xbf16> to vector<15x15x4xbf16>
    %c1 = arith.constant 1 : index
    %c1_21 = arith.constant 1 : index
    %c0_22 = arith.constant 0 : index
    %21 = vector.load %arg9[%c1, %c1_21, %c0_22] : memref<16x16x36xbf16, #tpu.memory_space<vmem>>, vector<15x15x4xbf16>
    tpu.vector_store %arg9[%c1, %c1_21, %c0_22], %20 {strides = array<i32>} : memref<16x16x36xbf16, #tpu.memory_space<vmem>>, vector<15x15x4xbf16>,
    %22 = vector.extract_strided_slice %13 {offsets = [0, 0, 0], sizes = [15, 16, 4], strides = [1, 1, 1]} : vector<16x16x4xbf16> to vector<15x16x4xbf16>
    %c1_23 = arith.constant 1 : index
    %c0_24 = arith.constant 0 : index
    %c4 = arith.constant 4 : index
    %23 = vector.load %arg9[%c1_23, %c0_24, %c4] : memref<16x16x36xbf16, #tpu.memory_space<vmem>>, vector<15x16x4xbf16>
    tpu.vector_store %arg9[%c1_23, %c0_24, %c4], %22 {strides = array<i32>} : memref<16x16x36xbf16, #tpu.memory_space<vmem>>, vector<15x16x4xbf16>,
    %24 = vector.extract_strided_slice %13 {offsets = [0, 1, 0], sizes = [15, 15, 4], strides = [1, 1, 1]} : vector<16x16x4xbf16> to vector<15x15x4xbf16>
    %c1_25 = arith.constant 1 : index
    %c0_26 = arith.constant 0 : index
    %c8 = arith.constant 8 : index
    %25 = vector.load %arg9[%c1_25, %c0_26, %c8] : memref<16x16x36xbf16, #tpu.memory_space<vmem>>, vector<15x15x4xbf16>
    tpu.vector_store %arg9[%c1_25, %c0_26, %c8], %24 {strides = array<i32>} : memref<16x16x36xbf16, #tpu.memory_space<vmem>>, vector<15x15x4xbf16>,
    %26 = vector.extract_strided_slice %13 {offsets = [0, 0, 0], sizes = [16, 15, 4], strides = [1, 1, 1]} : vector<16x16x4xbf16> to vector<16x15x4xbf16>
    %c0_27 = arith.constant 0 : index
    %c1_28 = arith.constant 1 : index
    %c12 = arith.constant 12 : index
    %27 = vector.load %arg9[%c0_27, %c1_28, %c12] : memref<16x16x36xbf16, #tpu.memory_space<vmem>>, vector<16x15x4xbf16>
    tpu.vector_store %arg9[%c0_27, %c1_28, %c12], %26 {strides = array<i32>} : memref<16x16x36xbf16, #tpu.memory_space<vmem>>, vector<16x15x4xbf16>,
    %c0_29 = arith.constant 0 : index
    %c0_30 = arith.constant 0 : index
    %c16 = arith.constant 16 : index
    %28 = vector.load %arg9[%c0_29, %c0_30, %c16] : memref<16x16x36xbf16, #tpu.memory_space<vmem>>, vector<16x16x4xbf16>
    tpu.vector_store %arg9[%c0_29, %c0_30, %c16], %13 {strides = array<i32>} : memref<16x16x36xbf16, #tpu.memory_space<vmem>>, vector<16x16x4xbf16>,
    %29 = vector.extract_strided_slice %13 {offsets = [0, 1, 0], sizes = [16, 15, 4], strides = [1, 1, 1]} : vector<16x16x4xbf16> to vector<16x15x4xbf16>
    %c0_31 = arith.constant 0 : index
    %c0_32 = arith.constant 0 : index
    %c20 = arith.constant 20 : index
    %30 = vector.load %arg9[%c0_31, %c0_32, %c20] : memref<16x16x36xbf16, #tpu.memory_space<vmem>>, vector<16x15x4xbf16>
    tpu.vector_store %arg9[%c0_31, %c0_32, %c20], %29 {strides = array<i32>} : memref<16x16x36xbf16, #tpu.memory_space<vmem>>, vector<16x15x4xbf16>,
    %31 = vector.extract_strided_slice %13 {offsets = [1, 0, 0], sizes = [15, 15, 4], strides = [1, 1, 1]} : vector<16x16x4xbf16> to vector<15x15x4xbf16>
    %c0_33 = arith.constant 0 : index
    %c1_34 = arith.constant 1 : index
    %c24 = arith.constant 24 : index
    %32 = vector.load %arg9[%c0_33, %c1_34, %c24] : memref<16x16x36xbf16, #tpu.memory_space<vmem>>, vector<15x15x4xbf16>
    tpu.vector_store %arg9[%c0_33, %c1_34, %c24], %31 {strides = array<i32>} : memref<16x16x36xbf16, #tpu.memory_space<vmem>>, vector<15x15x4xbf16>,
    %33 = vector.extract_strided_slice %13 {offsets = [1, 0, 0], sizes = [15, 16, 4], strides = [1, 1, 1]} : vector<16x16x4xbf16> to vector<15x16x4xbf16>
    %c0_35 = arith.constant 0 : index
    %c0_36 = arith.constant 0 : index
    %c28 = arith.constant 28 : index
    %34 = vector.load %arg9[%c0_35, %c0_36, %c28] : memref<16x16x36xbf16, #tpu.memory_space<vmem>>, vector<15x16x4xbf16>
    tpu.vector_store %arg9[%c0_35, %c0_36, %c28], %33 {strides = array<i32>} : memref<16x16x36xbf16, #tpu.memory_space<vmem>>, vector<15x16x4xbf16>,
    %35 = vector.extract_strided_slice %13 {offsets = [1, 1, 0], sizes = [15, 15, 4], strides = [1, 1, 1]} : vector<16x16x4xbf16> to vector<15x15x4xbf16>
    %c0_37 = arith.constant 0 : index
    %c0_38 = arith.constant 0 : index
    %c32 = arith.constant 32 : index
    %36 = vector.load %arg9[%c0_37, %c0_38, %c32] : memref<16x16x36xbf16, #tpu.memory_space<vmem>>, vector<15x15x4xbf16>
    tpu.vector_store %arg9[%c0_37, %c0_38, %c32], %35 {strides = array<i32>} : memref<16x16x36xbf16, #tpu.memory_space<vmem>>, vector<15x15x4xbf16>,
    %c0_39 = arith.constant 0 : index
    %c0_40 = arith.constant 0 : index
    %c0_41 = arith.constant 0 : index
    %37 = vector.load %arg9[%c0_39, %c0_40, %c0_41] : memref<16x16x36xbf16, #tpu.memory_space<vmem>>, vector<16x16x36xbf16>
    %38 = vector.shape_cast %37 : vector<16x16x36xbf16> to vector<256x36xbf16>
    %c0_42 = arith.constant 0 : index
    %c0_43 = arith.constant 0 : index
    %39 = vector.load %arg4[%c0_42, %c0_43] : memref<36x4xbf16, #tpu.memory_space<vmem>>, vector<36x4xbf16>
    %cst_44 = arith.constant dense<0.000000e+00> : vector<256x4xf32>
    %40 = tpu.matmul %38, %39, %cst_44 {dimension_numbers = #tpu.dot_dimension_numbers<[1], [0], [0], [1], [0, 0, 1, 1], [], []>} : vector<256x36xbf16>, vector<36x4xbf16>, vector<256x4xf32> -> vector<256x4xf32>
    %c0_45 = arith.constant 0 : index
    %c0_46 = arith.constant 0 : index
    %41 = vector.load %arg5[%c0_45, %c0_46] : memref<1x4xf32, #tpu.memory_space<vmem>>, vector<1x4xf32>
    %42 = vector.shape_cast %41 : vector<1x4xf32> to vector<4xf32>
    %43 = vector.shape_cast %42 : vector<4xf32> to vector<1x4xf32>
    %44 = vector.broadcast %43 : vector<1x4xf32> to vector<256x4xf32>
    %45 = arith.addf %40, %44 : vector<256x4xf32>
    %cst_47 = arith.constant 0.000000e+00 : f32
    %46 = vector.broadcast %cst_47 : f32 to vector<256x4xf32>
    %47 = arith.maximumf %45, %46 : vector<256x4xf32>
    %48 = arith.truncf %47 : vector<256x4xf32> to vector<256x4xbf16>
    %c0_48 = arith.constant 0 : index
    %c0_49 = arith.constant 0 : index
    %49 = vector.load %arg6[%c0_48, %c0_49] : memref<4x16xbf16, #tpu.memory_space<vmem>>, vector<4x16xbf16>
    %cst_50 = arith.constant dense<0.000000e+00> : vector<256x16xf32>
    %50 = tpu.matmul %48, %49, %cst_50 {dimension_numbers = #tpu.dot_dimension_numbers<[1], [0], [0], [1], [0, 0, 1, 1], [], []>} : vector<256x4xbf16>, vector<4x16xbf16>, vector<256x16xf32> -> vector<256x16xf32>
    %c0_51 = arith.constant 0 : index
    %c0_52 = arith.constant 0 : index
    %c0_53 = arith.constant 0 : index
    %c0_54 = arith.constant 0 : index
    %51 = vector.load %arg1[%c0_51, %c0_52, %c0_53, %c0_54] : memref<1x16x16x16xbf16, #tpu.memory_space<vmem>>, vector<1x16x16x16xbf16>
    %52 = vector.shape_cast %51 : vector<1x16x16x16xbf16> to vector<16x16x16xbf16>
    %53 = vector.shape_cast %52 : vector<16x16x16xbf16> to vector<256x16xbf16>
    %54 = arith.extf %53 : vector<256x16xbf16> to vector<256x16xf32>
    %c0_55 = arith.constant 0 : index
    %c0_56 = arith.constant 0 : index
    %55 = vector.load %arg7[%c0_55, %c0_56] : memref<1x16xf32, #tpu.memory_space<vmem>>, vector<1x16xf32>
    %56 = vector.shape_cast %55 : vector<1x16xf32> to vector<16xf32>
    %57 = vector.shape_cast %56 : vector<16xf32> to vector<1x16xf32>
    %58 = vector.broadcast %57 : vector<1x16xf32> to vector<256x16xf32>
    %59 = arith.addf %50, %58 : vector<256x16xf32>
    %60 = arith.addf %59, %54 : vector<256x16xf32>
    %cst_57 = arith.constant 0.000000e+00 : f32
    %61 = vector.broadcast %cst_57 : f32 to vector<256x16xf32>
    %62 = arith.maximumf %60, %61 : vector<256x16xf32>
    %63 = vector.shape_cast %62 : vector<256x16xf32> to vector<16x16x16xf32>
    %64 = arith.truncf %63 : vector<16x16x16xf32> to vector<16x16x16xbf16>
    %c0_58 = arith.constant 0 : index
    %c0_59 = arith.constant 0 : index
    %c0_60 = arith.constant 0 : index
    %c0_61 = arith.constant 0 : index
    %65 = vector.load %arg8[%c0_58, %c0_59, %c0_60, %c0_61] : memref<1x16x16x16xbf16, #tpu.memory_space<vmem>>, vector<1x16x16x16xbf16>
    %66 = vector.shape_cast %65 : vector<1x16x16x16xbf16> to vector<16x16x16xbf16>
    %67 = vector.shape_cast %64 : vector<16x16x16xbf16> to vector<1x16x16x16xbf16>
    tpu.vector_store %arg8[%c0_58, %c0_59, %c0_60, %c0_61], %67 {strides = array<i32>} : memref<1x16x16x16xbf16, #tpu.memory_space<vmem>>, vector<1x16x16x16xbf16>,
    return
  }
  func.func @transform_0(%arg0: i32) -> (i32, i32, i32, i32) {
    %c0_i32 = arith.constant 0 : i32
    %c0_i32_0 = arith.constant 0 : i32
    %c0_i32_1 = arith.constant 0 : i32
    %c0_i32_2 = arith.constant 0 : i32
    return %arg0, %c0_i32, %c0_i32_0, %c0_i32_1 : i32, i32, i32, i32
  }
  func.func @transform_1(%arg0: i32) -> (i32, i32) {
    %c0_i32 = arith.constant 0 : i32
    %c0_i32_0 = arith.constant 0 : i32
    %c0_i32_1 = arith.constant 0 : i32
    return %c0_i32, %c0_i32_0 : i32, i32
  }
  func.func @transform_2(%arg0: i32) -> (i32, i32) {
    %c0_i32 = arith.constant 0 : i32
    %c0_i32_0 = arith.constant 0 : i32
    %c0_i32_1 = arith.constant 0 : i32
    return %c0_i32, %c0_i32_0 : i32, i32
  }
  func.func @transform_3(%arg0: i32) -> (i32, i32) {
    %c0_i32 = arith.constant 0 : i32
    %c0_i32_0 = arith.constant 0 : i32
    %c0_i32_1 = arith.constant 0 : i32
    return %c0_i32, %c0_i32_0 : i32, i32
  }
  func.func @transform_4(%arg0: i32) -> (i32, i32) {
    %c0_i32 = arith.constant 0 : i32
    %c0_i32_0 = arith.constant 0 : i32
    %c0_i32_1 = arith.constant 0 : i32
    return %c0_i32, %c0_i32_0 : i32, i32
  }
  func.func @transform_5(%arg0: i32) -> (i32, i32) {
    %c0_i32 = arith.constant 0 : i32
    %c0_i32_0 = arith.constant 0 : i32
    %c0_i32_1 = arith.constant 0 : i32
    return %c0_i32, %c0_i32_0 : i32, i32
  }
  func.func @transform_6(%arg0: i32) -> (i32, i32) {
    %c0_i32 = arith.constant 0 : i32
    %c0_i32_0 = arith.constant 0 : i32
    %c0_i32_1 = arith.constant 0 : i32
    return %c0_i32, %c0_i32_0 : i32, i32
  }
  func.func @transform_7(%arg0: i32) -> (i32, i32, i32, i32) {
    %c0_i32 = arith.constant 0 : i32
    %c0_i32_0 = arith.constant 0 : i32
    %c0_i32_1 = arith.constant 0 : i32
    %c0_i32_2 = arith.constant 0 : i32
    return %arg0, %c0_i32, %c0_i32_0, %c0_i32_1 : i32, i32, i32, i32
  }
}

</mosaic_0001>

<llo_original>
// kernel: bottleneck_forward.1
$region0: #{bottleneck_forward.1}
  #allocation0 [shape = 'u32[]', space=smem, size = 0x4, offset = 0x4, fixed_abs, tag = 'smem constant byte address 0x4 - core index']
  #allocation1 [shape = 'u32[144,128]{1,0:T(1,128)}', space=vmem, size = 0x12000, scoped, tag = 'internal scratch']
  #allocation2 [shape = 'bf16[16,16,36]{2,1,0:T(8,128)(2,1)}', space=vmem, size = 0x10000, scoped, tag = 'scratch operand']
  %s0 = inlined_call_operand.vmem [shape: bf16[2,16,16,16], index: 0, kind: input, shape index: {}]
  %s1 = inlined_call_operand.vmem [shape: bf16[16,4], index: 1, kind: input, shape index: {}]
  %s2 = inlined_call_operand.vmem [shape: f32[1,4], index: 2, kind: input, shape index: {}]
  %s3 = inlined_call_operand.vmem [shape: bf16[36,4], index: 3, kind: input, shape index: {}]
  %s4 = inlined_call_operand.vmem [shape: f32[1,4], index: 4, kind: input, shape index: {}]
  %s5 = inlined_call_operand.vmem [shape: bf16[4,16], index: 5, kind: input, shape index: {}]
  %s6 = inlined_call_operand.vmem [shape: f32[1,16], index: 6, kind: input, shape index: {}]
  %s7 = inlined_call_operand.vmem [shape: bf16[2,16,16,16], index: 7, kind: output, shape index: {}]
  %s8 = sld [smem:[#allocation0]]
  $region61: #{bottleneck_forward.1} parent=0
    _
  %s10 = ssub.s32 1, %s8
  %s11 = scalar_select 0, %s10, %s8
  loop: start=0, step=1, limit=4
  $region2: #{bottleneck_forward.1} parent=0 // loop_pre_header
    _
  $region3: #{bottleneck_forward.1} parent=0 // loop_header
    %s13 = sphi 0, %s17
    %p14 = scmp.ge.s32.totalorder %s13, 4
    %s23 = sphi 0, %s25
    %s26 = sphi 0, %s23
    %s27 = sphi 0, %s26
    %s43 = sphi 0, %s27
    %s47 = sphi 0, %s47
    %s49 = sphi 0, %s47
    %s50 = sphi 0, %s49
    %s64 = sphi 0, %s50
    %s68 = sphi 0, %s68
    %s70 = sphi 0, %s68
    %s71 = sphi 0, %s70
    %s85 = sphi 0, %s71
    %s89 = sphi 0, %s89
    %s91 = sphi 0, %s89
    %s92 = sphi 0, %s91
    %s106 = sphi 0, %s92
    %s110 = sphi 0, %s110
    %s112 = sphi 0, %s110
    %s113 = sphi 0, %s112
    %s127 = sphi 0, %s113
    %s131 = sphi 0, %s131
    %s133 = sphi 0, %s131
    %s134 = sphi 0, %s133
    %s148 = sphi 0, %s134
    %s152 = sphi 0, %s152
    %s154 = sphi 0, %s152
    %s155 = sphi 0, %s154
    %s169 = sphi 0, %s155
    %s175 = sphi 0, %s177
    %s178 = sphi 0, %s175
    %s179 = sphi 0, %s178
    %s195 = sphi 0, %s179
  $region4: #{bottleneck_forward.1} parent=0 // loop_header_branch
    %16 = sbr.rel (%p14) target = $region8
  $region5: #{bottleneck_forward.1} parent=0 // loop_body
    %s18 = ssub.s32 %s13, 1
    %s19 = ssub.s32 %s13, 2
    %s20 = sadd.s32 %s13, 1
    %s21 = ssub.s32 %s13, %s20
    %p22 = scmp.eq.s32.totalorder %s21, 0
    %s24 = sadd.s32 %s23, 1
    %s25 = scalar_select %p22, %s23, %s24
    %p28 = pneg %p22
    %p29 = scmp.eq.s32.totalorder %s13, 1
    %p30 = por %p28, %p29
    %p31 = scmp.ne.s32.totalorder %s23, %s26
    %p32 = scmp.eq.s32.totalorder %s13, 0
    %p33 = por %p31, %p32
    %p34 = scmp.ne.s32.totalorder %s23, %s26
    %p35 = scmp.eq.s32.totalorder %s18, 1
    %p36 = por %p34, %p35
    %p37 = scmp.ne.s32.totalorder %s26, %s27
    %p38 = scmp.eq.s32.totalorder %s18, 0
    %p39 = por %p37, %p38
    %p40 = scmp.ne.s32.totalorder %s26, %s27
    %p41 = scmp.eq.s32.totalorder %s19, 1
    %p42 = por %p40, %p41
    %p44 = scmp.ne.s32.totalorder %s27, %s43
    %p45 = scmp.eq.s32.totalorder %s19, 0
    %p46 = por %p44, %p45
    %s48 = sadd.s32 %s47, 1
    %p51 = scmp.eq.s32.totalorder %s13, 1
    %p52 = scmp.ne.s32.totalorder %s47, %s49
    %p53 = scmp.eq.s32.totalorder %s13, 0
    %p54 = por %p52, %p53
    %p55 = scmp.ne.s32.totalorder %s47, %s49
    %p56 = scmp.eq.s32.totalorder %s18, 1
    %p57 = por %p55, %p56
    %p58 = scmp.ne.s32.totalorder %s49, %s50
    %p59 = scmp.eq.s32.totalorder %s18, 0
    %p60 = por %p58, %p59
    %p61 = scmp.ne.s32.totalorder %s49, %s50
    %p62 = scmp.eq.s32.totalorder %s19, 1
    %p63 = por %p61, %p62
    %p65 = scmp.ne.s32.totalorder %s50, %s64
    %p66 = scmp.eq.s32.totalorder %s19, 0
    %p67 = por %p65, %p66
    %s69 = sadd.s32 %s68, 1
    %p72 = scmp.eq.s32.totalorder %s13, 1
    %p73 = scmp.ne.s32.totalorder %s68, %s70
    %p74 = scmp.eq.s32.totalorder %s13, 0
    %p75 = por %p73, %p74
    %p76 = scmp.ne.s32.totalorder %s68, %s70
    %p77 = scmp.eq.s32.totalorder %s18, 1
    %p78 = por %p76, %p77
    %p79 = scmp.ne.s32.totalorder %s70, %s71
    %p80 = scmp.eq.s32.totalorder %s18, 0
    %p81 = por %p79, %p80
    %p82 = scmp.ne.s32.totalorder %s70, %s71
    %p83 = scmp.eq.s32.totalorder %s19, 1
    %p84 = por %p82, %p83
    %p86 = scmp.ne.s32.totalorder %s71, %s85
    %p87 = scmp.eq.s32.totalorder %s19, 0
    %p88 = por %p86, %p87
    %s90 = sadd.s32 %s89, 1
    %p93 = scmp.eq.s32.totalorder %s13, 1
    %p94 = scmp.ne.s32.totalorder %s89, %s91
    %p95 = scmp.eq.s32.totalorder %s13, 0
    %p96 = por %p94, %p95
    %p97 = scmp.ne.s32.totalorder %s89, %s91
    %p98 = scmp.eq.s32.totalorder %s18, 1
    %p99 = por %p97, %p98
    %p100 = scmp.ne.s32.totalorder %s91, %s92
    %p101 = scmp.eq.s32.totalorder %s18, 0
    %p102 = por %p100, %p101
    %p103 = scmp.ne.s32.totalorder %s91, %s92
    %p104 = scmp.eq.s32.totalorder %s19, 1
    %p105 = por %p103, %p104
    %p107 = scmp.ne.s32.totalorder %s92, %s106
    %p108 = scmp.eq.s32.totalorder %s19, 0
    %p109 = por %p107, %p108
    %s111 = sadd.s32 %s110, 1
    %p114 = scmp.eq.s32.totalorder %s13, 1
    %p115 = scmp.ne.s32.totalorder %s110, %s112
    %p116 = scmp.eq.s32.totalorder %s13, 0
    %p117 = por %p115, %p116
    %p118 = scmp.ne.s32.totalorder %s110, %s112
    %p119 = scmp.eq.s32.totalorder %s18, 1
    %p120 = por %p118, %p119
    %p121 = scmp.ne.s32.totalorder %s112, %s113
    %p122 = scmp.eq.s32.totalorder %s18, 0
    %p123 = por %p121, %p122
    %p124 = scmp.ne.s32.totalorder %s112, %s113
    %p125 = scmp.eq.s32.totalorder %s19, 1
    %p126 = por %p124, %p125
    %p128 = scmp.ne.s32.totalorder %s113, %s127
    %p129 = scmp.eq.s32.totalorder %s19, 0
    %p130 = por %p128, %p129
    %s132 = sadd.s32 %s131, 1
    %p135 = scmp.eq.s32.totalorder %s13, 1
    %p136 = scmp.ne.s32.totalorder %s131, %s133
    %p137 = scmp.eq.s32.totalorder %s13, 0
    %p138 = por %p136, %p137
    %p139 = scmp.ne.s32.totalorder %s131, %s133
    %p140 = scmp.eq.s32.totalorder %s18, 1
    %p141 = por %p139, %p140
    %p142 = scmp.ne.s32.totalorder %s133, %s134
    %p143 = scmp.eq.s32.totalorder %s18, 0
    %p144 = por %p142, %p143
    %p145 = scmp.ne.s32.totalorder %s133, %s134
    %p146 = scmp.eq.s32.totalorder %s19, 1
    %p147 = por %p145, %p146
    %p149 = scmp.ne.s32.totalorder %s134, %s148
    %p150 = scmp.eq.s32.totalorder %s19, 0
    %p151 = por %p149, %p150
    %s153 = sadd.s32 %s152, 1
    %p156 = scmp.eq.s32.totalorder %s13, 1
    %p157 = scmp.ne.s32.totalorder %s152, %s154
    %p158 = scmp.eq.s32.totalorder %s13, 0
    %p159 = por %p157, %p158
    %p160 = scmp.ne.s32.totalorder %s152, %s154
    %p161 = scmp.eq.s32.totalorder %s18, 1
    %p162 = por %p160, %p161
    %p163 = scmp.ne.s32.totalorder %s154, %s155
    %p164 = scmp.eq.s32.totalorder %s18, 0
    %p165 = por %p163, %p164
    %p166 = scmp.ne.s32.totalorder %s154, %s155
    %p167 = scmp.eq.s32.totalorder %s19, 1
    %p168 = por %p166, %p167
    %p170 = scmp.ne.s32.totalorder %s155, %s169
    %p171 = scmp.eq.s32.totalorder %s19, 0
    %p172 = por %p170, %p171
    %s173 = ssub.s32 %s13, %s20
    %p174 = scmp.eq.s32.totalorder %s173, 0
    %s176 = sadd.s32 %s175, 1
    %s177 = scalar_select %p174, %s175, %s176
    %p180 = pneg %p174
    %p181 = scmp.eq.s32.totalorder %s13, 1
    %p182 = por %p180, %p181
    %p183 = scmp.ne.s32.totalorder %s175, %s178
    %p184 = scmp.eq.s32.totalorder %s13, 0
    %p185 = por %p183, %p184
    %p186 = scmp.ne.s32.totalorder %s175, %s178
    %p187 = scmp.eq.s32.totalorder %s18, 1
    %p188 = por %p186, %p187
    %p189 = scmp.ne.s32.totalorder %s178, %s179
    %p190 = scmp.eq.s32.totalorder %s18, 0
    %p191 = por %p189, %p190
    %p192 = scmp.ne.s32.totalorder %s178, %s179
    %p193 = scmp.eq.s32.totalorder %s19, 1
    %p194 = por %p192, %p193
    %p196 = scmp.ne.s32.totalorder %s179, %s195
    %p197 = scmp.eq.s32.totalorder %s19, 0
    %p198 = por %p196, %p197
    %p199 = scmp.le.s32.totalorder 1, %s13
    %p200 = scmp.lt.s32.totalorder %s13, 3
    %p201 = pnand %p199, %p200
    %p202 = pneg %p201
    // Predicated region
    $region9: #{bottleneck_forward.1} parent=5 // pred_check
      _
    $region10: #{bottleneck_forward.1} parent=5 // pred_check_branch
      %204 = sbr.rel (%p201) target = $region12
    $region11: #{bottleneck_forward.1} parent=5 // pred_region
      %s205 = ssub.s32 %s13, 1
      // Predicated region
      $region13: #{bottleneck_forward.1} parent=11 // pred_check
        %p206 = pneg %p60
      $region14: #{bottleneck_forward.1} parent=11 // pred_check_branch
        %208 = sbr.rel (%p206) target = $region16
      $region15: #{bottleneck_forward.1} parent=11 // pred_region
        _
      $region16: #{bottleneck_forward.1} parent=11 // pred_fallthru
        _
      // Predicated region
      $region17: #{bottleneck_forward.1} parent=11 // pred_check
        %p209 = pneg %p81
      $region18: #{bottleneck_forward.1} parent=11 // pred_check_branch
        %211 = sbr.rel (%p209) target = $region20
      $region19: #{bottleneck_forward.1} parent=11 // pred_region
        _
      $region20: #{bottleneck_forward.1} parent=11 // pred_fallthru
        _
      // Predicated region
      $region21: #{bottleneck_forward.1} parent=11 // pred_check
        %p212 = pneg %p102
      $region22: #{bottleneck_forward.1} parent=11 // pred_check_branch
        %214 = sbr.rel (%p212) target = $region24
      $region23: #{bottleneck_forward.1} parent=11 // pred_region
        _
      $region24: #{bottleneck_forward.1} parent=11 // pred_fallthru
        _
      // Predicated region
      $region25: #{bottleneck_forward.1} parent=11 // pred_check
        %p215 = pneg %p123
      $region26: #{bottleneck_forward.1} parent=11 // pred_check_branch
        %217 = sbr.rel (%p215) target = $region28
      $region27: #{bottleneck_forward.1} parent=11 // pred_region
        _
      $region28: #{bottleneck_forward.1} parent=11 // pred_fallthru
        _
      // Predicated region
      $region29: #{bottleneck_forward.1} parent=11 // pred_check
        %p218 = pneg %p144
      $region30: #{bottleneck_forward.1} parent=11 // pred_check_branch
        %220 = sbr.rel (%p218) target = $region32
      $region31: #{bottleneck_forward.1} parent=11 // pred_region
        _
      $region32: #{bottleneck_forward.1} parent=11 // pred_fallthru
        _
      // Predicated region
      $region33: #{bottleneck_forward.1} parent=11 // pred_check
        %p221 = pneg %p165
      $region34: #{bottleneck_forward.1} parent=11 // pred_check_branch
        %223 = sbr.rel (%p221) target = $region36
      $region35: #{bottleneck_forward.1} parent=11 // pred_region
        _
      $region36: #{bottleneck_forward.1} parent=11 // pred_fallthru
        _
    $region12: #{bottleneck_forward.1} parent=5 // pred_fallthru
      _
    %p224 = scmp.lt.s32.totalorder %s13, 2
    // Predicated region
    $region37: #{bottleneck_forward.1} parent=5 // pred_check
      %p225 = pneg %p224
    $region38: #{bottleneck_forward.1} parent=5 // pred_check_branch
      %227 = sbr.rel (%p225) target = $region40
    $region39: #{bottleneck_forward.1} parent=5 // pred_region
      // Predicated region
      $region41: #{bottleneck_forward.1} parent=39 // pred_check
        %p228 = pneg %p33
      $region42: #{bottleneck_forward.1} parent=39 // pred_check_branch
        %230 = sbr.rel (%p228) target = $region44
      $region43: #{bottleneck_forward.1} parent=39 // pred_region
        %p231 = scmp.lt.s32.totalorder %s13, 1
        %s232 = scalar_select %p231, %s13, 1
        %s233 = smul.addr %s232, 32
        %s234 = smul.addr %s233, 4
        %s235 = scalar_lea.vmem %s0, %s234
      $region44: #{bottleneck_forward.1} parent=39 // pred_fallthru
        _
    $region40: #{bottleneck_forward.1} parent=5 // pred_fallthru
      _
    %p236 = scmp.le.s32.totalorder 1, %s13
    %p237 = scmp.lt.s32.totalorder %s13, 3
    %p238 = pnand %p236, %p237
    %p239 = pneg %p238
    // Predicated region
    $region45: #{bottleneck_forward.1} parent=5 // pred_check
      _
    $region46: #{bottleneck_forward.1} parent=5 // pred_check_branch
      %241 = sbr.rel (%p238) target = $region48
    $region47: #{bottleneck_forward.1} parent=5 // pred_region
      %s242 = ssub.s32 %s13, 1
      %p243 = scmp.lt.s32.totalorder %s18, 1
      %s244 = scalar_select %p243, %s18, 1
      %s245 = smul.addr %s244, 32
      %s246 = smul.addr %s245, 4
      %s247 = scalar_lea.vmem %s0, %s246
      %p248 = pneg %p39
      %p249 = pneg %p36
      %p250 = pneg %p60
      %p251 = pneg %p57
      %p252 = pneg %p81
      %p253 = pneg %p78
      %p254 = pneg %p102
      %p255 = pneg %p99
      %p256 = pneg %p123
      %p257 = pneg %p120
      %p258 = pneg %p144
      %p259 = pneg %p141
      %p260 = pneg %p165
      %p261 = pneg %p162
      %p262 = pneg %p191
      %p263 = pneg %p188
      %p264 = scmp.lt.s32.totalorder %s18, 1
      %s265 = scalar_select %p264, %s18, 1
      %s266 = smul.addr %s265, 32
      %s267 = smul.addr %s266, 4
      %s268 = scalar_lea.vmem %s7, %s267
      %p269 = scmp.lt.s32.totalorder %s18, 1
      %s270 = scalar_select %p269, %s18, 1
      %s271 = smul.addr %s270, 32
      %s272 = smul.addr %s271, 4
      %s273 = scalar_lea.vmem %s0, %s272
      %p274 = scmp.lt.s32.totalorder %s18, 1
      %s275 = scalar_select %p274, %s18, 1
      %s276 = smul.addr %s275, 32
      %s277 = smul.addr %s276, 4
      %s278 = scalar_lea.vmem %s7, %s277
      %v280 = vld [vmem:[%s273] sm:$0xf]
      %v281 = vld [vmem:[%s273 + $0x4] sm:$0xf]
      %v282 = vld [vmem:[%s273 + $0x8] sm:$0xf]
      %v283 = vld [vmem:[%s273 + $0xc] sm:$0xf]
      %v284 = vld [vmem:[%s273 + $0x10] sm:$0xf]
      %v285 = vld [vmem:[%s273 + $0x14] sm:$0xf]
      %v286 = vld [vmem:[%s273 + $0x18] sm:$0xf]
      %v287 = vld [vmem:[%s273 + $0x1c] sm:$0xf]
      %v288 = vld [vmem:[%s273 + $0x20] sm:$0xf]
      %v289 = vld [vmem:[%s273 + $0x24] sm:$0xf]
      %v290 = vld [vmem:[%s273 + $0x28] sm:$0xf]
      %v291 = vld [vmem:[%s273 + $0x2c] sm:$0xf]
      %v292 = vld [vmem:[%s273 + $0x30] sm:$0xf]
      %v293 = vld [vmem:[%s273 + $0x34] sm:$0xf]
      %v294 = vld [vmem:[%s273 + $0x38] sm:$0xf]
      %v295 = vld [vmem:[%s273 + $0x3c] sm:$0xf]
      %v296 = vld [vmem:[%s273 + $0x40] sm:$0xf]
      %v297 = vld [vmem:[%s273 + $0x44] sm:$0xf]
      %v298 = vld [vmem:[%s273 + $0x48] sm:$0xf]
      %v299 = vld [vmem:[%s273 + $0x4c] sm:$0xf]
      %v300 = vld [vmem:[%s273 + $0x50] sm:$0xf]
      %v301 = vld [vmem:[%s273 + $0x54] sm:$0xf]
      %v302 = vld [vmem:[%s273 + $0x58] sm:$0xf]
      %v303 = vld [vmem:[%s273 + $0x5c] sm:$0xf]
      %v304 = vld [vmem:[%s273 + $0x60] sm:$0xf]
      %v305 = vld [vmem:[%s273 + $0x64] sm:$0xf]
      %v306 = vld [vmem:[%s273 + $0x68] sm:$0xf]
      %v307 = vld [vmem:[%s273 + $0x6c] sm:$0xf]
      %v308 = vld [vmem:[%s273 + $0x70] sm:$0xf]
      %v309 = vld [vmem:[%s273 + $0x74] sm:$0xf]
      %v310 = vld [vmem:[%s273 + $0x78] sm:$0xf]
      %v311 = vld [vmem:[%s273 + $0x7c] sm:$0xf]
      %v312 = vld [vmem:[%s1] sm:$0xf]
      %v313 = vld [vmem:[%s1 + $0x4] sm:$0xf]
      %v314 = vld [vmem:[%s2] sm:$0x1]
      %v316 = vlaneseq
      %v317 = vshrl.u32 %v316, 7
      %v318 = vsub.s32 0, %v317
      %v319 = vrot.slane %v314, %v318
      %v353 = vunpack.c.l.b16 %v280
      %v354 = vunpack.c.l.b16 %v281
      %v355 = vunpack.c.l.b16 %v282
      %v356 = vunpack.c.l.b16 %v283
      %v357 = vunpack.c.l.b16 %v284
      %v358 = vunpack.c.l.b16 %v285
      %v359 = vunpack.c.l.b16 %v286
      %v360 = vunpack.c.l.b16 %v287
      %v361 = vunpack.c.l.b16 %v288
      %v362 = vunpack.c.l.b16 %v289
      %v363 = vunpack.c.l.b16 %v290
      %v364 = vunpack.c.l.b16 %v291
      %v365 = vunpack.c.l.b16 %v292
      %v366 = vunpack.c.l.b16 %v293
      %v367 = vunpack.c.l.b16 %v294
      %v368 = vunpack.c.l.b16 %v295
      %v369 = vunpack.c.l.b16 %v296
      %v370 = vunpack.c.l.b16 %v297
      %v371 = vunpack.c.l.b16 %v298
      %v372 = vunpack.c.l.b16 %v299
      %v373 = vunpack.c.l.b16 %v300
      %v374 = vunpack.c.l.b16 %v301
      %v375 = vunpack.c.l.b16 %v302
      %v376 = vunpack.c.l.b16 %v303
      %v377 = vunpack.c.l.b16 %v304
      %v378 = vunpack.c.l.b16 %v305
      %v379 = vunpack.c.l.b16 %v306
      %v380 = vunpack.c.l.b16 %v307
      %v381 = vunpack.c.l.b16 %v308
      %v382 = vunpack.c.l.b16 %v309
      %v383 = vunpack.c.l.b16 %v310
      %v384 = vunpack.c.l.b16 %v311
      %v385 = vpack.c.b16 %v354, %v353
      %v386 = vpack.c.b16 %v356, %v355
      %v387 = vpack.c.b16 %v358, %v357
      %v388 = vpack.c.b16 %v360, %v359
      %v389 = vpack.c.b16 %v362, %v361
      %v390 = vpack.c.b16 %v364, %v363
      %v391 = vpack.c.b16 %v366, %v365
      %v392 = vpack.c.b16 %v368, %v367
      %v393 = vpack.c.b16 %v370, %v369
      %v394 = vpack.c.b16 %v372, %v371
      %v395 = vpack.c.b16 %v374, %v373
      %v396 = vpack.c.b16 %v376, %v375
      %v397 = vpack.c.b16 %v378, %v377
      %v398 = vpack.c.b16 %v380, %v379
      %v399 = vpack.c.b16 %v382, %v381
      %v400 = vpack.c.b16 %v384, %v383
      %v403 = vunpack.c.l.b16 %v312
      %v404 = vunpack.c.l.b16 %v313
      %v405 = vpack.c.b16 %v404, %v403
      %vm407 = vcmask 130048
      %v409 = vsel %vm407, %v385, 0
      %v412 = vsel %vm407, %v386, 0
      %v415 = vsel %vm407, %v387, 0
      %v418 = vsel %vm407, %v388, 0
      %v421 = vsel %vm407, %v389, 0
      %v424 = vsel %vm407, %v390, 0
      %v427 = vsel %vm407, %v391, 0
      %v430 = vsel %vm407, %v392, 0
      %v433 = vsel %vm407, %v393, 0
      %v436 = vsel %vm407, %v394, 0
      %v439 = vsel %vm407, %v395, 0
      %v442 = vsel %vm407, %v396, 0
      %v445 = vsel %vm407, %v397, 0
      %v448 = vsel %vm407, %v398, 0
      %v451 = vsel %vm407, %v399, 0
      %v454 = vsel %vm407, %v400, 0
      %456 = vmatprep.subr.bf16.mxu0 0
      %457 = vmatpush1.bf16.msra.mxu0 0
      %458 = vmatprep.subr.bf16.mxu0 0
      %459 = vmatpush1.bf16.msra.mxu0 0
      %460 = vmatprep.subr.bf16.mxu0 0
      %461 = vmatpush1.bf16.msra.mxu0 0
      %462 = vmatprep.subr.bf16.mxu0 0
      %463 = vmatpush1.bf16.msra.mxu0 0
      %464 = vmatprep.subr.bf16.mxu0 0
      %465 = vmatpush1.bf16.msra.mxu0 0
      %466 = vmatprep.subr.bf16.mxu0 0
      %467 = vmatpush1.bf16.msra.mxu0 0
      %468 = vmatprep.subr.bf16.mxu0 0
      %469 = vmatpush1.bf16.msra.mxu0 0
      %470 = vmatprep.subr.bf16.mxu0 0
      %471 = vmatpush1.bf16.msra.mxu0 %v405
      %472 = vmatprep.subr.bf16.mxu0 0
      %473 = vmatpush2.bf16.msra.mxu0 0
      %474 = vmatprep.subr.bf16.mxu0 0
      %475 = vmatpush2.bf16.msra.mxu0 0
      %476 = vmatprep.subr.bf16.mxu0 0
      %477 = vmatpush2.bf16.msra.mxu0 0
      %478 = vmatprep.subr.bf16.mxu0 0
      %479 = vmatpush2.bf16.msra.mxu0 0
      %480 = vmatprep.subr.bf16.mxu0 0
      %481 = vmatpush2.bf16.msra.mxu0 0
      %482 = vmatprep.subr.bf16.mxu0 0
      %483 = vmatpush2.bf16.msra.mxu0 0
      %484 = vmatprep.subr.bf16.mxu0 0
      %485 = vmatpush2.bf16.msra.mxu0 0
      %486 = vmatprep.subr.bf16.mxu0 0
      %487 = vmatpush2.bf16.msra.mxu0 0
      %488 = vmatprep.mubr.bf16.mxu0 0
      %489 = vmatmul.mubr.bf16.gmra.mxu0 %v409
      %v490 = vpop.f32.mrf.mxu0
      %v491 = vadd.f32 %v319, %v490
      %v492 = vpop.f32.mrf.mxu0
      %v493 = vpop.f32.mrf.mxu0
      %v494 = vadd.f32 %v319, %v493
      %v495 = vpop.f32.mrf.mxu0
      %496 = vmatprep.mubr.bf16.mxu0 0
      %497 = vmatmul.mubr.bf16.gmra.mxu0 %v412
      %v498 = vpop.f32.mrf.mxu0
      %v499 = vadd.f32 %v319, %v498
      %v500 = vpop.f32.mrf.mxu0
      %v501 = vpop.f32.mrf.mxu0
      %v502 = vadd.f32 %v319, %v501
      %v503 = vpop.f32.mrf.mxu0
      %504 = vmatprep.mubr.bf16.mxu0 0
      %505 = vmatmul.mubr.bf16.gmra.mxu0 %v415
      %v506 = vpop.f32.mrf.mxu0
      %v507 = vadd.f32 %v319, %v506
      %v508 = vpop.f32.mrf.mxu0
      %v509 = vpop.f32.mrf.mxu0
      %v510 = vadd.f32 %v319, %v509
      %v511 = vpop.f32.mrf.mxu0
      %512 = vmatprep.mubr.bf16.mxu0 0
      %513 = vmatmul.mubr.bf16.gmra.mxu0 %v418
      %v514 = vpop.f32.mrf.mxu0
      %v515 = vadd.f32 %v319, %v514
      %v516 = vpop.f32.mrf.mxu0
      %v517 = vpop.f32.mrf.mxu0
      %v518 = vadd.f32 %v319, %v517
      %v519 = vpop.f32.mrf.mxu0
      %520 = vmatprep.mubr.bf16.mxu0 0
      %521 = vmatmul.mubr.bf16.gmra.mxu0 %v421
      %v522 = vpop.f32.mrf.mxu0
      %v523 = vadd.f32 %v319, %v522
      %v524 = vpop.f32.mrf.mxu0
      %v525 = vpop.f32.mrf.mxu0
      %v526 = vadd.f32 %v319, %v525
      %v527 = vpop.f32.mrf.mxu0
      %528 = vmatprep.mubr.bf16.mxu0 0
      %529 = vmatmul.mubr.bf16.gmra.mxu0 %v424
      %v530 = vpop.f32.mrf.mxu0
      %v531 = vadd.f32 %v319, %v530
      %v532 = vpop.f32.mrf.mxu0
      %v533 = vpop.f32.mrf.mxu0
      %v534 = vadd.f32 %v319, %v533
      %v535 = vpop.f32.mrf.mxu0
      %536 = vmatprep.mubr.bf16.mxu0 0
      %537 = vmatmul.mubr.bf16.gmra.mxu0 %v427
      %v538 = vpop.f32.mrf.mxu0
      %v539 = vadd.f32 %v319, %v538
      %v540 = vpop.f32.mrf.mxu0
      %v541 = vpop.f32.mrf.mxu0
      %v542 = vadd.f32 %v319, %v541
      %v543 = vpop.f32.mrf.mxu0
      %544 = vmatprep.mubr.bf16.mxu0 0
      %545 = vmatmul.mubr.bf16.gmra.mxu0 %v430
      %v546 = vpop.f32.mrf.mxu0
      %v547 = vadd.f32 %v319, %v546
      %v548 = vpop.f32.mrf.mxu0
      %v549 = vpop.f32.mrf.mxu0
      %v550 = vadd.f32 %v319, %v549
      %v551 = vpop.f32.mrf.mxu0
      %552 = vmatprep.mubr.bf16.mxu0 0
      %553 = vmatmul.mubr.bf16.gmra.mxu0 %v433
      %v554 = vpop.f32.mrf.mxu0
      %v555 = vadd.f32 %v319, %v554
      %v556 = vpop.f32.mrf.mxu0
      %v557 = vpop.f32.mrf.mxu0
      %v558 = vadd.f32 %v319, %v557
      %v559 = vpop.f32.mrf.mxu0
      %560 = vmatprep.mubr.bf16.mxu0 0
      %561 = vmatmul.mubr.bf16.gmra.mxu0 %v436
      %v562 = vpop.f32.mrf.mxu0
      %v563 = vadd.f32 %v319, %v562
      %v564 = vpop.f32.mrf.mxu0
      %v565 = vpop.f32.mrf.mxu0
      %v566 = vadd.f32 %v319, %v565
      %v567 = vpop.f32.mrf.mxu0
      %568 = vmatprep.mubr.bf16.mxu0 0
      %569 = vmatmul.mubr.bf16.gmra.mxu0 %v439
      %v570 = vpop.f32.mrf.mxu0
      %v571 = vadd.f32 %v319, %v570
      %v572 = vpop.f32.mrf.mxu0
      %v573 = vpop.f32.mrf.mxu0
      %v574 = vadd.f32 %v319, %v573
      %v575 = vpop.f32.mrf.mxu0
      %576 = vmatprep.mubr.bf16.mxu0 0
      %577 = vmatmul.mubr.bf16.gmra.mxu0 %v442
      %v578 = vpop.f32.mrf.mxu0
      %v579 = vadd.f32 %v319, %v578
      %v580 = vpop.f32.mrf.mxu0
      %v581 = vpop.f32.mrf.mxu0
      %v582 = vadd.f32 %v319, %v581
      %v583 = vpop.f32.mrf.mxu0
      %584 = vmatprep.mubr.bf16.mxu0 0
      %585 = vmatmul.mubr.bf16.gmra.mxu0 %v445
      %v586 = vpop.f32.mrf.mxu0
      %v587 = vadd.f32 %v319, %v586
      %v588 = vpop.f32.mrf.mxu0
      %v589 = vpop.f32.mrf.mxu0
      %v590 = vadd.f32 %v319, %v589
      %v591 = vpop.f32.mrf.mxu0
      %592 = vmatprep.mubr.bf16.mxu0 0
      %593 = vmatmul.mubr.bf16.gmra.mxu0 %v448
      %v594 = vpop.f32.mrf.mxu0
      %v595 = vadd.f32 %v319, %v594
      %v596 = vpop.f32.mrf.mxu0
      %v597 = vpop.f32.mrf.mxu0
      %v598 = vadd.f32 %v319, %v597
      %v599 = vpop.f32.mrf.mxu0
      %600 = vmatprep.mubr.bf16.mxu0 0
      %601 = vmatmul.mubr.bf16.gmra.mxu0 %v451
      %v602 = vpop.f32.mrf.mxu0
      %v603 = vadd.f32 %v319, %v602
      %v604 = vpop.f32.mrf.mxu0
      %v605 = vpop.f32.mrf.mxu0
      %v606 = vadd.f32 %v319, %v605
      %v607 = vpop.f32.mrf.mxu0
      %608 = vmatprep.mubr.bf16.mxu0 0
      %609 = vmatmul.mubr.bf16.gmra.mxu0 %v454
      %v610 = vpop.f32.mrf.mxu0
      %v611 = vadd.f32 %v319, %v610
      %v612 = vpop.f32.mrf.mxu0
      %v613 = vpop.f32.mrf.mxu0
      %v614 = vadd.f32 %v319, %v613
      %v615 = vpop.f32.mrf.mxu0
      %616 = vdwg.mxu0
      %v617 = vmax.f32 %v491, 0.0
      %v618 = vmax.f32 %v494, 0.0
      %v619 = vmax.f32 %v499, 0.0
      %v620 = vmax.f32 %v502, 0.0
      %v621 = vmax.f32 %v507, 0.0
      %v622 = vmax.f32 %v510, 0.0
      %v623 = vmax.f32 %v515, 0.0
      %v624 = vmax.f32 %v518, 0.0
      %v625 = vmax.f32 %v523, 0.0
      %v626 = vmax.f32 %v526, 0.0
      %v627 = vmax.f32 %v531, 0.0
      %v628 = vmax.f32 %v534, 0.0
      %v629 = vmax.f32 %v539, 0.0
      %v630 = vmax.f32 %v542, 0.0
      %v631 = vmax.f32 %v547, 0.0
      %v632 = vmax.f32 %v550, 0.0
      %v633 = vmax.f32 %v555, 0.0
      %v634 = vmax.f32 %v558, 0.0
      %v635 = vmax.f32 %v563, 0.0
      %v636 = vmax.f32 %v566, 0.0
      %v637 = vmax.f32 %v571, 0.0
      %v638 = vmax.f32 %v574, 0.0
      %v639 = vmax.f32 %v579, 0.0
      %v640 = vmax.f32 %v582, 0.0
      %v641 = vmax.f32 %v587, 0.0
      %v642 = vmax.f32 %v590, 0.0
      %v643 = vmax.f32 %v595, 0.0
      %v644 = vmax.f32 %v598, 0.0
      %v645 = vmax.f32 %v603, 0.0
      %v646 = vmax.f32 %v606, 0.0
      %v647 = vmax.f32 %v611, 0.0
      %v648 = vmax.f32 %v614, 0.0
      %v649 = vpack.c.bf16 %v618, %v617
      %v650 = vpack.c.bf16 %v620, %v619
      %v651 = vpack.c.bf16 %v622, %v621
      %v652 = vpack.c.bf16 %v624, %v623
      %v653 = vpack.c.bf16 %v626, %v625
      %v654 = vpack.c.bf16 %v628, %v627
      %v655 = vpack.c.bf16 %v630, %v629
      %v656 = vpack.c.bf16 %v632, %v631
      %v657 = vpack.c.bf16 %v634, %v633
      %v658 = vpack.c.bf16 %v636, %v635
      %v659 = vpack.c.bf16 %v638, %v637
      %v660 = vpack.c.bf16 %v640, %v639
      %v661 = vpack.c.bf16 %v642, %v641
      %v662 = vpack.c.bf16 %v644, %v643
      %v663 = vpack.c.bf16 %v646, %v645
      %v664 = vpack.c.bf16 %v648, %v647
      %vm665 = vcmask 289792
      %666 = vst.msk [vmem:[#allocation2] sm:$0xf] %vm665, 0
      %667 = vst.msk [vmem:[#allocation2 + $0x4] sm:$0xf] %vm665, 0
      %s668 = scalar_lea.vmem [#allocation2], 120
      %669 = vst.msk [vmem:[%s668] sm:$0xf] %vm665, 0
      %670 = vst.msk [vmem:[%s668 + $0x4] sm:$0xf] %vm665, 0
      %vm671 = vcmask 286720
      %vm672 = vsmask.f32 256
      %vm673 = vmand %vm671, %vm672
      %v674 = vld [vmem:[#allocation2] sm:$0x1]
      %v675 = vsel %vm673, 0, %v674
      %676 = vst [vmem:[#allocation2] sm:$0x1] %v675
      %v677 = vld [vmem:[#allocation2 + $0x8] sm:$0x1]
      %v678 = vsel %vm673, 0, %v677
      %679 = vst [vmem:[#allocation2 + $0x8] sm:$0x1] %v678
      %v680 = vld [vmem:[#allocation2 + $0x10] sm:$0x1]
      %v681 = vsel %vm673, 0, %v680
      %682 = vst [vmem:[#allocation2 + $0x10] sm:$0x1] %v681
      %v683 = vld [vmem:[#allocation2 + $0x18] sm:$0x1]
      %v684 = vsel %vm673, 0, %v683
      %685 = vst [vmem:[#allocation2 + $0x18] sm:$0x1] %v684
      %v686 = vld [vmem:[#allocation2 + $0x20] sm:$0x1]
      %v687 = vsel %vm673, 0, %v686
      %688 = vst [vmem:[#allocation2 + $0x20] sm:$0x1] %v687
      %v689 = vld [vmem:[#allocation2 + $0x28] sm:$0x1]
      %v690 = vsel %vm673, 0, %v689
      %691 = vst [vmem:[#allocation2 + $0x28] sm:$0x1] %v690
      %v692 = vld [vmem:[#allocation2 + $0x30] sm:$0x1]
      %v693 = vsel %vm673, 0, %v692
      %694 = vst [vmem:[#allocation2 + $0x30] sm:$0x1] %v693
      %v695 = vld [vmem:[#allocation2 + $0x38] sm:$0x1]
      %v696 = vsel %vm673, 0, %v695
      %697 = vst [vmem:[#allocation2 + $0x38] sm:$0x1] %v696
      %v698 = vld [vmem:[#allocation2 + $0x40] sm:$0x1]
      %v699 = vsel %vm673, 0, %v698
      %700 = vst [vmem:[#allocation2 + $0x40] sm:$0x1] %v699
      %v701 = vld [vmem:[#allocation2 + $0x48] sm:$0x1]
      %v702 = vsel %vm673, 0, %v701
      %703 = vst [vmem:[#allocation2 + $0x48] sm:$0x1] %v702
      %v704 = vld [vmem:[#allocation2 + $0x50] sm:$0x1]
      %v705 = vsel %vm673, 0, %v704
      %706 = vst [vmem:[#allocation2 + $0x50] sm:$0x1] %v705
      %v707 = vld [vmem:[#allocation2 + $0x58] sm:$0x1]
      %v708 = vsel %vm673, 0, %v707
      %709 = vst [vmem:[#allocation2 + $0x58] sm:$0x1] %v708
      %v710 = vld [vmem:[#allocation2 + $0x60] sm:$0x1]
      %v711 = vsel %vm673, 0, %v710
      %712 = vst [vmem:[#allocation2 + $0x60] sm:$0x1] %v711
      %v713 = vld [vmem:[#allocation2 + $0x68] sm:$0x1]
      %v714 = vsel %vm673, 0, %v713
      %715 = vst [vmem:[#allocation2 + $0x68] sm:$0x1] %v714
      %v716 = vld [vmem:[#allocation2 + $0x70] sm:$0x1]
      %v717 = vsel %vm673, 0, %v716
      %718 = vst [vmem:[#allocation2 + $0x70] sm:$0x1] %v717
      %v719 = vld [vmem:[#allocation2 + $0x78] sm:$0x1]
      %v720 = vsel %vm673, 0, %v719
      %721 = vst [vmem:[#allocation2 + $0x78] sm:$0x1] %v720
      %vm722 = vcmask 289795
      %vm723 = vsmask.f32 7950
      %vm724 = vmand %vm722, %vm723
      %v725 = vld [vmem:[#allocation2 + $0x4] sm:$0x8]
      %v726 = vsel %vm724, 0, %v725
      %727 = vst [vmem:[#allocation2 + $0x4] sm:$0x8] %v726
      %v728 = vld [vmem:[#allocation2 + $0xc] sm:$0x8]
      %v729 = vsel %vm724, 0, %v728
      %730 = vst [vmem:[#allocation2 + $0xc] sm:$0x8] %v729
      %v731 = vld [vmem:[#allocation2 + $0x14] sm:$0x8]
      %v732 = vsel %vm724, 0, %v731
      %733 = vst [vmem:[#allocation2 + $0x14] sm:$0x8] %v732
      %v734 = vld [vmem:[#allocation2 + $0x1c] sm:$0x8]
      %v735 = vsel %vm724, 0, %v734
      %736 = vst [vmem:[#allocation2 + $0x1c] sm:$0x8] %v735
      %v737 = vld [vmem:[#allocation2 + $0x24] sm:$0x8]
      %v738 = vsel %vm724, 0, %v737
      %739 = vst [vmem:[#allocation2 + $0x24] sm:$0x8] %v738
      %v740 = vld [vmem:[#allocation2 + $0x2c] sm:$0x8]
      %v741 = vsel %vm724, 0, %v740
      %742 = vst [vmem:[#allocation2 + $0x2c] sm:$0x8] %v741
      %v743 = vld [vmem:[#allocation2 + $0x34] sm:$0x8]
      %v744 = vsel %vm724, 0, %v743
      %745 = vst [vmem:[#allocation2 + $0x34] sm:$0x8] %v744
      %v746 = vld [vmem:[#allocation2 + $0x3c] sm:$0x8]
      %v747 = vsel %vm724, 0, %v746
      %748 = vst [vmem:[#allocation2 + $0x3c] sm:$0x8] %v747
      %v749 = vld [vmem:[#allocation2 + $0x44] sm:$0x8]
      %v750 = vsel %vm724, 0, %v749
      %751 = vst [vmem:[#allocation2 + $0x44] sm:$0x8] %v750
      %v752 = vld [vmem:[#allocation2 + $0x4c] sm:$0x8]
      %v753 = vsel %vm724, 0, %v752
      %754 = vst [vmem:[#allocation2 + $0x4c] sm:$0x8] %v753
      %v755 = vld [vmem:[#allocation2 + $0x54] sm:$0x8]
      %v756 = vsel %vm724, 0, %v755
      %757 = vst [vmem:[#allocation2 + $0x54] sm:$0x8] %v756
      %v758 = vld [vmem:[#allocation2 + $0x5c] sm:$0x8]
      %v759 = vsel %vm724, 0, %v758
      %760 = vst [vmem:[#allocation2 + $0x5c] sm:$0x8] %v759
      %v761 = vld [vmem:[#allocation2 + $0x64] sm:$0x8]
      %v762 = vsel %vm724, 0, %v761
      %763 = vst [vmem:[#allocation2 + $0x64] sm:$0x8] %v762
      %v764 = vld [vmem:[#allocation2 + $0x6c] sm:$0x8]
      %v765 = vsel %vm724, 0, %v764
      %766 = vst [vmem:[#allocation2 + $0x6c] sm:$0x8] %v765
      %v767 = vld [vmem:[#allocation2 + $0x74] sm:$0x8]
      %v768 = vsel %vm724, 0, %v767
      %769 = vst [vmem:[#allocation2 + $0x74] sm:$0x8] %v768
      %v770 = vld [vmem:[#allocation2 + $0x7c] sm:$0x8]
      %v771 = vsel %vm724, 0, %v770
      %772 = vst [vmem:[#allocation2 + $0x7c] sm:$0x8] %v771
      %v788 = vunpack.c.l.b16 %v649
      %v789 = vunpack.c.h.b16 %v649
      %v790 = vunpack.c.l.b16 %v650
      %v791 = vunpack.c.h.b16 %v650
      %v792 = vunpack.c.l.b16 %v651
      %v793 = vunpack.c.h.b16 %v651
      %v794 = vunpack.c.l.b16 %v652
      %v795 = vunpack.c.h.b16 %v652
      %v796 = vunpack.c.l.b16 %v653
      %v797 = vunpack.c.h.b16 %v653
      %v798 = vunpack.c.l.b16 %v654
      %v799 = vunpack.c.h.b16 %v654
      %v800 = vunpack.c.l.b16 %v655
      %v801 = vunpack.c.h.b16 %v655
      %v802 = vunpack.c.l.b16 %v656
      %v803 = vunpack.c.h.b16 %v656
      %v804 = vunpack.c.l.b16 %v657
      %v805 = vunpack.c.h.b16 %v657
      %v806 = vunpack.c.l.b16 %v658
      %v807 = vunpack.c.h.b16 %v658
      %v808 = vunpack.c.l.b16 %v659
      %v809 = vunpack.c.h.b16 %v659
      %v810 = vunpack.c.l.b16 %v660
      %v811 = vunpack.c.h.b16 %v660
      %v812 = vunpack.c.l.b16 %v661
      %v813 = vunpack.c.h.b16 %v661
      %v814 = vunpack.c.l.b16 %v662
      %v815 = vunpack.c.h.b16 %v662
      %v816 = vunpack.c.l.b16 %v663
      %v817 = vunpack.c.h.b16 %v663
      %v818 = vpack.c.b16 %v788, %v788
      %v819 = vpack.c.b16 %v789, %v789
      %v820 = vpack.c.b16 %v790, %v790
      %v821 = vpack.c.b16 %v791, %v791
      %v822 = vpack.c.b16 %v792, %v792
      %v823 = vpack.c.b16 %v793, %v793
      %v824 = vpack.c.b16 %v794, %v794
      %v825 = vpack.c.b16 %v795, %v795
      %v826 = vpack.c.b16 %v796, %v796
      %v827 = vpack.c.b16 %v797, %v797
      %v828 = vpack.c.b16 %v798, %v798
      %v829 = vpack.c.b16 %v799, %v799
      %v830 = vpack.c.b16 %v800, %v800
      %v831 = vpack.c.b16 %v801, %v801
      %v832 = vpack.c.b16 %v802, %v802
      %v833 = vpack.c.b16 %v803, %v803
      %v834 = vpack.c.b16 %v804, %v804
      %v835 = vpack.c.b16 %v805, %v805
      %v836 = vpack.c.b16 %v806, %v806
      %v837 = vpack.c.b16 %v807, %v807
      %v838 = vpack.c.b16 %v808, %v808
      %v839 = vpack.c.b16 %v809, %v809
      %v840 = vpack.c.b16 %v810, %v810
      %v841 = vpack.c.b16 %v811, %v811
      %v842 = vpack.c.b16 %v812, %v812
      %v843 = vpack.c.b16 %v813, %v813
      %v844 = vpack.c.b16 %v814, %v814
      %v845 = vpack.c.b16 %v815, %v815
      %v846 = vpack.c.b16 %v816, %v816
      %v847 = vpack.c.b16 %v817, %v817
      %vm848 = vsmask.f32 4368
      %vm849 = vmor %vm672, %vm848
      %v851 = vshrl.u32 %v818, 16
      %v853 = vrot.slane %v851, 7
      %v854 = vshll.u32 %v818, 16
      %v856 = vor.u32 %v853, %v854
      %v857 = vrot.slane %v853, 4
      %v859 = vshrl.u32 %v819, 16
      %v861 = vrot.slane %v859, 7
      %v862 = vshll.u32 %v819, 16
      %v864 = vor.u32 %v861, %v862
      %v865 = vsel %vm849, %v857, %v864
      %v867 = vshrl.u32 %v820, 16
      %v869 = vrot.slane %v867, 7
      %v870 = vshll.u32 %v820, 16
      %v872 = vor.u32 %v869, %v870
      %v873 = vrot.slane %v869, 4
      %v875 = vshrl.u32 %v821, 16
      %v877 = vrot.slane %v875, 7
      %v878 = vshll.u32 %v821, 16
      %v880 = vor.u32 %v877, %v878
      %v881 = vsel %vm849, %v873, %v880
      %v883 = vshrl.u32 %v822, 16
      %v885 = vrot.slane %v883, 7
      %v886 = vshll.u32 %v822, 16
      %v888 = vor.u32 %v885, %v886
      %v889 = vrot.slane %v885, 4
      %v891 = vshrl.u32 %v823, 16
      %v893 = vrot.slane %v891, 7
      %v894 = vshll.u32 %v823, 16
      %v896 = vor.u32 %v893, %v894
      %v897 = vsel %vm849, %v889, %v896
      %v899 = vshrl.u32 %v824, 16
      %v901 = vrot.slane %v899, 7
      %v902 = vshll.u32 %v824, 16
      %v904 = vor.u32 %v901, %v902
      %v905 = vrot.slane %v901, 4
      %v907 = vshrl.u32 %v825, 16
      %v909 = vrot.slane %v907, 7
      %v910 = vshll.u32 %v825, 16
      %v912 = vor.u32 %v909, %v910
      %v913 = vsel %vm849, %v905, %v912
      %v915 = vshrl.u32 %v826, 16
      %v917 = vrot.slane %v915, 7
      %v918 = vshll.u32 %v826, 16
      %v920 = vor.u32 %v917, %v918
      %v921 = vrot.slane %v917, 4
      %v923 = vshrl.u32 %v827, 16
      %v925 = vrot.slane %v923, 7
      %v926 = vshll.u32 %v827, 16
      %v928 = vor.u32 %v925, %v926
      %v929 = vsel %vm849, %v921, %v928
      %v931 = vshrl.u32 %v828, 16
      %v933 = vrot.slane %v931, 7
      %v934 = vshll.u32 %v828, 16
      %v936 = vor.u32 %v933, %v934
      %v937 = vrot.slane %v933, 4
      %v939 = vshrl.u32 %v829, 16
      %v941 = vrot.slane %v939, 7
      %v942 = vshll.u32 %v829, 16
      %v944 = vor.u32 %v941, %v942
      %v945 = vsel %vm849, %v937, %v944
      %v947 = vshrl.u32 %v830, 16
      %v949 = vrot.slane %v947, 7
      %v950 = vshll.u32 %v830, 16
      %v952 = vor.u32 %v949, %v950
      %v953 = vrot.slane %v949, 4
      %v955 = vshrl.u32 %v831, 16
      %v957 = vrot.slane %v955, 7
      %v958 = vshll.u32 %v831, 16
      %v960 = vor.u32 %v957, %v958
      %v961 = vsel %vm849, %v953, %v960
      %v963 = vshrl.u32 %v832, 16
      %v965 = vrot.slane %v963, 7
      %v966 = vshll.u32 %v832, 16
      %v968 = vor.u32 %v965, %v966
      %v969 = vrot.slane %v965, 4
      %v971 = vshrl.u32 %v833, 16
      %v973 = vrot.slane %v971, 7
      %v974 = vshll.u32 %v833, 16
      %v976 = vor.u32 %v973, %v974
      %v977 = vsel %vm849, %v969, %v976
      %v979 = vshrl.u32 %v834, 16
      %v981 = vrot.slane %v979, 7
      %v982 = vshll.u32 %v834, 16
      %v984 = vor.u32 %v981, %v982
      %v985 = vrot.slane %v981, 4
      %v987 = vshrl.u32 %v835, 16
      %v989 = vrot.slane %v987, 7
      %v990 = vshll.u32 %v835, 16
      %v992 = vor.u32 %v989, %v990
      %v993 = vsel %vm849, %v985, %v992
      %v995 = vshrl.u32 %v836, 16
      %v997 = vrot.slane %v995, 7
      %v998 = vshll.u32 %v836, 16
      %v1000 = vor.u32 %v997, %v998
      %v1001 = vrot.slane %v997, 4
      %v1003 = vshrl.u32 %v837, 16
      %v1005 = vrot.slane %v1003, 7
      %v1006 = vshll.u32 %v837, 16
      %v1008 = vor.u32 %v1005, %v1006
      %v1009 = vsel %vm849, %v1001, %v1008
      %v1011 = vshrl.u32 %v838, 16
      %v1013 = vrot.slane %v1011, 7
      %v1014 = vshll.u32 %v838, 16
      %v1016 = vor.u32 %v1013, %v1014
      %v1017 = vrot.slane %v1013, 4
      %v1019 = vshrl.u32 %v839, 16
      %v1021 = vrot.slane %v1019, 7
      %v1022 = vshll.u32 %v839, 16
      %v1024 = vor.u32 %v1021, %v1022
      %v1025 = vsel %vm849, %v1017, %v1024
      %v1027 = vshrl.u32 %v840, 16
      %v1029 = vrot.slane %v1027, 7
      %v1030 = vshll.u32 %v840, 16
      %v1032 = vor.u32 %v1029, %v1030
      %v1033 = vrot.slane %v1029, 4
      %v1035 = vshrl.u32 %v841, 16
      %v1037 = vrot.slane %v1035, 7
      %v1038 = vshll.u32 %v841, 16
      %v1040 = vor.u32 %v1037, %v1038
      %v1041 = vsel %vm849, %v1033, %v1040
      %v1043 = vshrl.u32 %v842, 16
      %v1045 = vrot.slane %v1043, 7
      %v1046 = vshll.u32 %v842, 16
      %v1048 = vor.u32 %v1045, %v1046
      %v1049 = vrot.slane %v1045, 4
      %v1051 = vshrl.u32 %v843, 16
      %v1053 = vrot.slane %v1051, 7
      %v1054 = vshll.u32 %v843, 16
      %v1056 = vor.u32 %v1053, %v1054
      %v1057 = vsel %vm849, %v1049, %v1056
      %v1059 = vshrl.u32 %v844, 16
      %v1061 = vrot.slane %v1059, 7
      %v1062 = vshll.u32 %v844, 16
      %v1064 = vor.u32 %v1061, %v1062
      %v1065 = vrot.slane %v1061, 4
      %v1067 = vshrl.u32 %v845, 16
      %v1069 = vrot.slane %v1067, 7
      %v1070 = vshll.u32 %v845, 16
      %v1072 = vor.u32 %v1069, %v1070
      %v1073 = vsel %vm849, %v1065, %v1072
      %v1075 = vshrl.u32 %v846, 16
      %v1077 = vrot.slane %v1075, 7
      %v1078 = vshll.u32 %v846, 16
      %v1080 = vor.u32 %v1077, %v1078
      %v1081 = vrot.slane %v1077, 4
      %v1083 = vshrl.u32 %v847, 16
      %v1085 = vrot.slane %v1083, 7
      %v1086 = vshll.u32 %v847, 16
      %v1088 = vor.u32 %v1085, %v1086
      %v1089 = vsel %vm849, %v1081, %v1088
      %s1120 = scalar_lea.vmem [#allocation2], 8
      %vm1121 = vcmask 27648
      %vm1122 = vsmask.f32 7938
      %vm1123 = vmand %vm1121, %vm1122
      %v1124 = vld [vmem:[%s1120] sm:$0xf]
      %v1125 = vsel %vm1123, %v856, %v1124
      %1126 = vst [vmem:[%s1120] sm:$0xf] %v1125
      %vm1127 = vcmask 27648
      %1128 = vst.msk [vmem:[%s1120 + $0x4] sm:$0xf] %vm1127, %v865
      %v1129 = vld [vmem:[%s1120 + $0x8] sm:$0xf]
      %v1130 = vsel %vm1123, %v872, %v1129
      %1131 = vst [vmem:[%s1120 + $0x8] sm:$0xf] %v1130
      %1132 = vst.msk [vmem:[%s1120 + $0xc] sm:$0xf] %vm1127, %v881
      %v1133 = vld [vmem:[%s1120 + $0x10] sm:$0xf]
      %v1134 = vsel %vm1123, %v888, %v1133
      %1135 = vst [vmem:[%s1120 + $0x10] sm:$0xf] %v1134
      %1136 = vst.msk [vmem:[%s1120 + $0x14] sm:$0xf] %vm1127, %v897
      %v1137 = vld [vmem:[%s1120 + $0x18] sm:$0xf]
      %v1138 = vsel %vm1123, %v904, %v1137
      %1139 = vst [vmem:[%s1120 + $0x18] sm:$0xf] %v1138
      %1140 = vst.msk [vmem:[%s1120 + $0x1c] sm:$0xf] %vm1127, %v913
      %v1141 = vld [vmem:[%s1120 + $0x20] sm:$0xf]
      %v1142 = vsel %vm1123, %v920, %v1141
      %1143 = vst [vmem:[%s1120 + $0x20] sm:$0xf] %v1142
      %1144 = vst.msk [vmem:[%s1120 + $0x24] sm:$0xf] %vm1127, %v929
      %v1145 = vld [vmem:[%s1120 + $0x28] sm:$0xf]
      %v1146 = vsel %vm1123, %v936, %v1145
      %1147 = vst [vmem:[%s1120 + $0x28] sm:$0xf] %v1146
      %1148 = vst.msk [vmem:[%s1120 + $0x2c] sm:$0xf] %vm1127, %v945
      %v1149 = vld [vmem:[%s1120 + $0x30] sm:$0xf]
      %v1150 = vsel %vm1123, %v952, %v1149
      %1151 = vst [vmem:[%s1120 + $0x30] sm:$0xf] %v1150
      %1152 = vst.msk [vmem:[%s1120 + $0x34] sm:$0xf] %vm1127, %v961
      %v1153 = vld [vmem:[%s1120 + $0x38] sm:$0xf]
      %v1154 = vsel %vm1123, %v968, %v1153
      %1155 = vst [vmem:[%s1120 + $0x38] sm:$0xf] %v1154
      %1156 = vst.msk [vmem:[%s1120 + $0x3c] sm:$0xf] %vm1127, %v977
      %v1157 = vld [vmem:[%s1120 + $0x40] sm:$0xf]
      %v1158 = vsel %vm1123, %v984, %v1157
      %1159 = vst [vmem:[%s1120 + $0x40] sm:$0xf] %v1158
      %1160 = vst.msk [vmem:[%s1120 + $0x44] sm:$0xf] %vm1127, %v993
      %v1161 = vld [vmem:[%s1120 + $0x48] sm:$0xf]
      %v1162 = vsel %vm1123, %v1000, %v1161
      %1163 = vst [vmem:[%s1120 + $0x48] sm:$0xf] %v1162
      %1164 = vst.msk [vmem:[%s1120 + $0x4c] sm:$0xf] %vm1127, %v1009
      %v1165 = vld [vmem:[%s1120 + $0x50] sm:$0xf]
      %v1166 = vsel %vm1123, %v1016, %v1165
      %1167 = vst [vmem:[%s1120 + $0x50] sm:$0xf] %v1166
      %1168 = vst.msk [vmem:[%s1120 + $0x54] sm:$0xf] %vm1127, %v1025
      %v1169 = vld [vmem:[%s1120 + $0x58] sm:$0xf]
      %v1170 = vsel %vm1123, %v1032, %v1169
      %1171 = vst [vmem:[%s1120 + $0x58] sm:$0xf] %v1170
      %1172 = vst.msk [vmem:[%s1120 + $0x5c] sm:$0xf] %vm1127, %v1041
      %v1173 = vld [vmem:[%s1120 + $0x60] sm:$0xf]
      %v1174 = vsel %vm1123, %v1048, %v1173
      %1175 = vst [vmem:[%s1120 + $0x60] sm:$0xf] %v1174
      %1176 = vst.msk [vmem:[%s1120 + $0x64] sm:$0xf] %vm1127, %v1057
      %v1177 = vld [vmem:[%s1120 + $0x68] sm:$0xf]
      %v1178 = vsel %vm1123, %v1064, %v1177
      %1179 = vst [vmem:[%s1120 + $0x68] sm:$0xf] %v1178
      %1180 = vst.msk [vmem:[%s1120 + $0x6c] sm:$0xf] %vm1127, %v1073
      %v1181 = vld [vmem:[%s1120 + $0x70] sm:$0xf]
      %v1182 = vsel %vm1123, %v1080, %v1181
      %1183 = vst [vmem:[%s1120 + $0x70] sm:$0xf] %v1182
      %1184 = vst.msk [vmem:[%s1120 + $0x74] sm:$0xf] %vm1127, %v1089
      %1185 = vrot.lane.b32.xlu0 %v818, 4
      %v1186 = vpop.permute.xlu0 %1185
      %1187 = vrot.lane.b32.xlu0 %v819, 4
      %v1188 = vpop.permute.xlu0 %1187
      %1189 = vrot.lane.b32.xlu0 %v820, 4
      %v1190 = vpop.permute.xlu0 %1189
      %1191 = vrot.lane.b32.xlu0 %v821, 4
      %v1192 = vpop.permute.xlu0 %1191
      %1193 = vrot.lane.b32.xlu0 %v822, 4
      %v1194 = vpop.permute.xlu0 %1193
      %1195 = vrot.lane.b32.xlu0 %v823, 4
      %v1196 = vpop.permute.xlu0 %1195
      %1197 = vrot.lane.b32.xlu0 %v824, 4
      %v1198 = vpop.permute.xlu0 %1197
      %1199 = vrot.lane.b32.xlu0 %v825, 4
      %v1200 = vpop.permute.xlu0 %1199
      %1201 = vrot.lane.b32.xlu0 %v826, 4
      %v1202 = vpop.permute.xlu0 %1201
      %1203 = vrot.lane.b32.xlu0 %v827, 4
      %v1204 = vpop.permute.xlu0 %1203
      %1205 = vrot.lane.b32.xlu0 %v828, 4
      %v1206 = vpop.permute.xlu0 %1205
      %1207 = vrot.lane.b32.xlu0 %v829, 4
      %v1208 = vpop.permute.xlu0 %1207
      %1209 = vrot.lane.b32.xlu0 %v830, 4
      %v1210 = vpop.permute.xlu0 %1209
      %1211 = vrot.lane.b32.xlu0 %v831, 4
      %v1212 = vpop.permute.xlu0 %1211
      %1213 = vrot.lane.b32.xlu0 %v832, 4
      %v1214 = vpop.permute.xlu0 %1213
      %1215 = vrot.lane.b32.xlu0 %v833, 4
      %v1216 = vpop.permute.xlu0 %1215
      %1217 = vrot.lane.b32.xlu0 %v834, 4
      %v1218 = vpop.permute.xlu0 %1217
      %1219 = vrot.lane.b32.xlu0 %v835, 4
      %v1220 = vpop.permute.xlu0 %1219
      %1221 = vrot.lane.b32.xlu0 %v836, 4
      %v1222 = vpop.permute.xlu0 %1221
      %1223 = vrot.lane.b32.xlu0 %v837, 4
      %v1224 = vpop.permute.xlu0 %1223
      %1225 = vrot.lane.b32.xlu0 %v838, 4
      %v1226 = vpop.permute.xlu0 %1225
      %1227 = vrot.lane.b32.xlu0 %v839, 4
      %v1228 = vpop.permute.xlu0 %1227
      %1229 = vrot.lane.b32.xlu0 %v840, 4
      %v1230 = vpop.permute.xlu0 %1229
      %1231 = vrot.lane.b32.xlu0 %v841, 4
      %v1232 = vpop.permute.xlu0 %1231
      %1233 = vrot.lane.b32.xlu0 %v842, 4
      %v1234 = vpop.permute.xlu0 %1233
      %1235 = vrot.lane.b32.xlu0 %v843, 4
      %v1236 = vpop.permute.xlu0 %1235
      %1237 = vrot.lane.b32.xlu0 %v844, 4
      %v1238 = vpop.permute.xlu0 %1237
      %1239 = vrot.lane.b32.xlu0 %v845, 4
      %v1240 = vpop.permute.xlu0 %1239
      %1241 = vrot.lane.b32.xlu0 %v846, 4
      %v1242 = vpop.permute.xlu0 %1241
      %1243 = vrot.lane.b32.xlu0 %v847, 4
      %v1244 = vpop.permute.xlu0 %1243
      %vm1275 = vcmask 60448
      %1276 = vst.msk [vmem:[%s1120] sm:$0xf] %vm1275, %v1186
      %1277 = vst.msk [vmem:[%s1120 + $0x4] sm:$0xf] %vm1275, %v1188
      %1278 = vst.msk [vmem:[%s1120 + $0x8] sm:$0xf] %vm1275, %v1190
      %1279 = vst.msk [vmem:[%s1120 + $0xc] sm:$0xf] %vm1275, %v1192
      %1280 = vst.msk [vmem:[%s1120 + $0x10] sm:$0xf] %vm1275, %v1194
      %1281 = vst.msk [vmem:[%s1120 + $0x14] sm:$0xf] %vm1275, %v1196
      %1282 = vst.msk [vmem:[%s1120 + $0x18] sm:$0xf] %vm1275, %v1198
      %1283 = vst.msk [vmem:[%s1120 + $0x1c] sm:$0xf] %vm1275, %v1200
      %1284 = vst.msk [vmem:[%s1120 + $0x20] sm:$0xf] %vm1275, %v1202
      %1285 = vst.msk [vmem:[%s1120 + $0x24] sm:$0xf] %vm1275, %v1204
      %1286 = vst.msk [vmem:[%s1120 + $0x28] sm:$0xf] %vm1275, %v1206
      %1287 = vst.msk [vmem:[%s1120 + $0x2c] sm:$0xf] %vm1275, %v1208
      %1288 = vst.msk [vmem:[%s1120 + $0x30] sm:$0xf] %vm1275, %v1210
      %1289 = vst.msk [vmem:[%s1120 + $0x34] sm:$0xf] %vm1275, %v1212
      %1290 = vst.msk [vmem:[%s1120 + $0x38] sm:$0xf] %vm1275, %v1214
      %1291 = vst.msk [vmem:[%s1120 + $0x3c] sm:$0xf] %vm1275, %v1216
      %1292 = vst.msk [vmem:[%s1120 + $0x40] sm:$0xf] %vm1275, %v1218
      %1293 = vst.msk [vmem:[%s1120 + $0x44] sm:$0xf] %vm1275, %v1220
      %1294 = vst.msk [vmem:[%s1120 + $0x48] sm:$0xf] %vm1275, %v1222
      %1295 = vst.msk [vmem:[%s1120 + $0x4c] sm:$0xf] %vm1275, %v1224
      %1296 = vst.msk [vmem:[%s1120 + $0x50] sm:$0xf] %vm1275, %v1226
      %1297 = vst.msk [vmem:[%s1120 + $0x54] sm:$0xf] %vm1275, %v1228
      %1298 = vst.msk [vmem:[%s1120 + $0x58] sm:$0xf] %vm1275, %v1230
      %1299 = vst.msk [vmem:[%s1120 + $0x5c] sm:$0xf] %vm1275, %v1232
      %1300 = vst.msk [vmem:[%s1120 + $0x60] sm:$0xf] %vm1275, %v1234
      %1301 = vst.msk [vmem:[%s1120 + $0x64] sm:$0xf] %vm1275, %v1236
      %1302 = vst.msk [vmem:[%s1120 + $0x68] sm:$0xf] %vm1275, %v1238
      %1303 = vst.msk [vmem:[%s1120 + $0x6c] sm:$0xf] %vm1275, %v1240
      %1304 = vst.msk [vmem:[%s1120 + $0x70] sm:$0xf] %vm1275, %v1242
      %1305 = vst.msk [vmem:[%s1120 + $0x74] sm:$0xf] %vm1275, %v1244
      %vm1306 = vsmask.f32 3328
      %vm1307 = vsmask.f32 7440
      %vm1308 = vmor %vm1306, %vm1307
      %v1309 = vrot.slane %v851, 4
      %v1310 = vrot.slane %v854, 5
      %v1311 = vor.u32 %v1309, %v1310
      %v1312 = vrot.slane %v1311, 4
      %v1313 = vrot.slane %v862, 5
      %v1314 = vsel %vm1308, %v1312, %v1313
      %v1315 = vrot.slane %v859, 4
      %v1316 = vor.u32 %v1315, %v1313
      %v1317 = vrot.slane %v1316, 4
      %v1318 = vrot.slane %v867, 4
      %v1319 = vrot.slane %v870, 5
      %v1320 = vor.u32 %v1318, %v1319
      %v1321 = vrot.slane %v1320, 4
      %v1322 = vrot.slane %v878, 5
      %v1323 = vsel %vm1308, %v1321, %v1322
      %v1324 = vrot.slane %v875, 4
      %v1325 = vor.u32 %v1324, %v1322
      %v1326 = vrot.slane %v1325, 4
      %v1327 = vrot.slane %v883, 4
      %v1328 = vrot.slane %v886, 5
      %v1329 = vor.u32 %v1327, %v1328
      %v1330 = vrot.slane %v1329, 4
      %v1331 = vrot.slane %v894, 5
      %v1332 = vsel %vm1308, %v1330, %v1331
      %v1333 = vrot.slane %v891, 4
      %v1334 = vor.u32 %v1333, %v1331
      %v1335 = vrot.slane %v1334, 4
      %v1336 = vrot.slane %v899, 4
      %v1337 = vrot.slane %v902, 5
      %v1338 = vor.u32 %v1336, %v1337
      %v1339 = vrot.slane %v1338, 4
      %v1340 = vrot.slane %v910, 5
      %v1341 = vsel %vm1308, %v1339, %v1340
      %v1342 = vrot.slane %v907, 4
      %v1343 = vor.u32 %v1342, %v1340
      %v1344 = vrot.slane %v1343, 4
      %v1345 = vrot.slane %v915, 4
      %v1346 = vrot.slane %v918, 5
      %v1347 = vor.u32 %v1345, %v1346
      %v1348 = vrot.slane %v1347, 4
      %v1349 = vrot.slane %v926, 5
      %v1350 = vsel %vm1308, %v1348, %v1349
      %v1351 = vrot.slane %v923, 4
      %v1352 = vor.u32 %v1351, %v1349
      %v1353 = vrot.slane %v1352, 4
      %v1354 = vrot.slane %v931, 4
      %v1355 = vrot.slane %v934, 5
      %v1356 = vor.u32 %v1354, %v1355
      %v1357 = vrot.slane %v1356, 4
      %v1358 = vrot.slane %v942, 5
      %v1359 = vsel %vm1308, %v1357, %v1358
      %v1360 = vrot.slane %v939, 4
      %v1361 = vor.u32 %v1360, %v1358
      %v1362 = vrot.slane %v1361, 4
      %v1363 = vrot.slane %v947, 4
      %v1364 = vrot.slane %v950, 5
      %v1365 = vor.u32 %v1363, %v1364
      %v1366 = vrot.slane %v1365, 4
      %v1367 = vrot.slane %v958, 5
      %v1368 = vsel %vm1308, %v1366, %v1367
      %v1369 = vrot.slane %v955, 4
      %v1370 = vor.u32 %v1369, %v1367
      %v1371 = vrot.slane %v1370, 4
      %v1372 = vrot.slane %v963, 4
      %v1373 = vrot.slane %v966, 5
      %v1374 = vor.u32 %v1372, %v1373
      %v1375 = vrot.slane %v1374, 4
      %v1376 = vrot.slane %v974, 5
      %v1377 = vsel %vm1308, %v1375, %v1376
      %v1378 = vrot.slane %v971, 4
      %v1379 = vor.u32 %v1378, %v1376
      %v1380 = vrot.slane %v1379, 4
      %v1381 = vrot.slane %v979, 4
      %v1382 = vrot.slane %v982, 5
      %v1383 = vor.u32 %v1381, %v1382
      %v1384 = vrot.slane %v1383, 4
      %v1385 = vrot.slane %v990, 5
      %v1386 = vsel %vm1308, %v1384, %v1385
      %v1387 = vrot.slane %v987, 4
      %v1388 = vor.u32 %v1387, %v1385
      %v1389 = vrot.slane %v1388, 4
      %v1390 = vrot.slane %v995, 4
      %v1391 = vrot.slane %v998, 5
      %v1392 = vor.u32 %v1390, %v1391
      %v1393 = vrot.slane %v1392, 4
      %v1394 = vrot.slane %v1006, 5
      %v1395 = vsel %vm1308, %v1393, %v1394
      %v1396 = vrot.slane %v1003, 4
      %v1397 = vor.u32 %v1396, %v1394
      %v1398 = vrot.slane %v1397, 4
      %v1399 = vrot.slane %v1011, 4
      %v1400 = vrot.slane %v1014, 5
      %v1401 = vor.u32 %v1399, %v1400
      %v1402 = vrot.slane %v1401, 4
      %v1403 = vrot.slane %v1022, 5
      %v1404 = vsel %vm1308, %v1402, %v1403
      %v1405 = vrot.slane %v1019, 4
      %v1406 = vor.u32 %v1405, %v1403
      %v1407 = vrot.slane %v1406, 4
      %v1408 = vrot.slane %v1027, 4
      %v1409 = vrot.slane %v1030, 5
      %v1410 = vor.u32 %v1408, %v1409
      %v1411 = vrot.slane %v1410, 4
      %v1412 = vrot.slane %v1038, 5
      %v1413 = vsel %vm1308, %v1411, %v1412
      %v1414 = vrot.slane %v1035, 4
      %v1415 = vor.u32 %v1414, %v1412
      %v1416 = vrot.slane %v1415, 4
      %v1417 = vrot.slane %v1043, 4
      %v1418 = vrot.slane %v1046, 5
      %v1419 = vor.u32 %v1417, %v1418
      %v1420 = vrot.slane %v1419, 4
      %v1421 = vrot.slane %v1054, 5
      %v1422 = vsel %vm1308, %v1420, %v1421
      %v1423 = vrot.slane %v1051, 4
      %v1424 = vor.u32 %v1423, %v1421
      %v1425 = vrot.slane %v1424, 4
      %v1426 = vrot.slane %v1059, 4
      %v1427 = vrot.slane %v1062, 5
      %v1428 = vor.u32 %v1426, %v1427
      %v1429 = vrot.slane %v1428, 4
      %v1430 = vrot.slane %v1070, 5
      %v1431 = vsel %vm1308, %v1429, %v1430
      %v1432 = vrot.slane %v1067, 4
      %v1433 = vor.u32 %v1432, %v1430
      %v1434 = vrot.slane %v1433, 4
      %v1435 = vrot.slane %v1075, 4
      %v1436 = vrot.slane %v1078, 5
      %v1437 = vor.u32 %v1435, %v1436
      %v1438 = vrot.slane %v1437, 4
      %v1439 = vrot.slane %v1086, 5
      %v1440 = vsel %vm1308, %v1438, %v1439
      %v1441 = vrot.slane %v1083, 4
      %v1442 = vor.u32 %v1441, %v1439
      %v1443 = vrot.slane %v1442, 4
      %1444 = vrot.lane.b32.xlu0 %v1314, 8
      %v1445 = vpop.permute.xlu0 %1444
      %1446 = vrot.lane.b32.xlu0 %v1317, 8
      %v1447 = vpop.permute.xlu0 %1446
      %1448 = vrot.lane.b32.xlu0 %v1323, 8
      %v1449 = vpop.permute.xlu0 %1448
      %1450 = vrot.lane.b32.xlu0 %v1326, 8
      %v1451 = vpop.permute.xlu0 %1450
      %1452 = vrot.lane.b32.xlu0 %v1332, 8
      %v1453 = vpop.permute.xlu0 %1452
      %1454 = vrot.lane.b32.xlu0 %v1335, 8
      %v1455 = vpop.permute.xlu0 %1454
      %1456 = vrot.lane.b32.xlu0 %v1341, 8
      %v1457 = vpop.permute.xlu0 %1456
      %1458 = vrot.lane.b32.xlu0 %v1344, 8
      %v1459 = vpop.permute.xlu0 %1458
      %1460 = vrot.lane.b32.xlu0 %v1350, 8
      %v1461 = vpop.permute.xlu0 %1460
      %1462 = vrot.lane.b32.xlu0 %v1353, 8
      %v1463 = vpop.permute.xlu0 %1462
      %1464 = vrot.lane.b32.xlu0 %v1359, 8
      %v1465 = vpop.permute.xlu0 %1464
      %1466 = vrot.lane.b32.xlu0 %v1362, 8
      %v1467 = vpop.permute.xlu0 %1466
      %1468 = vrot.lane.b32.xlu0 %v1368, 8
      %v1469 = vpop.permute.xlu0 %1468
      %1470 = vrot.lane.b32.xlu0 %v1371, 8
      %v1471 = vpop.permute.xlu0 %1470
      %1472 = vrot.lane.b32.xlu0 %v1377, 8
      %v1473 = vpop.permute.xlu0 %1472
      %1474 = vrot.lane.b32.xlu0 %v1380, 8
      %v1475 = vpop.permute.xlu0 %1474
      %1476 = vrot.lane.b32.xlu0 %v1386, 8
      %v1477 = vpop.permute.xlu0 %1476
      %1478 = vrot.lane.b32.xlu0 %v1389, 8
      %v1479 = vpop.permute.xlu0 %1478
      %1480 = vrot.lane.b32.xlu0 %v1395, 8
      %v1481 = vpop.permute.xlu0 %1480
      %1482 = vrot.lane.b32.xlu0 %v1398, 8
      %v1483 = vpop.permute.xlu0 %1482
      %1484 = vrot.lane.b32.xlu0 %v1404, 8
      %v1485 = vpop.permute.xlu0 %1484
      %1486 = vrot.lane.b32.xlu0 %v1407, 8
      %v1487 = vpop.permute.xlu0 %1486
      %1488 = vrot.lane.b32.xlu0 %v1413, 8
      %v1489 = vpop.permute.xlu0 %1488
      %1490 = vrot.lane.b32.xlu0 %v1416, 8
      %v1491 = vpop.permute.xlu0 %1490
      %1492 = vrot.lane.b32.xlu0 %v1422, 8
      %v1493 = vpop.permute.xlu0 %1492
      %1494 = vrot.lane.b32.xlu0 %v1425, 8
      %v1495 = vpop.permute.xlu0 %1494
      %1496 = vrot.lane.b32.xlu0 %v1431, 8
      %v1497 = vpop.permute.xlu0 %1496
      %1498 = vrot.lane.b32.xlu0 %v1434, 8
      %v1499 = vpop.permute.xlu0 %1498
      %1500 = vrot.lane.b32.xlu0 %v1440, 8
      %v1501 = vpop.permute.xlu0 %1500
      %1502 = vrot.lane.b32.xlu0 %v1443, 8
      %v1503 = vpop.permute.xlu0 %1502
      %vm1534 = vcmask 93248
      %1535 = vst.msk [vmem:[%s1120] sm:$0xf] %vm1534, %v1445
      %vm1536 = vcmask 93248
      %vm1537 = vmand %vm1536, %vm1306
      %v1538 = vld [vmem:[%s1120 + $0x4] sm:$0xf]
      %v1539 = vsel %vm1537, %v1447, %v1538
      %1540 = vst [vmem:[%s1120 + $0x4] sm:$0xf] %v1539
      %1541 = vst.msk [vmem:[%s1120 + $0x8] sm:$0xf] %vm1534, %v1449
      %v1542 = vld [vmem:[%s1120 + $0xc] sm:$0xf]
      %v1543 = vsel %vm1537, %v1451, %v1542
      %1544 = vst [vmem:[%s1120 + $0xc] sm:$0xf] %v1543
      %1545 = vst.msk [vmem:[%s1120 + $0x10] sm:$0xf] %vm1534, %v1453
      %v1546 = vld [vmem:[%s1120 + $0x14] sm:$0xf]
      %v1547 = vsel %vm1537, %v1455, %v1546
      %1548 = vst [vmem:[%s1120 + $0x14] sm:$0xf] %v1547
      %1549 = vst.msk [vmem:[%s1120 + $0x18] sm:$0xf] %vm1534, %v1457
      %v1550 = vld [vmem:[%s1120 + $0x1c] sm:$0xf]
      %v1551 = vsel %vm1537, %v1459, %v1550
      %1552 = vst [vmem:[%s1120 + $0x1c] sm:$0xf] %v1551
      %1553 = vst.msk [vmem:[%s1120 + $0x20] sm:$0xf] %vm1534, %v1461
      %v1554 = vld [vmem:[%s1120 + $0x24] sm:$0xf]
      %v1555 = vsel %vm1537, %v1463, %v1554
      %1556 = vst [vmem:[%s1120 + $0x24] sm:$0xf] %v1555
      %1557 = vst.msk [vmem:[%s1120 + $0x28] sm:$0xf] %vm1534, %v1465
      %v1558 = vld [vmem:[%s1120 + $0x2c] sm:$0xf]
      %v1559 = vsel %vm1537, %v1467, %v1558
      %1560 = vst [vmem:[%s1120 + $0x2c] sm:$0xf] %v1559
      %1561 = vst.msk [vmem:[%s1120 + $0x30] sm:$0xf] %vm1534, %v1469
      %v1562 = vld [vmem:[%s1120 + $0x34] sm:$0xf]
      %v1563 = vsel %vm1537, %v1471, %v1562
      %1564 = vst [vmem:[%s1120 + $0x34] sm:$0xf] %v1563
      %1565 = vst.msk [vmem:[%s1120 + $0x38] sm:$0xf] %vm1534, %v1473
      %v1566 = vld [vmem:[%s1120 + $0x3c] sm:$0xf]
      %v1567 = vsel %vm1537, %v1475, %v1566
      %1568 = vst [vmem:[%s1120 + $0x3c] sm:$0xf] %v1567
      %1569 = vst.msk [vmem:[%s1120 + $0x40] sm:$0xf] %vm1534, %v1477
      %v1570 = vld [vmem:[%s1120 + $0x44] sm:$0xf]
      %v1571 = vsel %vm1537, %v1479, %v1570
      %1572 = vst [vmem:[%s1120 + $0x44] sm:$0xf] %v1571
      %1573 = vst.msk [vmem:[%s1120 + $0x48] sm:$0xf] %vm1534, %v1481
      %v1574 = vld [vmem:[%s1120 + $0x4c] sm:$0xf]
      %v1575 = vsel %vm1537, %v1483, %v1574
      %1576 = vst [vmem:[%s1120 + $0x4c] sm:$0xf] %v1575
      %1577 = vst.msk [vmem:[%s1120 + $0x50] sm:$0xf] %vm1534, %v1485
      %v1578 = vld [vmem:[%s1120 + $0x54] sm:$0xf]
      %v1579 = vsel %vm1537, %v1487, %v1578
      %1580 = vst [vmem:[%s1120 + $0x54] sm:$0xf] %v1579
      %1581 = vst.msk [vmem:[%s1120 + $0x58] sm:$0xf] %vm1534, %v1489
      %v1582 = vld [vmem:[%s1120 + $0x5c] sm:$0xf]
      %v1583 = vsel %vm1537, %v1491, %v1582
      %1584 = vst [vmem:[%s1120 + $0x5c] sm:$0xf] %v1583
      %1585 = vst.msk [vmem:[%s1120 + $0x60] sm:$0xf] %vm1534, %v1493
      %v1586 = vld [vmem:[%s1120 + $0x64] sm:$0xf]
      %v1587 = vsel %vm1537, %v1495, %v1586
      %1588 = vst [vmem:[%s1120 + $0x64] sm:$0xf] %v1587
      %1589 = vst.msk [vmem:[%s1120 + $0x68] sm:$0xf] %vm1534, %v1497
      %v1590 = vld [vmem:[%s1120 + $0x6c] sm:$0xf]
      %v1591 = vsel %vm1537, %v1499, %v1590
      %1592 = vst [vmem:[%s1120 + $0x6c] sm:$0xf] %v1591
      %1593 = vst.msk [vmem:[%s1120 + $0x70] sm:$0xf] %vm1534, %v1501
      %v1594 = vld [vmem:[%s1120 + $0x74] sm:$0xf]
      %v1595 = vsel %vm1537, %v1503, %v1594
      %1596 = vst [vmem:[%s1120 + $0x74] sm:$0xf] %v1595
      %v1598 = vunpack.c.l.b16 %v664
      %v1599 = vunpack.c.h.b16 %v664
      %v1600 = vpack.c.b16 %v1598, %v1598
      %v1601 = vpack.c.b16 %v1599, %v1599
      %v1603 = vshrl.u32 %v1600, 16
      %v1605 = vrot.slane %v1603, 7
      %v1606 = vshll.u32 %v1600, 16
      %v1608 = vor.u32 %v1605, %v1606
      %v1609 = vrot.slane %v1605, 4
      %v1611 = vshrl.u32 %v1601, 16
      %v1613 = vrot.slane %v1611, 7
      %v1614 = vshll.u32 %v1601, 16
      %v1616 = vor.u32 %v1613, %v1614
      %v1617 = vsel %vm849, %v1609, %v1616
      %1618 = vrot.lane.b32.xlu0 %v856, 12
      %v1619 = vpop.permute.xlu0 %1618
      %1620 = vrot.lane.b32.xlu0 %v865, 12
      %v1621 = vpop.permute.xlu0 %1620
      %1622 = vrot.lane.b32.xlu0 %v872, 12
      %v1623 = vpop.permute.xlu0 %1622
      %1624 = vrot.lane.b32.xlu0 %v881, 12
      %v1625 = vpop.permute.xlu0 %1624
      %1626 = vrot.lane.b32.xlu0 %v888, 12
      %v1627 = vpop.permute.xlu0 %1626
      %1628 = vrot.lane.b32.xlu0 %v897, 12
      %v1629 = vpop.permute.xlu0 %1628
      %1630 = vrot.lane.b32.xlu0 %v904, 12
      %v1631 = vpop.permute.xlu0 %1630
      %1632 = vrot.lane.b32.xlu0 %v913, 12
      %v1633 = vpop.permute.xlu0 %1632
      %1634 = vrot.lane.b32.xlu0 %v920, 12
      %v1635 = vpop.permute.xlu0 %1634
      %1636 = vrot.lane.b32.xlu0 %v929, 12
      %v1637 = vpop.permute.xlu0 %1636
      %1638 = vrot.lane.b32.xlu0 %v936, 12
      %v1639 = vpop.permute.xlu0 %1638
      %1640 = vrot.lane.b32.xlu0 %v945, 12
      %v1641 = vpop.permute.xlu0 %1640
      %1642 = vrot.lane.b32.xlu0 %v952, 12
      %v1643 = vpop.permute.xlu0 %1642
      %1644 = vrot.lane.b32.xlu0 %v961, 12
      %v1645 = vpop.permute.xlu0 %1644
      %1646 = vrot.lane.b32.xlu0 %v968, 12
      %v1647 = vpop.permute.xlu0 %1646
      %1648 = vrot.lane.b32.xlu0 %v977, 12
      %v1649 = vpop.permute.xlu0 %1648
      %1650 = vrot.lane.b32.xlu0 %v984, 12
      %v1651 = vpop.permute.xlu0 %1650
      %1652 = vrot.lane.b32.xlu0 %v993, 12
      %v1653 = vpop.permute.xlu0 %1652
      %1654 = vrot.lane.b32.xlu0 %v1000, 12
      %v1655 = vpop.permute.xlu0 %1654
      %1656 = vrot.lane.b32.xlu0 %v1009, 12
      %v1657 = vpop.permute.xlu0 %1656
      %1658 = vrot.lane.b32.xlu0 %v1016, 12
      %v1659 = vpop.permute.xlu0 %1658
      %1660 = vrot.lane.b32.xlu0 %v1025, 12
      %v1661 = vpop.permute.xlu0 %1660
      %1662 = vrot.lane.b32.xlu0 %v1032, 12
      %v1663 = vpop.permute.xlu0 %1662
      %1664 = vrot.lane.b32.xlu0 %v1041, 12
      %v1665 = vpop.permute.xlu0 %1664
      %1666 = vrot.lane.b32.xlu0 %v1048, 12
      %v1667 = vpop.permute.xlu0 %1666
      %1668 = vrot.lane.b32.xlu0 %v1057, 12
      %v1669 = vpop.permute.xlu0 %1668
      %1670 = vrot.lane.b32.xlu0 %v1064, 12
      %v1671 = vpop.permute.xlu0 %1670
      %1672 = vrot.lane.b32.xlu0 %v1073, 12
      %v1673 = vpop.permute.xlu0 %1672
      %1674 = vrot.lane.b32.xlu0 %v1080, 12
      %v1675 = vpop.permute.xlu0 %1674
      %1676 = vrot.lane.b32.xlu0 %v1089, 12
      %v1677 = vpop.permute.xlu0 %1676
      %1678 = vrot.lane.b32.xlu0 %v1608, 12
      %v1679 = vpop.permute.xlu0 %1678
      %1680 = vrot.lane.b32.xlu0 %v1617, 12
      %v1681 = vpop.permute.xlu0 %1680
      %vm1714 = vcmask 126048
      %vm1715 = vmand %vm1714, %vm1122
      %v1716 = vld [vmem:[#allocation2] sm:$0xf]
      %v1717 = vsel %vm1715, %v1619, %v1716
      %1718 = vst [vmem:[#allocation2] sm:$0xf] %v1717
      %vm1719 = vcmask 126048
      %1720 = vst.msk [vmem:[#allocation2 + $0x4] sm:$0xf] %vm1719, %v1621
      %v1721 = vld [vmem:[#allocation2 + $0x8] sm:$0xf]
      %v1722 = vsel %vm1715, %v1623, %v1721
      %1723 = vst [vmem:[#allocation2 + $0x8] sm:$0xf] %v1722
      %1724 = vst.msk [vmem:[#allocation2 + $0xc] sm:$0xf] %vm1719, %v1625
      %v1725 = vld [vmem:[#allocation2 + $0x10] sm:$0xf]
      %v1726 = vsel %vm1715, %v1627, %v1725
      %1727 = vst [vmem:[#allocation2 + $0x10] sm:$0xf] %v1726
      %1728 = vst.msk [vmem:[#allocation2 + $0x14] sm:$0xf] %vm1719, %v1629
      %v1729 = vld [vmem:[#allocation2 + $0x18] sm:$0xf]
      %v1730 = vsel %vm1715, %v1631, %v1729
      %1731 = vst [vmem:[#allocation2 + $0x18] sm:$0xf] %v1730
      %1732 = vst.msk [vmem:[#allocation2 + $0x1c] sm:$0xf] %vm1719, %v1633
      %v1733 = vld [vmem:[#allocation2 + $0x20] sm:$0xf]
      %v1734 = vsel %vm1715, %v1635, %v1733
      %1735 = vst [vmem:[#allocation2 + $0x20] sm:$0xf] %v1734
      %1736 = vst.msk [vmem:[#allocation2 + $0x24] sm:$0xf] %vm1719, %v1637
      %v1737 = vld [vmem:[#allocation2 + $0x28] sm:$0xf]
      %v1738 = vsel %vm1715, %v1639, %v1737
      %1739 = vst [vmem:[#allocation2 + $0x28] sm:$0xf] %v1738
      %1740 = vst.msk [vmem:[#allocation2 + $0x2c] sm:$0xf] %vm1719, %v1641
      %v1741 = vld [vmem:[#allocation2 + $0x30] sm:$0xf]
      %v1742 = vsel %vm1715, %v1643, %v1741
      %1743 = vst [vmem:[#allocation2 + $0x30] sm:$0xf] %v1742
      %1744 = vst.msk [vmem:[#allocation2 + $0x34] sm:$0xf] %vm1719, %v1645
      %v1745 = vld [vmem:[#allocation2 + $0x38] sm:$0xf]
      %v1746 = vsel %vm1715, %v1647, %v1745
      %1747 = vst [vmem:[#allocation2 + $0x38] sm:$0xf] %v1746
      %1748 = vst.msk [vmem:[#allocation2 + $0x3c] sm:$0xf] %vm1719, %v1649
      %v1749 = vld [vmem:[#allocation2 + $0x40] sm:$0xf]
      %v1750 = vsel %vm1715, %v1651, %v1749
      %1751 = vst [vmem:[#allocation2 + $0x40] sm:$0xf] %v1750
      %1752 = vst.msk [vmem:[#allocation2 + $0x44] sm:$0xf] %vm1719, %v1653
      %v1753 = vld [vmem:[#allocation2 + $0x48] sm:$0xf]
      %v1754 = vsel %vm1715, %v1655, %v1753
      %1755 = vst [vmem:[#allocation2 + $0x48] sm:$0xf] %v1754
      %1756 = vst.msk [vmem:[#allocation2 + $0x4c] sm:$0xf] %vm1719, %v1657
      %v1757 = vld [vmem:[#allocation2 + $0x50] sm:$0xf]
      %v1758 = vsel %vm1715, %v1659, %v1757
      %1759 = vst [vmem:[#allocation2 + $0x50] sm:$0xf] %v1758
      %1760 = vst.msk [vmem:[#allocation2 + $0x54] sm:$0xf] %vm1719, %v1661
      %v1761 = vld [vmem:[#allocation2 + $0x58] sm:$0xf]
      %v1762 = vsel %vm1715, %v1663, %v1761
      %1763 = vst [vmem:[#allocation2 + $0x58] sm:$0xf] %v1762
      %1764 = vst.msk [vmem:[#allocation2 + $0x5c] sm:$0xf] %vm1719, %v1665
      %v1765 = vld [vmem:[#allocation2 + $0x60] sm:$0xf]
      %v1766 = vsel %vm1715, %v1667, %v1765
      %1767 = vst [vmem:[#allocation2 + $0x60] sm:$0xf] %v1766
      %1768 = vst.msk [vmem:[#allocation2 + $0x64] sm:$0xf] %vm1719, %v1669
      %v1769 = vld [vmem:[#allocation2 + $0x68] sm:$0xf]
      %v1770 = vsel %vm1715, %v1671, %v1769
      %1771 = vst [vmem:[#allocation2 + $0x68] sm:$0xf] %v1770
      %1772 = vst.msk [vmem:[#allocation2 + $0x6c] sm:$0xf] %vm1719, %v1673
      %v1773 = vld [vmem:[#allocation2 + $0x70] sm:$0xf]
      %v1774 = vsel %vm1715, %v1675, %v1773
      %1775 = vst [vmem:[#allocation2 + $0x70] sm:$0xf] %v1774
      %1776 = vst.msk [vmem:[#allocation2 + $0x74] sm:$0xf] %vm1719, %v1677
      %v1777 = vld [vmem:[#allocation2 + $0x78] sm:$0xf]
      %v1778 = vsel %vm1715, %v1679, %v1777
      %1779 = vst [vmem:[#allocation2 + $0x78] sm:$0xf] %v1778
      %1780 = vst.msk [vmem:[#allocation2 + $0x7c] sm:$0xf] %vm1719, %v1681
      %1781 = vrot.lane.b32.xlu0 %v818, 16
      %v1782 = vpop.permute.xlu0 %1781
      %1783 = vrot.lane.b32.xlu0 %v819, 16
      %v1784 = vpop.permute.xlu0 %1783
      %1785 = vrot.lane.b32.xlu0 %v820, 16
      %v1786 = vpop.permute.xlu0 %1785
      %1787 = vrot.lane.b32.xlu0 %v821, 16
      %v1788 = vpop.permute.xlu0 %1787
      %1789 = vrot.lane.b32.xlu0 %v822, 16
      %v1790 = vpop.permute.xlu0 %1789
      %1791 = vrot.lane.b32.xlu0 %v823, 16
      %v1792 = vpop.permute.xlu0 %1791
      %1793 = vrot.lane.b32.xlu0 %v824, 16
      %v1794 = vpop.permute.xlu0 %1793
      %1795 = vrot.lane.b32.xlu0 %v825, 16
      %v1796 = vpop.permute.xlu0 %1795
      %1797 = vrot.lane.b32.xlu0 %v826, 16
      %v1798 = vpop.permute.xlu0 %1797
      %1799 = vrot.lane.b32.xlu0 %v827, 16
      %v1800 = vpop.permute.xlu0 %1799
      %1801 = vrot.lane.b32.xlu0 %v828, 16
      %v1802 = vpop.permute.xlu0 %1801
      %1803 = vrot.lane.b32.xlu0 %v829, 16
      %v1804 = vpop.permute.xlu0 %1803
      %1805 = vrot.lane.b32.xlu0 %v830, 16
      %v1806 = vpop.permute.xlu0 %1805
      %1807 = vrot.lane.b32.xlu0 %v831, 16
      %v1808 = vpop.permute.xlu0 %1807
      %1809 = vrot.lane.b32.xlu0 %v832, 16
      %v1810 = vpop.permute.xlu0 %1809
      %1811 = vrot.lane.b32.xlu0 %v833, 16
      %v1812 = vpop.permute.xlu0 %1811
      %1813 = vrot.lane.b32.xlu0 %v834, 16
      %v1814 = vpop.permute.xlu0 %1813
      %1815 = vrot.lane.b32.xlu0 %v835, 16
      %v1816 = vpop.permute.xlu0 %1815
      %1817 = vrot.lane.b32.xlu0 %v836, 16
      %v1818 = vpop.permute.xlu0 %1817
      %1819 = vrot.lane.b32.xlu0 %v837, 16
      %v1820 = vpop.permute.xlu0 %1819
      %1821 = vrot.lane.b32.xlu0 %v838, 16
      %v1822 = vpop.permute.xlu0 %1821
      %1823 = vrot.lane.b32.xlu0 %v839, 16
      %v1824 = vpop.permute.xlu0 %1823
      %1825 = vrot.lane.b32.xlu0 %v840, 16
      %v1826 = vpop.permute.xlu0 %1825
      %1827 = vrot.lane.b32.xlu0 %v841, 16
      %v1828 = vpop.permute.xlu0 %1827
      %1829 = vrot.lane.b32.xlu0 %v842, 16
      %v1830 = vpop.permute.xlu0 %1829
      %1831 = vrot.lane.b32.xlu0 %v843, 16
      %v1832 = vpop.permute.xlu0 %1831
      %1833 = vrot.lane.b32.xlu0 %v844, 16
      %v1834 = vpop.permute.xlu0 %1833
      %1835 = vrot.lane.b32.xlu0 %v845, 16
      %v1836 = vpop.permute.xlu0 %1835
      %1837 = vrot.lane.b32.xlu0 %v846, 16
      %v1838 = vpop.permute.xlu0 %1837
      %1839 = vrot.lane.b32.xlu0 %v847, 16
      %v1840 = vpop.permute.xlu0 %1839
      %1841 = vrot.lane.b32.xlu0 %v1600, 16
      %v1842 = vpop.permute.xlu0 %1841
      %1843 = vrot.lane.b32.xlu0 %v1601, 16
      %v1844 = vpop.permute.xlu0 %1843
      %vm1877 = vcmask 158848
      %1878 = vst.msk [vmem:[#allocation2] sm:$0xf] %vm1877, %v1782
      %1879 = vst.msk [vmem:[#allocation2 + $0x4] sm:$0xf] %vm1877, %v1784
      %1880 = vst.msk [vmem:[#allocation2 + $0x8] sm:$0xf] %vm1877, %v1786
      %1881 = vst.msk [vmem:[#allocation2 + $0xc] sm:$0xf] %vm1877, %v1788
      %1882 = vst.msk [vmem:[#allocation2 + $0x10] sm:$0xf] %vm1877, %v1790
      %1883 = vst.msk [vmem:[#allocation2 + $0x14] sm:$0xf] %vm1877, %v1792
      %1884 = vst.msk [vmem:[#allocation2 + $0x18] sm:$0xf] %vm1877, %v1794
      %1885 = vst.msk [vmem:[#allocation2 + $0x1c] sm:$0xf] %vm1877, %v1796
      %1886 = vst.msk [vmem:[#allocation2 + $0x20] sm:$0xf] %vm1877, %v1798
      %1887 = vst.msk [vmem:[#allocation2 + $0x24] sm:$0xf] %vm1877, %v1800
      %1888 = vst.msk [vmem:[#allocation2 + $0x28] sm:$0xf] %vm1877, %v1802
      %1889 = vst.msk [vmem:[#allocation2 + $0x2c] sm:$0xf] %vm1877, %v1804
      %1890 = vst.msk [vmem:[#allocation2 + $0x30] sm:$0xf] %vm1877, %v1806
      %1891 = vst.msk [vmem:[#allocation2 + $0x34] sm:$0xf] %vm1877, %v1808
      %1892 = vst.msk [vmem:[#allocation2 + $0x38] sm:$0xf] %vm1877, %v1810
      %1893 = vst.msk [vmem:[#allocation2 + $0x3c] sm:$0xf] %vm1877, %v1812
      %1894 = vst.msk [vmem:[#allocation2 + $0x40] sm:$0xf] %vm1877, %v1814
      %1895 = vst.msk [vmem:[#allocation2 + $0x44] sm:$0xf] %vm1877, %v1816
      %1896 = vst.msk [vmem:[#allocation2 + $0x48] sm:$0xf] %vm1877, %v1818
      %1897 = vst.msk [vmem:[#allocation2 + $0x4c] sm:$0xf] %vm1877, %v1820
      %1898 = vst.msk [vmem:[#allocation2 + $0x50] sm:$0xf] %vm1877, %v1822
      %1899 = vst.msk [vmem:[#allocation2 + $0x54] sm:$0xf] %vm1877, %v1824
      %1900 = vst.msk [vmem:[#allocation2 + $0x58] sm:$0xf] %vm1877, %v1826
      %1901 = vst.msk [vmem:[#allocation2 + $0x5c] sm:$0xf] %vm1877, %v1828
      %1902 = vst.msk [vmem:[#allocation2 + $0x60] sm:$0xf] %vm1877, %v1830
      %1903 = vst.msk [vmem:[#allocation2 + $0x64] sm:$0xf] %vm1877, %v1832
      %1904 = vst.msk [vmem:[#allocation2 + $0x68] sm:$0xf] %vm1877, %v1834
      %1905 = vst.msk [vmem:[#allocation2 + $0x6c] sm:$0xf] %vm1877, %v1836
      %1906 = vst.msk [vmem:[#allocation2 + $0x70] sm:$0xf] %vm1877, %v1838
      %1907 = vst.msk [vmem:[#allocation2 + $0x74] sm:$0xf] %vm1877, %v1840
      %1908 = vst.msk [vmem:[#allocation2 + $0x78] sm:$0xf] %vm1877, %v1842
      %1909 = vst.msk [vmem:[#allocation2 + $0x7c] sm:$0xf] %vm1877, %v1844
      %v1910 = vrot.slane %v1603, 4
      %v1911 = vrot.slane %v1606, 5
      %v1912 = vor.u32 %v1910, %v1911
      %v1913 = vrot.slane %v1912, 4
      %v1914 = vrot.slane %v1614, 5
      %v1915 = vsel %vm1308, %v1913, %v1914
      %v1916 = vrot.slane %v1611, 4
      %v1917 = vor.u32 %v1916, %v1914
      %v1918 = vrot.slane %v1917, 4
      %1919 = vrot.lane.b32.xlu0 %v1314, 20
      %v1920 = vpop.permute.xlu0 %1919
      %1921 = vrot.lane.b32.xlu0 %v1317, 20
      %v1922 = vpop.permute.xlu0 %1921
      %1923 = vrot.lane.b32.xlu0 %v1323, 20
      %v1924 = vpop.permute.xlu0 %1923
      %1925 = vrot.lane.b32.xlu0 %v1326, 20
      %v1926 = vpop.permute.xlu0 %1925
      %1927 = vrot.lane.b32.xlu0 %v1332, 20
      %v1928 = vpop.permute.xlu0 %1927
      %1929 = vrot.lane.b32.xlu0 %v1335, 20
      %v1930 = vpop.permute.xlu0 %1929
      %1931 = vrot.lane.b32.xlu0 %v1341, 20
      %v1932 = vpop.permute.xlu0 %1931
      %1933 = vrot.lane.b32.xlu0 %v1344, 20
      %v1934 = vpop.permute.xlu0 %1933
      %1935 = vrot.lane.b32.xlu0 %v1350, 20
      %v1936 = vpop.permute.xlu0 %1935
      %1937 = vrot.lane.b32.xlu0 %v1353, 20
      %v1938 = vpop.permute.xlu0 %1937
      %1939 = vrot.lane.b32.xlu0 %v1359, 20
      %v1940 = vpop.permute.xlu0 %1939
      %1941 = vrot.lane.b32.xlu0 %v1362, 20
      %v1942 = vpop.permute.xlu0 %1941
      %1943 = vrot.lane.b32.xlu0 %v1368, 20
      %v1944 = vpop.permute.xlu0 %1943
      %1945 = vrot.lane.b32.xlu0 %v1371, 20
      %v1946 = vpop.permute.xlu0 %1945
      %1947 = vrot.lane.b32.xlu0 %v1377, 20
      %v1948 = vpop.permute.xlu0 %1947
      %1949 = vrot.lane.b32.xlu0 %v1380, 20
      %v1950 = vpop.permute.xlu0 %1949
      %1951 = vrot.lane.b32.xlu0 %v1386, 20
      %v1952 = vpop.permute.xlu0 %1951
      %1953 = vrot.lane.b32.xlu0 %v1389, 20
      %v1954 = vpop.permute.xlu0 %1953
      %1955 = vrot.lane.b32.xlu0 %v1395, 20
      %v1956 = vpop.permute.xlu0 %1955
      %1957 = vrot.lane.b32.xlu0 %v1398, 20
      %v1958 = vpop.permute.xlu0 %1957
      %1959 = vrot.lane.b32.xlu0 %v1404, 20
      %v1960 = vpop.permute.xlu0 %1959
      %1961 = vrot.lane.b32.xlu0 %v1407, 20
      %v1962 = vpop.permute.xlu0 %1961
      %1963 = vrot.lane.b32.xlu0 %v1413, 20
      %v1964 = vpop.permute.xlu0 %1963
      %1965 = vrot.lane.b32.xlu0 %v1416, 20
      %v1966 = vpop.permute.xlu0 %1965
      %1967 = vrot.lane.b32.xlu0 %v1422, 20
      %v1968 = vpop.permute.xlu0 %1967
      %1969 = vrot.lane.b32.xlu0 %v1425, 20
      %v1970 = vpop.permute.xlu0 %1969
      %1971 = vrot.lane.b32.xlu0 %v1431, 20
      %v1972 = vpop.permute.xlu0 %1971
      %1973 = vrot.lane.b32.xlu0 %v1434, 20
      %v1974 = vpop.permute.xlu0 %1973
      %1975 = vrot.lane.b32.xlu0 %v1440, 20
      %v1976 = vpop.permute.xlu0 %1975
      %1977 = vrot.lane.b32.xlu0 %v1443, 20
      %v1978 = vpop.permute.xlu0 %1977
      %1979 = vrot.lane.b32.xlu0 %v1915, 20
      %v1980 = vpop.permute.xlu0 %1979
      %1981 = vrot.lane.b32.xlu0 %v1918, 20
      %v1982 = vpop.permute.xlu0 %1981
      %vm2015 = vcmask 191648
      %2016 = vst.msk [vmem:[#allocation2] sm:$0xf] %vm2015, %v1920
      %vm2017 = vcmask 191648
      %vm2018 = vmand %vm2017, %vm1306
      %v2019 = vld [vmem:[#allocation2 + $0x4] sm:$0xf]
      %v2020 = vsel %vm2018, %v1922, %v2019
      %2021 = vst [vmem:[#allocation2 + $0x4] sm:$0xf] %v2020
      %2022 = vst.msk [vmem:[#allocation2 + $0x8] sm:$0xf] %vm2015, %v1924
      %v2023 = vld [vmem:[#allocation2 + $0xc] sm:$0xf]
      %v2024 = vsel %vm2018, %v1926, %v2023
      %2025 = vst [vmem:[#allocation2 + $0xc] sm:$0xf] %v2024
      %2026 = vst.msk [vmem:[#allocation2 + $0x10] sm:$0xf] %vm2015, %v1928
      %v2027 = vld [vmem:[#allocation2 + $0x14] sm:$0xf]
      %v2028 = vsel %vm2018, %v1930, %v2027
      %2029 = vst [vmem:[#allocation2 + $0x14] sm:$0xf] %v2028
      %2030 = vst.msk [vmem:[#allocation2 + $0x18] sm:$0xf] %vm2015, %v1932
      %v2031 = vld [vmem:[#allocation2 + $0x1c] sm:$0xf]
      %v2032 = vsel %vm2018, %v1934, %v2031
      %2033 = vst [vmem:[#allocation2 + $0x1c] sm:$0xf] %v2032
      %2034 = vst.msk [vmem:[#allocation2 + $0x20] sm:$0xf] %vm2015, %v1936
      %v2035 = vld [vmem:[#allocation2 + $0x24] sm:$0xf]
      %v2036 = vsel %vm2018, %v1938, %v2035
      %2037 = vst [vmem:[#allocation2 + $0x24] sm:$0xf] %v2036
      %2038 = vst.msk [vmem:[#allocation2 + $0x28] sm:$0xf] %vm2015, %v1940
      %v2039 = vld [vmem:[#allocation2 + $0x2c] sm:$0xf]
      %v2040 = vsel %vm2018, %v1942, %v2039
      %2041 = vst [vmem:[#allocation2 + $0x2c] sm:$0xf] %v2040
      %2042 = vst.msk [vmem:[#allocation2 + $0x30] sm:$0xf] %vm2015, %v1944
      %v2043 = vld [vmem:[#allocation2 + $0x34] sm:$0xf]
      %v2044 = vsel %vm2018, %v1946, %v2043
      %2045 = vst [vmem:[#allocation2 + $0x34] sm:$0xf] %v2044
      %2046 = vst.msk [vmem:[#allocation2 + $0x38] sm:$0xf] %vm2015, %v1948
      %v2047 = vld [vmem:[#allocation2 + $0x3c] sm:$0xf]
      %v2048 = vsel %vm2018, %v1950, %v2047
      %2049 = vst [vmem:[#allocation2 + $0x3c] sm:$0xf] %v2048
      %2050 = vst.msk [vmem:[#allocation2 + $0x40] sm:$0xf] %vm2015, %v1952
      %v2051 = vld [vmem:[#allocation2 + $0x44] sm:$0xf]
      %v2052 = vsel %vm2018, %v1954, %v2051
      %2053 = vst [vmem:[#allocation2 + $0x44] sm:$0xf] %v2052
      %2054 = vst.msk [vmem:[#allocation2 + $0x48] sm:$0xf] %vm2015, %v1956
      %v2055 = vld [vmem:[#allocation2 + $0x4c] sm:$0xf]
      %v2056 = vsel %vm2018, %v1958, %v2055
      %2057 = vst [vmem:[#allocation2 + $0x4c] sm:$0xf] %v2056
      %2058 = vst.msk [vmem:[#allocation2 + $0x50] sm:$0xf] %vm2015, %v1960
      %v2059 = vld [vmem:[#allocation2 + $0x54] sm:$0xf]
      %v2060 = vsel %vm2018, %v1962, %v2059
      %2061 = vst [vmem:[#allocation2 + $0x54] sm:$0xf] %v2060
      %2062 = vst.msk [vmem:[#allocation2 + $0x58] sm:$0xf] %vm2015, %v1964
      %v2063 = vld [vmem:[#allocation2 + $0x5c] sm:$0xf]
      %v2064 = vsel %vm2018, %v1966, %v2063
      %2065 = vst [vmem:[#allocation2 + $0x5c] sm:$0xf] %v2064
      %2066 = vst.msk [vmem:[#allocation2 + $0x60] sm:$0xf] %vm2015, %v1968
      %v2067 = vld [vmem:[#allocation2 + $0x64] sm:$0xf]
      %v2068 = vsel %vm2018, %v1970, %v2067
      %2069 = vst [vmem:[#allocation2 + $0x64] sm:$0xf] %v2068
      %2070 = vst.msk [vmem:[#allocation2 + $0x68] sm:$0xf] %vm2015, %v1972
      %v2071 = vld [vmem:[#allocation2 + $0x6c] sm:$0xf]
      %v2072 = vsel %vm2018, %v1974, %v2071
      %2073 = vst [vmem:[#allocation2 + $0x6c] sm:$0xf] %v2072
      %2074 = vst.msk [vmem:[#allocation2 + $0x70] sm:$0xf] %vm2015, %v1976
      %v2075 = vld [vmem:[#allocation2 + $0x74] sm:$0xf]
      %v2076 = vsel %vm2018, %v1978, %v2075
      %2077 = vst [vmem:[#allocation2 + $0x74] sm:$0xf] %v2076
      %2078 = vst.msk [vmem:[#allocation2 + $0x78] sm:$0xf] %vm2015, %v1980
      %v2079 = vld [vmem:[#allocation2 + $0x7c] sm:$0xf]
      %v2080 = vsel %vm2018, %v1982, %v2079
      %2081 = vst [vmem:[#allocation2 + $0x7c] sm:$0xf] %v2080
      %2082 = vrot.lane.b32.xlu0 %v872, 24
      %v2083 = vpop.permute.xlu0 %2082
      %2084 = vrot.lane.b32.xlu0 %v881, 24
      %v2085 = vpop.permute.xlu0 %2084
      %2086 = vrot.lane.b32.xlu0 %v888, 24
      %v2087 = vpop.permute.xlu0 %2086
      %2088 = vrot.lane.b32.xlu0 %v897, 24
      %v2089 = vpop.permute.xlu0 %2088
      %2090 = vrot.lane.b32.xlu0 %v904, 24
      %v2091 = vpop.permute.xlu0 %2090
      %2092 = vrot.lane.b32.xlu0 %v913, 24
      %v2093 = vpop.permute.xlu0 %2092
      %2094 = vrot.lane.b32.xlu0 %v920, 24
      %v2095 = vpop.permute.xlu0 %2094
      %2096 = vrot.lane.b32.xlu0 %v929, 24
      %v2097 = vpop.permute.xlu0 %2096
      %2098 = vrot.lane.b32.xlu0 %v936, 24
      %v2099 = vpop.permute.xlu0 %2098
      %2100 = vrot.lane.b32.xlu0 %v945, 24
      %v2101 = vpop.permute.xlu0 %2100
      %2102 = vrot.lane.b32.xlu0 %v952, 24
      %v2103 = vpop.permute.xlu0 %2102
      %2104 = vrot.lane.b32.xlu0 %v961, 24
      %v2105 = vpop.permute.xlu0 %2104
      %2106 = vrot.lane.b32.xlu0 %v968, 24
      %v2107 = vpop.permute.xlu0 %2106
      %2108 = vrot.lane.b32.xlu0 %v977, 24
      %v2109 = vpop.permute.xlu0 %2108
      %2110 = vrot.lane.b32.xlu0 %v984, 24
      %v2111 = vpop.permute.xlu0 %2110
      %2112 = vrot.lane.b32.xlu0 %v993, 24
      %v2113 = vpop.permute.xlu0 %2112
      %2114 = vrot.lane.b32.xlu0 %v1000, 24
      %v2115 = vpop.permute.xlu0 %2114
      %2116 = vrot.lane.b32.xlu0 %v1009, 24
      %v2117 = vpop.permute.xlu0 %2116
      %2118 = vrot.lane.b32.xlu0 %v1016, 24
      %v2119 = vpop.permute.xlu0 %2118
      %2120 = vrot.lane.b32.xlu0 %v1025, 24
      %v2121 = vpop.permute.xlu0 %2120
      %2122 = vrot.lane.b32.xlu0 %v1032, 24
      %v2123 = vpop.permute.xlu0 %2122
      %2124 = vrot.lane.b32.xlu0 %v1041, 24
      %v2125 = vpop.permute.xlu0 %2124
      %2126 = vrot.lane.b32.xlu0 %v1048, 24
      %v2127 = vpop.permute.xlu0 %2126
      %2128 = vrot.lane.b32.xlu0 %v1057, 24
      %v2129 = vpop.permute.xlu0 %2128
      %2130 = vrot.lane.b32.xlu0 %v1064, 24
      %v2131 = vpop.permute.xlu0 %2130
      %2132 = vrot.lane.b32.xlu0 %v1073, 24
      %v2133 = vpop.permute.xlu0 %2132
      %2134 = vrot.lane.b32.xlu0 %v1080, 24
      %v2135 = vpop.permute.xlu0 %2134
      %2136 = vrot.lane.b32.xlu0 %v1089, 24
      %v2137 = vpop.permute.xlu0 %2136
      %2138 = vrot.lane.b32.xlu0 %v1608, 24
      %v2139 = vpop.permute.xlu0 %2138
      %2140 = vrot.lane.b32.xlu0 %v1617, 24
      %v2141 = vpop.permute.xlu0 %2140
      %vm2172 = vcmask 224448
      %vm2173 = vmand %vm2172, %vm1122
      %v2174 = vld [vmem:[#allocation2] sm:$0xf]
      %v2175 = vsel %vm2173, %v2083, %v2174
      %2176 = vst [vmem:[#allocation2] sm:$0xf] %v2175
      %vm2177 = vcmask 224448
      %2178 = vst.msk [vmem:[#allocation2 + $0x4] sm:$0xf] %vm2177, %v2085
      %v2179 = vld [vmem:[#allocation2 + $0x8] sm:$0xf]
      %v2180 = vsel %vm2173, %v2087, %v2179
      %2181 = vst [vmem:[#allocation2 + $0x8] sm:$0xf] %v2180
      %2182 = vst.msk [vmem:[#allocation2 + $0xc] sm:$0xf] %vm2177, %v2089
      %v2183 = vld [vmem:[#allocation2 + $0x10] sm:$0xf]
      %v2184 = vsel %vm2173, %v2091, %v2183
      %2185 = vst [vmem:[#allocation2 + $0x10] sm:$0xf] %v2184
      %2186 = vst.msk [vmem:[#allocation2 + $0x14] sm:$0xf] %vm2177, %v2093
      %v2187 = vld [vmem:[#allocation2 + $0x18] sm:$0xf]
      %v2188 = vsel %vm2173, %v2095, %v2187
      %2189 = vst [vmem:[#allocation2 + $0x18] sm:$0xf] %v2188
      %2190 = vst.msk [vmem:[#allocation2 + $0x1c] sm:$0xf] %vm2177, %v2097
      %v2191 = vld [vmem:[#allocation2 + $0x20] sm:$0xf]
      %v2192 = vsel %vm2173, %v2099, %v2191
      %2193 = vst [vmem:[#allocation2 + $0x20] sm:$0xf] %v2192
      %2194 = vst.msk [vmem:[#allocation2 + $0x24] sm:$0xf] %vm2177, %v2101
      %v2195 = vld [vmem:[#allocation2 + $0x28] sm:$0xf]
      %v2196 = vsel %vm2173, %v2103, %v2195
      %2197 = vst [vmem:[#allocation2 + $0x28] sm:$0xf] %v2196
      %2198 = vst.msk [vmem:[#allocation2 + $0x2c] sm:$0xf] %vm2177, %v2105
      %v2199 = vld [vmem:[#allocation2 + $0x30] sm:$0xf]
      %v2200 = vsel %vm2173, %v2107, %v2199
      %2201 = vst [vmem:[#allocation2 + $0x30] sm:$0xf] %v2200
      %2202 = vst.msk [vmem:[#allocation2 + $0x34] sm:$0xf] %vm2177, %v2109
      %v2203 = vld [vmem:[#allocation2 + $0x38] sm:$0xf]
      %v2204 = vsel %vm2173, %v2111, %v2203
      %2205 = vst [vmem:[#allocation2 + $0x38] sm:$0xf] %v2204
      %2206 = vst.msk [vmem:[#allocation2 + $0x3c] sm:$0xf] %vm2177, %v2113
      %v2207 = vld [vmem:[#allocation2 + $0x40] sm:$0xf]
      %v2208 = vsel %vm2173, %v2115, %v2207
      %2209 = vst [vmem:[#allocation2 + $0x40] sm:$0xf] %v2208
      %2210 = vst.msk [vmem:[#allocation2 + $0x44] sm:$0xf] %vm2177, %v2117
      %v2211 = vld [vmem:[#allocation2 + $0x48] sm:$0xf]
      %v2212 = vsel %vm2173, %v2119, %v2211
      %2213 = vst [vmem:[#allocation2 + $0x48] sm:$0xf] %v2212
      %2214 = vst.msk [vmem:[#allocation2 + $0x4c] sm:$0xf] %vm2177, %v2121
      %v2215 = vld [vmem:[#allocation2 + $0x50] sm:$0xf]
      %v2216 = vsel %vm2173, %v2123, %v2215
      %2217 = vst [vmem:[#allocation2 + $0x50] sm:$0xf] %v2216
      %2218 = vst.msk [vmem:[#allocation2 + $0x54] sm:$0xf] %vm2177, %v2125
      %v2219 = vld [vmem:[#allocation2 + $0x58] sm:$0xf]
      %v2220 = vsel %vm2173, %v2127, %v2219
      %2221 = vst [vmem:[#allocation2 + $0x58] sm:$0xf] %v2220
      %2222 = vst.msk [vmem:[#allocation2 + $0x5c] sm:$0xf] %vm2177, %v2129
      %v2223 = vld [vmem:[#allocation2 + $0x60] sm:$0xf]
      %v2224 = vsel %vm2173, %v2131, %v2223
      %2225 = vst [vmem:[#allocation2 + $0x60] sm:$0xf] %v2224
      %2226 = vst.msk [vmem:[#allocation2 + $0x64] sm:$0xf] %vm2177, %v2133
      %v2227 = vld [vmem:[#allocation2 + $0x68] sm:$0xf]
      %v2228 = vsel %vm2173, %v2135, %v2227
      %2229 = vst [vmem:[#allocation2 + $0x68] sm:$0xf] %v2228
      %2230 = vst.msk [vmem:[#allocation2 + $0x6c] sm:$0xf] %vm2177, %v2137
      %v2231 = vld [vmem:[#allocation2 + $0x70] sm:$0xf]
      %v2232 = vsel %vm2173, %v2139, %v2231
      %2233 = vst [vmem:[#allocation2 + $0x70] sm:$0xf] %v2232
      %2234 = vst.msk [vmem:[#allocation2 + $0x74] sm:$0xf] %vm2177, %v2141
      %2235 = vrot.lane.b32.xlu0 %v820, 28
      %v2236 = vpop.permute.xlu0 %2235
      %2237 = vrot.lane.b32.xlu0 %v821, 28
      %v2238 = vpop.permute.xlu0 %2237
      %2239 = vrot.lane.b32.xlu0 %v822, 28
      %v2240 = vpop.permute.xlu0 %2239
      %2241 = vrot.lane.b32.xlu0 %v823, 28
      %v2242 = vpop.permute.xlu0 %2241
      %2243 = vrot.lane.b32.xlu0 %v824, 28
      %v2244 = vpop.permute.xlu0 %2243
      %2245 = vrot.lane.b32.xlu0 %v825, 28
      %v2246 = vpop.permute.xlu0 %2245
      %2247 = vrot.lane.b32.xlu0 %v826, 28
      %v2248 = vpop.permute.xlu0 %2247
      %2249 = vrot.lane.b32.xlu0 %v827, 28
      %v2250 = vpop.permute.xlu0 %2249
      %2251 = vrot.lane.b32.xlu0 %v828, 28
      %v2252 = vpop.permute.xlu0 %2251
      %2253 = vrot.lane.b32.xlu0 %v829, 28
      %v2254 = vpop.permute.xlu0 %2253
      %2255 = vrot.lane.b32.xlu0 %v830, 28
      %v2256 = vpop.permute.xlu0 %2255
      %2257 = vrot.lane.b32.xlu0 %v831, 28
      %v2258 = vpop.permute.xlu0 %2257
      %2259 = vrot.lane.b32.xlu0 %v832, 28
      %v2260 = vpop.permute.xlu0 %2259
      %2261 = vrot.lane.b32.xlu0 %v833, 28
      %v2262 = vpop.permute.xlu0 %2261
      %2263 = vrot.lane.b32.xlu0 %v834, 28
      %v2264 = vpop.permute.xlu0 %2263
      %2265 = vrot.lane.b32.xlu0 %v835, 28
      %v2266 = vpop.permute.xlu0 %2265
      %2267 = vrot.lane.b32.xlu0 %v836, 28
      %v2268 = vpop.permute.xlu0 %2267
      %2269 = vrot.lane.b32.xlu0 %v837, 28
      %v2270 = vpop.permute.xlu0 %2269
      %2271 = vrot.lane.b32.xlu0 %v838, 28
      %v2272 = vpop.permute.xlu0 %2271
      %2273 = vrot.lane.b32.xlu0 %v839, 28
      %v2274 = vpop.permute.xlu0 %2273
      %2275 = vrot.lane.b32.xlu0 %v840, 28
      %v2276 = vpop.permute.xlu0 %2275
      %2277 = vrot.lane.b32.xlu0 %v841, 28
      %v2278 = vpop.permute.xlu0 %2277
      %2279 = vrot.lane.b32.xlu0 %v842, 28
      %v2280 = vpop.permute.xlu0 %2279
      %2281 = vrot.lane.b32.xlu0 %v843, 28
      %v2282 = vpop.permute.xlu0 %2281
      %2283 = vrot.lane.b32.xlu0 %v844, 28
      %v2284 = vpop.permute.xlu0 %2283
      %2285 = vrot.lane.b32.xlu0 %v845, 28
      %v2286 = vpop.permute.xlu0 %2285
      %2287 = vrot.lane.b32.xlu0 %v846, 28
      %v2288 = vpop.permute.xlu0 %2287
      %2289 = vrot.lane.b32.xlu0 %v847, 28
      %v2290 = vpop.permute.xlu0 %2289
      %2291 = vrot.lane.b32.xlu0 %v1600, 28
      %v2292 = vpop.permute.xlu0 %2291
      %2293 = vrot.lane.b32.xlu0 %v1601, 28
      %v2294 = vpop.permute.xlu0 %2293
      %vm2325 = vcmask 257248
      %2326 = vst.msk [vmem:[#allocation2] sm:$0xf] %vm2325, %v2236
      %2327 = vst.msk [vmem:[#allocation2 + $0x4] sm:$0xf] %vm2325, %v2238
      %2328 = vst.msk [vmem:[#allocation2 + $0x8] sm:$0xf] %vm2325, %v2240
      %2329 = vst.msk [vmem:[#allocation2 + $0xc] sm:$0xf] %vm2325, %v2242
      %2330 = vst.msk [vmem:[#allocation2 + $0x10] sm:$0xf] %vm2325, %v2244
      %2331 = vst.msk [vmem:[#allocation2 + $0x14] sm:$0xf] %vm2325, %v2246
      %2332 = vst.msk [vmem:[#allocation2 + $0x18] sm:$0xf] %vm2325, %v2248
      %2333 = vst.msk [vmem:[#allocation2 + $0x1c] sm:$0xf] %vm2325, %v2250
      %2334 = vst.msk [vmem:[#allocation2 + $0x20] sm:$0xf] %vm2325, %v2252
      %2335 = vst.msk [vmem:[#allocation2 + $0x24] sm:$0xf] %vm2325, %v2254
      %2336 = vst.msk [vmem:[#allocation2 + $0x28] sm:$0xf] %vm2325, %v2256
      %2337 = vst.msk [vmem:[#allocation2 + $0x2c] sm:$0xf] %vm2325, %v2258
      %2338 = vst.msk [vmem:[#allocation2 + $0x30] sm:$0xf] %vm2325, %v2260
      %2339 = vst.msk [vmem:[#allocation2 + $0x34] sm:$0xf] %vm2325, %v2262
      %2340 = vst.msk [vmem:[#allocation2 + $0x38] sm:$0xf] %vm2325, %v2264
      %2341 = vst.msk [vmem:[#allocation2 + $0x3c] sm:$0xf] %vm2325, %v2266
      %2342 = vst.msk [vmem:[#allocation2 + $0x40] sm:$0xf] %vm2325, %v2268
      %2343 = vst.msk [vmem:[#allocation2 + $0x44] sm:$0xf] %vm2325, %v2270
      %2344 = vst.msk [vmem:[#allocation2 + $0x48] sm:$0xf] %vm2325, %v2272
      %2345 = vst.msk [vmem:[#allocation2 + $0x4c] sm:$0xf] %vm2325, %v2274
      %2346 = vst.msk [vmem:[#allocation2 + $0x50] sm:$0xf] %vm2325, %v2276
      %2347 = vst.msk [vmem:[#allocation2 + $0x54] sm:$0xf] %vm2325, %v2278
      %2348 = vst.msk [vmem:[#allocation2 + $0x58] sm:$0xf] %vm2325, %v2280
      %2349 = vst.msk [vmem:[#allocation2 + $0x5c] sm:$0xf] %vm2325, %v2282
      %2350 = vst.msk [vmem:[#allocation2 + $0x60] sm:$0xf] %vm2325, %v2284
      %2351 = vst.msk [vmem:[#allocation2 + $0x64] sm:$0xf] %vm2325, %v2286
      %2352 = vst.msk [vmem:[#allocation2 + $0x68] sm:$0xf] %vm2325, %v2288
      %2353 = vst.msk [vmem:[#allocation2 + $0x6c] sm:$0xf] %vm2325, %v2290
      %2354 = vst.msk [vmem:[#allocation2 + $0x70] sm:$0xf] %vm2325, %v2292
      %2355 = vst.msk [vmem:[#allocation2 + $0x74] sm:$0xf] %vm2325, %v2294
      %2356 = vrot.lane.b32.xlu0 %v1323, 32
      %v2357 = vpop.permute.xlu0 %2356
      %2358 = vrot.lane.b32.xlu0 %v1326, 32
      %v2359 = vpop.permute.xlu0 %2358
      %2360 = vrot.lane.b32.xlu0 %v1332, 32
      %v2361 = vpop.permute.xlu0 %2360
      %2362 = vrot.lane.b32.xlu0 %v1335, 32
      %v2363 = vpop.permute.xlu0 %2362
      %2364 = vrot.lane.b32.xlu0 %v1341, 32
      %v2365 = vpop.permute.xlu0 %2364
      %2366 = vrot.lane.b32.xlu0 %v1344, 32
      %v2367 = vpop.permute.xlu0 %2366
      %2368 = vrot.lane.b32.xlu0 %v1350, 32
      %v2369 = vpop.permute.xlu0 %2368
      %2370 = vrot.lane.b32.xlu0 %v1353, 32
      %v2371 = vpop.permute.xlu0 %2370
      %2372 = vrot.lane.b32.xlu0 %v1359, 32
      %v2373 = vpop.permute.xlu0 %2372
      %2374 = vrot.lane.b32.xlu0 %v1362, 32
      %v2375 = vpop.permute.xlu0 %2374
      %2376 = vrot.lane.b32.xlu0 %v1368, 32
      %v2377 = vpop.permute.xlu0 %2376
      %2378 = vrot.lane.b32.xlu0 %v1371, 32
      %v2379 = vpop.permute.xlu0 %2378
      %2380 = vrot.lane.b32.xlu0 %v1377, 32
      %v2381 = vpop.permute.xlu0 %2380
      %2382 = vrot.lane.b32.xlu0 %v1380, 32
      %v2383 = vpop.permute.xlu0 %2382
      %2384 = vrot.lane.b32.xlu0 %v1386, 32
      %v2385 = vpop.permute.xlu0 %2384
      %2386 = vrot.lane.b32.xlu0 %v1389, 32
      %v2387 = vpop.permute.xlu0 %2386
      %2388 = vrot.lane.b32.xlu0 %v1395, 32
      %v2389 = vpop.permute.xlu0 %2388
      %2390 = vrot.lane.b32.xlu0 %v1398, 32
      %v2391 = vpop.permute.xlu0 %2390
      %2392 = vrot.lane.b32.xlu0 %v1404, 32
      %v2393 = vpop.permute.xlu0 %2392
      %2394 = vrot.lane.b32.xlu0 %v1407, 32
      %v2395 = vpop.permute.xlu0 %2394
      %2396 = vrot.lane.b32.xlu0 %v1413, 32
      %v2397 = vpop.permute.xlu0 %2396
      %2398 = vrot.lane.b32.xlu0 %v1416, 32
      %v2399 = vpop.permute.xlu0 %2398
      %2400 = vrot.lane.b32.xlu0 %v1422, 32
      %v2401 = vpop.permute.xlu0 %2400
      %2402 = vrot.lane.b32.xlu0 %v1425, 32
      %v2403 = vpop.permute.xlu0 %2402
      %2404 = vrot.lane.b32.xlu0 %v1431, 32
      %v2405 = vpop.permute.xlu0 %2404
      %2406 = vrot.lane.b32.xlu0 %v1434, 32
      %v2407 = vpop.permute.xlu0 %2406
      %2408 = vrot.lane.b32.xlu0 %v1440, 32
      %v2409 = vpop.permute.xlu0 %2408
      %2410 = vrot.lane.b32.xlu0 %v1443, 32
      %v2411 = vpop.permute.xlu0 %2410
      %2412 = vrot.lane.b32.xlu0 %v1915, 32
      %v2413 = vpop.permute.xlu0 %2412
      %2414 = vrot.lane.b32.xlu0 %v1918, 32
      %v2415 = vpop.permute.xlu0 %2414
      %vm2446 = vcmask 290048
      %2447 = vst.msk [vmem:[#allocation2] sm:$0xf] %vm2446, %v2357
      %vm2448 = vcmask 290048
      %vm2449 = vmand %vm2448, %vm1306
      %v2450 = vld [vmem:[#allocation2 + $0x4] sm:$0xf]
      %v2451 = vsel %vm2449, %v2359, %v2450
      %2452 = vst [vmem:[#allocation2 + $0x4] sm:$0xf] %v2451
      %2453 = vst.msk [vmem:[#allocation2 + $0x8] sm:$0xf] %vm2446, %v2361
      %v2454 = vld [vmem:[#allocation2 + $0xc] sm:$0xf]
      %v2455 = vsel %vm2449, %v2363, %v2454
      %2456 = vst [vmem:[#allocation2 + $0xc] sm:$0xf] %v2455
      %2457 = vst.msk [vmem:[#allocation2 + $0x10] sm:$0xf] %vm2446, %v2365
      %v2458 = vld [vmem:[#allocation2 + $0x14] sm:$0xf]
      %v2459 = vsel %vm2449, %v2367, %v2458
      %2460 = vst [vmem:[#allocation2 + $0x14] sm:$0xf] %v2459
      %2461 = vst.msk [vmem:[#allocation2 + $0x18] sm:$0xf] %vm2446, %v2369
      %v2462 = vld [vmem:[#allocation2 + $0x1c] sm:$0xf]
      %v2463 = vsel %vm2449, %v2371, %v2462
      %2464 = vst [vmem:[#allocation2 + $0x1c] sm:$0xf] %v2463
      %2465 = vst.msk [vmem:[#allocation2 + $0x20] sm:$0xf] %vm2446, %v2373
      %v2466 = vld [vmem:[#allocation2 + $0x24] sm:$0xf]
      %v2467 = vsel %vm2449, %v2375, %v2466
      %2468 = vst [vmem:[#allocation2 + $0x24] sm:$0xf] %v2467
      %2469 = vst.msk [vmem:[#allocation2 + $0x28] sm:$0xf] %vm2446, %v2377
      %v2470 = vld [vmem:[#allocation2 + $0x2c] sm:$0xf]
      %v2471 = vsel %vm2449, %v2379, %v2470
      %2472 = vst [vmem:[#allocation2 + $0x2c] sm:$0xf] %v2471
      %2473 = vst.msk [vmem:[#allocation2 + $0x30] sm:$0xf] %vm2446, %v2381
      %v2474 = vld [vmem:[#allocation2 + $0x34] sm:$0xf]
      %v2475 = vsel %vm2449, %v2383, %v2474
      %2476 = vst [vmem:[#allocation2 + $0x34] sm:$0xf] %v2475
      %2477 = vst.msk [vmem:[#allocation2 + $0x38] sm:$0xf] %vm2446, %v2385
      %v2478 = vld [vmem:[#allocation2 + $0x3c] sm:$0xf]
      %v2479 = vsel %vm2449, %v2387, %v2478
      %2480 = vst [vmem:[#allocation2 + $0x3c] sm:$0xf] %v2479
      %2481 = vst.msk [vmem:[#allocation2 + $0x40] sm:$0xf] %vm2446, %v2389
      %v2482 = vld [vmem:[#allocation2 + $0x44] sm:$0xf]
      %v2483 = vsel %vm2449, %v2391, %v2482
      %2484 = vst [vmem:[#allocation2 + $0x44] sm:$0xf] %v2483
      %2485 = vst.msk [vmem:[#allocation2 + $0x48] sm:$0xf] %vm2446, %v2393
      %v2486 = vld [vmem:[#allocation2 + $0x4c] sm:$0xf]
      %v2487 = vsel %vm2449, %v2395, %v2486
      %2488 = vst [vmem:[#allocation2 + $0x4c] sm:$0xf] %v2487
      %2489 = vst.msk [vmem:[#allocation2 + $0x50] sm:$0xf] %vm2446, %v2397
      %v2490 = vld [vmem:[#allocation2 + $0x54] sm:$0xf]
      %v2491 = vsel %vm2449, %v2399, %v2490
      %2492 = vst [vmem:[#allocation2 + $0x54] sm:$0xf] %v2491
      %2493 = vst.msk [vmem:[#allocation2 + $0x58] sm:$0xf] %vm2446, %v2401
      %v2494 = vld [vmem:[#allocation2 + $0x5c] sm:$0xf]
      %v2495 = vsel %vm2449, %v2403, %v2494
      %2496 = vst [vmem:[#allocation2 + $0x5c] sm:$0xf] %v2495
      %2497 = vst.msk [vmem:[#allocation2 + $0x60] sm:$0xf] %vm2446, %v2405
      %v2498 = vld [vmem:[#allocation2 + $0x64] sm:$0xf]
      %v2499 = vsel %vm2449, %v2407, %v2498
      %2500 = vst [vmem:[#allocation2 + $0x64] sm:$0xf] %v2499
      %2501 = vst.msk [vmem:[#allocation2 + $0x68] sm:$0xf] %vm2446, %v2409
      %v2502 = vld [vmem:[#allocation2 + $0x6c] sm:$0xf]
      %v2503 = vsel %vm2449, %v2411, %v2502
      %2504 = vst [vmem:[#allocation2 + $0x6c] sm:$0xf] %v2503
      %2505 = vst.msk [vmem:[#allocation2 + $0x70] sm:$0xf] %vm2446, %v2413
      %v2506 = vld [vmem:[#allocation2 + $0x74] sm:$0xf]
      %v2507 = vsel %vm2449, %v2415, %v2506
      %2508 = vst [vmem:[#allocation2 + $0x74] sm:$0xf] %v2507
      %v2509 = vld [vmem:[#allocation2] sm:$0xf]
      %v2510 = vld [vmem:[#allocation2 + $0x4] sm:$0xf]
      %v2511 = vld [vmem:[#allocation2 + $0x8] sm:$0xf]
      %v2512 = vld [vmem:[#allocation2 + $0xc] sm:$0xf]
      %v2513 = vld [vmem:[#allocation2 + $0x10] sm:$0xf]
      %v2514 = vld [vmem:[#allocation2 + $0x14] sm:$0xf]
      %v2515 = vld [vmem:[#allocation2 + $0x18] sm:$0xf]
      %v2516 = vld [vmem:[#allocation2 + $0x1c] sm:$0xf]
      %v2517 = vld [vmem:[#allocation2 + $0x20] sm:$0xf]
      %v2518 = vld [vmem:[#allocation2 + $0x24] sm:$0xf]
      %v2519 = vld [vmem:[#allocation2 + $0x28] sm:$0xf]
      %v2520 = vld [vmem:[#allocation2 + $0x2c] sm:$0xf]
      %v2521 = vld [vmem:[#allocation2 + $0x30] sm:$0xf]
      %v2522 = vld [vmem:[#allocation2 + $0x34] sm:$0xf]
      %v2523 = vld [vmem:[#allocation2 + $0x38] sm:$0xf]
      %v2524 = vld [vmem:[#allocation2 + $0x3c] sm:$0xf]
      %v2525 = vld [vmem:[#allocation2 + $0x40] sm:$0xf]
      %v2526 = vld [vmem:[#allocation2 + $0x44] sm:$0xf]
      %v2527 = vld [vmem:[#allocation2 + $0x48] sm:$0xf]
      %v2528 = vld [vmem:[#allocation2 + $0x4c] sm:$0xf]
      %v2529 = vld [vmem:[#allocation2 + $0x50] sm:$0xf]
      %v2530 = vld [vmem:[#allocation2 + $0x54] sm:$0xf]
      %v2531 = vld [vmem:[#allocation2 + $0x58] sm:$0xf]
      %v2532 = vld [vmem:[#allocation2 + $0x5c] sm:$0xf]
      %v2533 = vld [vmem:[#allocation2 + $0x60] sm:$0xf]
      %v2534 = vld [vmem:[#allocation2 + $0x64] sm:$0xf]
      %v2535 = vld [vmem:[#allocation2 + $0x68] sm:$0xf]
      %v2536 = vld [vmem:[#allocation2 + $0x6c] sm:$0xf]
      %v2537 = vld [vmem:[#allocation2 + $0x70] sm:$0xf]
      %v2538 = vld [vmem:[#allocation2 + $0x74] sm:$0xf]
      %v2539 = vld [vmem:[#allocation2 + $0x78] sm:$0xf]
      %v2540 = vld [vmem:[#allocation2 + $0x7c] sm:$0xf]
      %v2541 = vld [vmem:[%s3] sm:$0xf]
      %v2542 = vld [vmem:[%s3 + $0x4] sm:$0xf]
      %v2543 = vld [vmem:[%s3 + $0x8] sm:$0xf]
      %v2544 = vld [vmem:[%s3 + $0xc] sm:$0xf]
      %v2545 = vld [vmem:[%s3 + $0x10] sm:$0x3]
      %v2546 = vld [vmem:[%s4] sm:$0x1]
      %v2548 = vlaneseq
      %v2549 = vshrl.u32 %v2548, 7
      %v2550 = vsub.s32 0, %v2549
      %v2551 = vrot.slane %v2546, %v2550
      %v2585 = vunpack.c.l.b16 %v2509
      %v2586 = vunpack.c.l.b16 %v2510
      %v2587 = vunpack.c.l.b16 %v2511
      %v2588 = vunpack.c.l.b16 %v2512
      %v2589 = vunpack.c.l.b16 %v2513
      %v2590 = vunpack.c.l.b16 %v2514
      %v2591 = vunpack.c.l.b16 %v2515
      %v2592 = vunpack.c.l.b16 %v2516
      %v2593 = vunpack.c.l.b16 %v2517
      %v2594 = vunpack.c.l.b16 %v2518
      %v2595 = vunpack.c.l.b16 %v2519
      %v2596 = vunpack.c.l.b16 %v2520
      %v2597 = vunpack.c.l.b16 %v2521
      %v2598 = vunpack.c.l.b16 %v2522
      %v2599 = vunpack.c.l.b16 %v2523
      %v2600 = vunpack.c.l.b16 %v2524
      %v2601 = vunpack.c.l.b16 %v2525
      %v2602 = vunpack.c.l.b16 %v2526
      %v2603 = vunpack.c.l.b16 %v2527
      %v2604 = vunpack.c.l.b16 %v2528
      %v2605 = vunpack.c.l.b16 %v2529
      %v2606 = vunpack.c.l.b16 %v2530
      %v2607 = vunpack.c.l.b16 %v2531
      %v2608 = vunpack.c.l.b16 %v2532
      %v2609 = vunpack.c.l.b16 %v2533
      %v2610 = vunpack.c.l.b16 %v2534
      %v2611 = vunpack.c.l.b16 %v2535
      %v2612 = vunpack.c.l.b16 %v2536
      %v2613 = vunpack.c.l.b16 %v2537
      %v2614 = vunpack.c.l.b16 %v2538
      %v2615 = vunpack.c.l.b16 %v2539
      %v2616 = vunpack.c.l.b16 %v2540
      %v2617 = vpack.c.b16 %v2586, %v2585
      %v2618 = vpack.c.b16 %v2588, %v2587
      %v2619 = vpack.c.b16 %v2590, %v2589
      %v2620 = vpack.c.b16 %v2592, %v2591
      %v2621 = vpack.c.b16 %v2594, %v2593
      %v2622 = vpack.c.b16 %v2596, %v2595
      %v2623 = vpack.c.b16 %v2598, %v2597
      %v2624 = vpack.c.b16 %v2600, %v2599
      %v2625 = vpack.c.b16 %v2602, %v2601
      %v2626 = vpack.c.b16 %v2604, %v2603
      %v2627 = vpack.c.b16 %v2606, %v2605
      %v2628 = vpack.c.b16 %v2608, %v2607
      %v2629 = vpack.c.b16 %v2610, %v2609
      %v2630 = vpack.c.b16 %v2612, %v2611
      %v2631 = vpack.c.b16 %v2614, %v2613
      %v2632 = vpack.c.b16 %v2616, %v2615
      %v2638 = vunpack.c.l.b16 %v2541
      %v2639 = vunpack.c.l.b16 %v2542
      %v2640 = vunpack.c.l.b16 %v2543
      %v2641 = vunpack.c.l.b16 %v2544
      %v2642 = vunpack.c.l.b16 %v2545
      %v2643 = vpack.c.b16 %v2639, %v2638
      %v2644 = vpack.c.b16 %v2641, %v2640
      %v2645 = vpack.c.b16 %v2642, %v2642
      %vm2648 = vcmask 293888
      %v2650 = vsel %vm2648, %v2617, 0
      %v2653 = vsel %vm2648, %v2618, 0
      %v2656 = vsel %vm2648, %v2619, 0
      %v2659 = vsel %vm2648, %v2620, 0
      %v2662 = vsel %vm2648, %v2621, 0
      %v2665 = vsel %vm2648, %v2622, 0
      %v2668 = vsel %vm2648, %v2623, 0
      %v2671 = vsel %vm2648, %v2624, 0
      %v2674 = vsel %vm2648, %v2625, 0
      %v2677 = vsel %vm2648, %v2626, 0
      %v2680 = vsel %vm2648, %v2627, 0
      %v2683 = vsel %vm2648, %v2628, 0
      %v2686 = vsel %vm2648, %v2629, 0
      %v2689 = vsel %vm2648, %v2630, 0
      %v2692 = vsel %vm2648, %v2631, 0
      %v2695 = vsel %vm2648, %v2632, 0
      %vm2697 = vcmask 1041408
      %v2699 = vsel %vm2697, %v2645, 0
      %2701 = vmatprep.subr.bf16.mxu0 0
      %2702 = vmatpush1.bf16.msra.mxu0 0
      %2703 = vmatprep.subr.bf16.mxu0 0
      %2704 = vmatpush1.bf16.msra.mxu0 0
      %2705 = vmatprep.subr.bf16.mxu0 0
      %2706 = vmatpush1.bf16.msra.mxu0 0
      %2707 = vmatprep.subr.bf16.mxu0 0
      %2708 = vmatpush1.bf16.msra.mxu0 0
      %2709 = vmatprep.subr.bf16.mxu0 0
      %2710 = vmatpush1.bf16.msra.mxu0 0
      %2711 = vmatprep.subr.bf16.mxu0 0
      %2712 = vmatpush1.bf16.msra.mxu0 %v2699
      %2713 = vmatprep.subr.bf16.mxu0 0
      %2714 = vmatpush1.bf16.msra.mxu0 %v2644
      %2715 = vmatprep.subr.bf16.mxu0 0
      %2716 = vmatpush1.bf16.msra.mxu0 %v2643
      %2717 = vmatprep.subr.bf16.mxu0 0
      %2718 = vmatpush2.bf16.msra.mxu0 0
      %2719 = vmatprep.subr.bf16.mxu0 0
      %2720 = vmatpush2.bf16.msra.mxu0 0
      %2721 = vmatprep.subr.bf16.mxu0 0
      %2722 = vmatpush2.bf16.msra.mxu0 0
      %2723 = vmatprep.subr.bf16.mxu0 0
      %2724 = vmatpush2.bf16.msra.mxu0 0
      %2725 = vmatprep.subr.bf16.mxu0 0
      %2726 = vmatpush2.bf16.msra.mxu0 0
      %2727 = vmatprep.subr.bf16.mxu0 0
      %2728 = vmatpush2.bf16.msra.mxu0 0
      %2729 = vmatprep.subr.bf16.mxu0 0
      %2730 = vmatpush2.bf16.msra.mxu0 0
      %2731 = vmatprep.subr.bf16.mxu0 0
      %2732 = vmatpush2.bf16.msra.mxu0 0
      %2733 = vmatprep.mubr.bf16.mxu0 0
      %2734 = vmatmul.mubr.bf16.gmra.mxu0 %v2650
      %v2735 = vpop.f32.mrf.mxu0
      %v2736 = vadd.f32 %v2551, %v2735
      %v2737 = vpop.f32.mrf.mxu0
      %v2738 = vpop.f32.mrf.mxu0
      %v2739 = vadd.f32 %v2551, %v2738
      %v2740 = vpop.f32.mrf.mxu0
      %2741 = vmatprep.mubr.bf16.mxu0 0
      %2742 = vmatmul.mubr.bf16.gmra.mxu0 %v2653
      %v2743 = vpop.f32.mrf.mxu0
      %v2744 = vadd.f32 %v2551, %v2743
      %v2745 = vpop.f32.mrf.mxu0
      %v2746 = vpop.f32.mrf.mxu0
      %v2747 = vadd.f32 %v2551, %v2746
      %v2748 = vpop.f32.mrf.mxu0
      %2749 = vmatprep.mubr.bf16.mxu0 0
      %2750 = vmatmul.mubr.bf16.gmra.mxu0 %v2656
      %v2751 = vpop.f32.mrf.mxu0
      %v2752 = vadd.f32 %v2551, %v2751
      %v2753 = vpop.f32.mrf.mxu0
      %v2754 = vpop.f32.mrf.mxu0
      %v2755 = vadd.f32 %v2551, %v2754
      %v2756 = vpop.f32.mrf.mxu0
      %2757 = vmatprep.mubr.bf16.mxu0 0
      %2758 = vmatmul.mubr.bf16.gmra.mxu0 %v2659
      %v2759 = vpop.f32.mrf.mxu0
      %v2760 = vadd.f32 %v2551, %v2759
      %v2761 = vpop.f32.mrf.mxu0
      %v2762 = vpop.f32.mrf.mxu0
      %v2763 = vadd.f32 %v2551, %v2762
      %v2764 = vpop.f32.mrf.mxu0
      %2765 = vmatprep.mubr.bf16.mxu0 0
      %2766 = vmatmul.mubr.bf16.gmra.mxu0 %v2662
      %v2767 = vpop.f32.mrf.mxu0
      %v2768 = vadd.f32 %v2551, %v2767
      %v2769 = vpop.f32.mrf.mxu0
      %v2770 = vpop.f32.mrf.mxu0
      %v2771 = vadd.f32 %v2551, %v2770
      %v2772 = vpop.f32.mrf.mxu0
      %2773 = vmatprep.mubr.bf16.mxu0 0
      %2774 = vmatmul.mubr.bf16.gmra.mxu0 %v2665
      %v2775 = vpop.f32.mrf.mxu0
      %v2776 = vadd.f32 %v2551, %v2775
      %v2777 = vpop.f32.mrf.mxu0
      %v2778 = vpop.f32.mrf.mxu0
      %v2779 = vadd.f32 %v2551, %v2778
      %v2780 = vpop.f32.mrf.mxu0
      %2781 = vmatprep.mubr.bf16.mxu0 0
      %2782 = vmatmul.mubr.bf16.gmra.mxu0 %v2668
      %v2783 = vpop.f32.mrf.mxu0
      %v2784 = vadd.f32 %v2551, %v2783
      %v2785 = vpop.f32.mrf.mxu0
      %v2786 = vpop.f32.mrf.mxu0
      %v2787 = vadd.f32 %v2551, %v2786
      %v2788 = vpop.f32.mrf.mxu0
      %2789 = vmatprep.mubr.bf16.mxu0 0
      %2790 = vmatmul.mubr.bf16.gmra.mxu0 %v2671
      %v2791 = vpop.f32.mrf.mxu0
      %v2792 = vadd.f32 %v2551, %v2791
      %v2793 = vpop.f32.mrf.mxu0
      %v2794 = vpop.f32.mrf.mxu0
      %v2795 = vadd.f32 %v2551, %v2794
      %v2796 = vpop.f32.mrf.mxu0
      %2797 = vmatprep.mubr.bf16.mxu0 0
      %2798 = vmatmul.mubr.bf16.gmra.mxu0 %v2674
      %v2799 = vpop.f32.mrf.mxu0
      %v2800 = vadd.f32 %v2551, %v2799
      %v2801 = vpop.f32.mrf.mxu0
      %v2802 = vpop.f32.mrf.mxu0
      %v2803 = vadd.f32 %v2551, %v2802
      %v2804 = vpop.f32.mrf.mxu0
      %2805 = vmatprep.mubr.bf16.mxu0 0
      %2806 = vmatmul.mubr.bf16.gmra.mxu0 %v2677
      %v2807 = vpop.f32.mrf.mxu0
      %v2808 = vadd.f32 %v2551, %v2807
      %v2809 = vpop.f32.mrf.mxu0
      %v2810 = vpop.f32.mrf.mxu0
      %v2811 = vadd.f32 %v2551, %v2810
      %v2812 = vpop.f32.mrf.mxu0
      %2813 = vmatprep.mubr.bf16.mxu0 0
      %2814 = vmatmul.mubr.bf16.gmra.mxu0 %v2680
      %v2815 = vpop.f32.mrf.mxu0
      %v2816 = vadd.f32 %v2551, %v2815
      %v2817 = vpop.f32.mrf.mxu0
      %v2818 = vpop.f32.mrf.mxu0
      %v2819 = vadd.f32 %v2551, %v2818
      %v2820 = vpop.f32.mrf.mxu0
      %2821 = vmatprep.mubr.bf16.mxu0 0
      %2822 = vmatmul.mubr.bf16.gmra.mxu0 %v2683
      %v2823 = vpop.f32.mrf.mxu0
      %v2824 = vadd.f32 %v2551, %v2823
      %v2825 = vpop.f32.mrf.mxu0
      %v2826 = vpop.f32.mrf.mxu0
      %v2827 = vadd.f32 %v2551, %v2826
      %v2828 = vpop.f32.mrf.mxu0
      %2829 = vmatprep.mubr.bf16.mxu0 0
      %2830 = vmatmul.mubr.bf16.gmra.mxu0 %v2686
      %v2831 = vpop.f32.mrf.mxu0
      %v2832 = vadd.f32 %v2551, %v2831
      %v2833 = vpop.f32.mrf.mxu0
      %v2834 = vpop.f32.mrf.mxu0
      %v2835 = vadd.f32 %v2551, %v2834
      %v2836 = vpop.f32.mrf.mxu0
      %2837 = vmatprep.mubr.bf16.mxu0 0
      %2838 = vmatmul.mubr.bf16.gmra.mxu0 %v2689
      %v2839 = vpop.f32.mrf.mxu0
      %v2840 = vadd.f32 %v2551, %v2839
      %v2841 = vpop.f32.mrf.mxu0
      %v2842 = vpop.f32.mrf.mxu0
      %v2843 = vadd.f32 %v2551, %v2842
      %v2844 = vpop.f32.mrf.mxu0
      %2845 = vmatprep.mubr.bf16.mxu0 0
      %2846 = vmatmul.mubr.bf16.gmra.mxu0 %v2692
      %v2847 = vpop.f32.mrf.mxu0
      %v2848 = vadd.f32 %v2551, %v2847
      %v2849 = vpop.f32.mrf.mxu0
      %v2850 = vpop.f32.mrf.mxu0
      %v2851 = vadd.f32 %v2551, %v2850
      %v2852 = vpop.f32.mrf.mxu0
      %2853 = vmatprep.mubr.bf16.mxu0 0
      %2854 = vmatmul.mubr.bf16.gmra.mxu0 %v2695
      %v2855 = vpop.f32.mrf.mxu0
      %v2856 = vadd.f32 %v2551, %v2855
      %v2857 = vpop.f32.mrf.mxu0
      %v2858 = vpop.f32.mrf.mxu0
      %v2859 = vadd.f32 %v2551, %v2858
      %v2860 = vpop.f32.mrf.mxu0
      %2861 = vdwg.mxu0
      %v2862 = vmax.f32 %v2736, 0.0
      %v2863 = vmax.f32 %v2739, 0.0
      %v2864 = vmax.f32 %v2744, 0.0
      %v2865 = vmax.f32 %v2747, 0.0
      %v2866 = vmax.f32 %v2752, 0.0
      %v2867 = vmax.f32 %v2755, 0.0
      %v2868 = vmax.f32 %v2760, 0.0
      %v2869 = vmax.f32 %v2763, 0.0
      %v2870 = vmax.f32 %v2768, 0.0
      %v2871 = vmax.f32 %v2771, 0.0
      %v2872 = vmax.f32 %v2776, 0.0
      %v2873 = vmax.f32 %v2779, 0.0
      %v2874 = vmax.f32 %v2784, 0.0
      %v2875 = vmax.f32 %v2787, 0.0
      %v2876 = vmax.f32 %v2792, 0.0
      %v2877 = vmax.f32 %v2795, 0.0
      %v2878 = vmax.f32 %v2800, 0.0
      %v2879 = vmax.f32 %v2803, 0.0
      %v2880 = vmax.f32 %v2808, 0.0
      %v2881 = vmax.f32 %v2811, 0.0
      %v2882 = vmax.f32 %v2816, 0.0
      %v2883 = vmax.f32 %v2819, 0.0
      %v2884 = vmax.f32 %v2824, 0.0
      %v2885 = vmax.f32 %v2827, 0.0
      %v2886 = vmax.f32 %v2832, 0.0
      %v2887 = vmax.f32 %v2835, 0.0
      %v2888 = vmax.f32 %v2840, 0.0
      %v2889 = vmax.f32 %v2843, 0.0
      %v2890 = vmax.f32 %v2848, 0.0
      %v2891 = vmax.f32 %v2851, 0.0
      %v2892 = vmax.f32 %v2856, 0.0
      %v2893 = vmax.f32 %v2859, 0.0
      %v2894 = vpack.c.bf16 %v2863, %v2862
      %v2895 = vpack.c.bf16 %v2865, %v2864
      %v2896 = vpack.c.bf16 %v2867, %v2866
      %v2897 = vpack.c.bf16 %v2869, %v2868
      %v2898 = vpack.c.bf16 %v2871, %v2870
      %v2899 = vpack.c.bf16 %v2873, %v2872
      %v2900 = vpack.c.bf16 %v2875, %v2874
      %v2901 = vpack.c.bf16 %v2877, %v2876
      %v2902 = vpack.c.bf16 %v2879, %v2878
      %v2903 = vpack.c.bf16 %v2881, %v2880
      %v2904 = vpack.c.bf16 %v2883, %v2882
      %v2905 = vpack.c.bf16 %v2885, %v2884
      %v2906 = vpack.c.bf16 %v2887, %v2886
      %v2907 = vpack.c.bf16 %v2889, %v2888
      %v2908 = vpack.c.bf16 %v2891, %v2890
      %v2909 = vpack.c.bf16 %v2893, %v2892
      %v2910 = vld [vmem:[%s5] sm:$0x3]
      %v2911 = vld [vmem:[%s273] sm:$0xf]
      %v2912 = vld [vmem:[%s273 + $0x4] sm:$0xf]
      %v2913 = vld [vmem:[%s273 + $0x8] sm:$0xf]
      %v2914 = vld [vmem:[%s273 + $0xc] sm:$0xf]
      %v2915 = vld [vmem:[%s273 + $0x10] sm:$0xf]
      %v2916 = vld [vmem:[%s273 + $0x14] sm:$0xf]
      %v2917 = vld [vmem:[%s273 + $0x18] sm:$0xf]
      %v2918 = vld [vmem:[%s273 + $0x1c] sm:$0xf]
      %v2919 = vld [vmem:[%s273 + $0x20] sm:$0xf]
      %v2920 = vld [vmem:[%s273 + $0x24] sm:$0xf]
      %v2921 = vld [vmem:[%s273 + $0x28] sm:$0xf]
      %v2922 = vld [vmem:[%s273 + $0x2c] sm:$0xf]
      %v2923 = vld [vmem:[%s273 + $0x30] sm:$0xf]
      %v2924 = vld [vmem:[%s273 + $0x34] sm:$0xf]
      %v2925 = vld [vmem:[%s273 + $0x38] sm:$0xf]
      %v2926 = vld [vmem:[%s273 + $0x3c] sm:$0xf]
      %v2927 = vld [vmem:[%s273 + $0x40] sm:$0xf]
      %v2928 = vld [vmem:[%s273 + $0x44] sm:$0xf]
      %v2929 = vld [vmem:[%s273 + $0x48] sm:$0xf]
      %v2930 = vld [vmem:[%s273 + $0x4c] sm:$0xf]
      %v2931 = vld [vmem:[%s273 + $0x50] sm:$0xf]
      %v2932 = vld [vmem:[%s273 + $0x54] sm:$0xf]
      %v2933 = vld [vmem:[%s273 + $0x58] sm:$0xf]
      %v2934 = vld [vmem:[%s273 + $0x5c] sm:$0xf]
      %v2935 = vld [vmem:[%s273 + $0x60] sm:$0xf]
      %v2936 = vld [vmem:[%s273 + $0x64] sm:$0xf]
      %v2937 = vld [vmem:[%s273 + $0x68] sm:$0xf]
      %v2938 = vld [vmem:[%s273 + $0x6c] sm:$0xf]
      %v2939 = vld [vmem:[%s273 + $0x70] sm:$0xf]
      %v2940 = vld [vmem:[%s273 + $0x74] sm:$0xf]
      %v2941 = vld [vmem:[%s273 + $0x78] sm:$0xf]
      %v2942 = vld [vmem:[%s273 + $0x7c] sm:$0xf]
      %v2943 = vunpack.c.l.bf16 %v2911
      %v2944 = vunpack.c.l.bf16 %v2912
      %v2945 = vunpack.c.l.bf16 %v2913
      %v2946 = vunpack.c.l.bf16 %v2914
      %v2947 = vunpack.c.l.bf16 %v2915
      %v2948 = vunpack.c.l.bf16 %v2916
      %v2949 = vunpack.c.l.bf16 %v2917
      %v2950 = vunpack.c.l.bf16 %v2918
      %v2951 = vunpack.c.l.bf16 %v2919
      %v2952 = vunpack.c.l.bf16 %v2920
      %v2953 = vunpack.c.l.bf16 %v2921
      %v2954 = vunpack.c.l.bf16 %v2922
      %v2955 = vunpack.c.l.bf16 %v2923
      %v2956 = vunpack.c.l.bf16 %v2924
      %v2957 = vunpack.c.l.bf16 %v2925
      %v2958 = vunpack.c.l.bf16 %v2926
      %v2959 = vunpack.c.l.bf16 %v2927
      %v2960 = vunpack.c.l.bf16 %v2928
      %v2961 = vunpack.c.l.bf16 %v2929
      %v2962 = vunpack.c.l.bf16 %v2930
      %v2963 = vunpack.c.l.bf16 %v2931
      %v2964 = vunpack.c.l.bf16 %v2932
      %v2965 = vunpack.c.l.bf16 %v2933
      %v2966 = vunpack.c.l.bf16 %v2934
      %v2967 = vunpack.c.l.bf16 %v2935
      %v2968 = vunpack.c.l.bf16 %v2936
      %v2969 = vunpack.c.l.bf16 %v2937
      %v2970 = vunpack.c.l.bf16 %v2938
      %v2971 = vunpack.c.l.bf16 %v2939
      %v2972 = vunpack.c.l.bf16 %v2940
      %v2973 = vunpack.c.l.bf16 %v2941
      %v2974 = vunpack.c.l.bf16 %v2942
      %v2975 = vld [vmem:[%s6] sm:$0x1]
      %v2977 = vlaneseq
      %v2978 = vshrl.u32 %v2977, 7
      %v2979 = vsub.s32 0, %v2978
      %v2980 = vrot.slane %v2975, %v2979
      %vm2982 = vcmask 31744
      %v2984 = vsel %vm2982, %v2894, 0
      %v2987 = vsel %vm2982, %v2895, 0
      %v2990 = vsel %vm2982, %v2896, 0
      %v2993 = vsel %vm2982, %v2897, 0
      %v2996 = vsel %vm2982, %v2898, 0
      %v2999 = vsel %vm2982, %v2899, 0
      %v3002 = vsel %vm2982, %v2900, 0
      %v3005 = vsel %vm2982, %v2901, 0
      %v3008 = vsel %vm2982, %v2902, 0
      %v3011 = vsel %vm2982, %v2903, 0
      %v3014 = vsel %vm2982, %v2904, 0
      %v3017 = vsel %vm2982, %v2905, 0
      %v3020 = vsel %vm2982, %v2906, 0
      %v3023 = vsel %vm2982, %v2907, 0
      %v3026 = vsel %vm2982, %v2908, 0
      %v3029 = vsel %vm2982, %v2909, 0
      %v3032 = vsel %vm2697, %v2910, 0
      %3034 = vmatprep.subr.bf16.mxu0 0
      %3035 = vmatpush1.bf16.msra.mxu0 0
      %3036 = vmatprep.subr.bf16.mxu0 0
      %3037 = vmatpush1.bf16.msra.mxu0 0
      %3038 = vmatprep.subr.bf16.mxu0 0
      %3039 = vmatpush1.bf16.msra.mxu0 0
      %3040 = vmatprep.subr.bf16.mxu0 0
      %3041 = vmatpush1.bf16.msra.mxu0 0
      %3042 = vmatprep.subr.bf16.mxu0 0
      %3043 = vmatpush1.bf16.msra.mxu0 0
      %3044 = vmatprep.subr.bf16.mxu0 0
      %3045 = vmatpush1.bf16.msra.mxu0 0
      %3046 = vmatprep.subr.bf16.mxu0 0
      %3047 = vmatpush1.bf16.msra.mxu0 0
      %3048 = vmatprep.subr.bf16.mxu0 0
      %3049 = vmatpush1.bf16.msra.mxu0 %v3032
      %3050 = vmatprep.subr.bf16.mxu0 0
      %3051 = vmatpush2.bf16.msra.mxu0 0
      %3052 = vmatprep.subr.bf16.mxu0 0
      %3053 = vmatpush2.bf16.msra.mxu0 0
      %3054 = vmatprep.subr.bf16.mxu0 0
      %3055 = vmatpush2.bf16.msra.mxu0 0
      %3056 = vmatprep.subr.bf16.mxu0 0
      %3057 = vmatpush2.bf16.msra.mxu0 0
      %3058 = vmatprep.subr.bf16.mxu0 0
      %3059 = vmatpush2.bf16.msra.mxu0 0
      %3060 = vmatprep.subr.bf16.mxu0 0
      %3061 = vmatpush2.bf16.msra.mxu0 0
      %3062 = vmatprep.subr.bf16.mxu0 0
      %3063 = vmatpush2.bf16.msra.mxu0 0
      %3064 = vmatprep.subr.bf16.mxu0 0
      %3065 = vmatpush2.bf16.msra.mxu0 0
      %3066 = vmatprep.mubr.bf16.mxu0 0
      %3067 = vmatmul.mubr.bf16.gmra.mxu0 %v2984
      %v3068 = vpop.f32.mrf.mxu0
      %v3069 = vadd.f32 %v2980, %v3068
      %v3070 = vpop.f32.mrf.mxu0
      %v3071 = vpop.f32.mrf.mxu0
      %v3072 = vadd.f32 %v2980, %v3071
      %v3073 = vpop.f32.mrf.mxu0
      %3074 = vmatprep.mubr.bf16.mxu0 0
      %3075 = vmatmul.mubr.bf16.gmra.mxu0 %v2987
      %v3076 = vpop.f32.mrf.mxu0
      %v3077 = vadd.f32 %v2980, %v3076
      %v3078 = vpop.f32.mrf.mxu0
      %v3079 = vpop.f32.mrf.mxu0
      %v3080 = vadd.f32 %v2980, %v3079
      %v3081 = vpop.f32.mrf.mxu0
      %3082 = vmatprep.mubr.bf16.mxu0 0
      %3083 = vmatmul.mubr.bf16.gmra.mxu0 %v2990
      %v3084 = vpop.f32.mrf.mxu0
      %v3085 = vadd.f32 %v2980, %v3084
      %v3086 = vpop.f32.mrf.mxu0
      %v3087 = vpop.f32.mrf.mxu0
      %v3088 = vadd.f32 %v2980, %v3087
      %v3089 = vpop.f32.mrf.mxu0
      %3090 = vmatprep.mubr.bf16.mxu0 0
      %3091 = vmatmul.mubr.bf16.gmra.mxu0 %v2993
      %v3092 = vpop.f32.mrf.mxu0
      %v3093 = vadd.f32 %v2980, %v3092
      %v3094 = vpop.f32.mrf.mxu0
      %v3095 = vpop.f32.mrf.mxu0
      %v3096 = vadd.f32 %v2980, %v3095
      %v3097 = vpop.f32.mrf.mxu0
      %3098 = vmatprep.mubr.bf16.mxu0 0
      %3099 = vmatmul.mubr.bf16.gmra.mxu0 %v2996
      %v3100 = vpop.f32.mrf.mxu0
      %v3101 = vadd.f32 %v2980, %v3100
      %v3102 = vpop.f32.mrf.mxu0
      %v3103 = vpop.f32.mrf.mxu0
      %v3104 = vadd.f32 %v2980, %v3103
      %v3105 = vpop.f32.mrf.mxu0
      %3106 = vmatprep.mubr.bf16.mxu0 0
      %3107 = vmatmul.mubr.bf16.gmra.mxu0 %v2999
      %v3108 = vpop.f32.mrf.mxu0
      %v3109 = vadd.f32 %v2980, %v3108
      %v3110 = vpop.f32.mrf.mxu0
      %v3111 = vpop.f32.mrf.mxu0
      %v3112 = vadd.f32 %v2980, %v3111
      %v3113 = vpop.f32.mrf.mxu0
      %3114 = vmatprep.mubr.bf16.mxu0 0
      %3115 = vmatmul.mubr.bf16.gmra.mxu0 %v3002
      %v3116 = vpop.f32.mrf.mxu0
      %v3117 = vadd.f32 %v2980, %v3116
      %v3118 = vpop.f32.mrf.mxu0
      %v3119 = vpop.f32.mrf.mxu0
      %v3120 = vadd.f32 %v2980, %v3119
      %v3121 = vpop.f32.mrf.mxu0
      %3122 = vmatprep.mubr.bf16.mxu0 0
      %3123 = vmatmul.mubr.bf16.gmra.mxu0 %v3005
      %v3124 = vpop.f32.mrf.mxu0
      %v3125 = vadd.f32 %v2980, %v3124
      %v3126 = vpop.f32.mrf.mxu0
      %v3127 = vpop.f32.mrf.mxu0
      %v3128 = vadd.f32 %v2980, %v3127
      %v3129 = vpop.f32.mrf.mxu0
      %3130 = vmatprep.mubr.bf16.mxu0 0
      %3131 = vmatmul.mubr.bf16.gmra.mxu0 %v3008
      %v3132 = vpop.f32.mrf.mxu0
      %v3133 = vadd.f32 %v2980, %v3132
      %v3134 = vpop.f32.mrf.mxu0
      %v3135 = vpop.f32.mrf.mxu0
      %v3136 = vadd.f32 %v2980, %v3135
      %v3137 = vpop.f32.mrf.mxu0
      %3138 = vmatprep.mubr.bf16.mxu0 0
      %3139 = vmatmul.mubr.bf16.gmra.mxu0 %v3011
      %v3140 = vpop.f32.mrf.mxu0
      %v3141 = vadd.f32 %v2980, %v3140
      %v3142 = vpop.f32.mrf.mxu0
      %v3143 = vpop.f32.mrf.mxu0
      %v3144 = vadd.f32 %v2980, %v3143
      %v3145 = vpop.f32.mrf.mxu0
      %3146 = vmatprep.mubr.bf16.mxu0 0
      %3147 = vmatmul.mubr.bf16.gmra.mxu0 %v3014
      %v3148 = vpop.f32.mrf.mxu0
      %v3149 = vadd.f32 %v2980, %v3148
      %v3150 = vpop.f32.mrf.mxu0
      %v3151 = vpop.f32.mrf.mxu0
      %v3152 = vadd.f32 %v2980, %v3151
      %v3153 = vpop.f32.mrf.mxu0
      %3154 = vmatprep.mubr.bf16.mxu0 0
      %3155 = vmatmul.mubr.bf16.gmra.mxu0 %v3017
      %v3156 = vpop.f32.mrf.mxu0
      %v3157 = vadd.f32 %v2980, %v3156
      %v3158 = vpop.f32.mrf.mxu0
      %v3159 = vpop.f32.mrf.mxu0
      %v3160 = vadd.f32 %v2980, %v3159
      %v3161 = vpop.f32.mrf.mxu0
      %3162 = vmatprep.mubr.bf16.mxu0 0
      %3163 = vmatmul.mubr.bf16.gmra.mxu0 %v3020
      %v3164 = vpop.f32.mrf.mxu0
      %v3165 = vadd.f32 %v2980, %v3164
      %v3166 = vpop.f32.mrf.mxu0
      %v3167 = vpop.f32.mrf.mxu0
      %v3168 = vadd.f32 %v2980, %v3167
      %v3169 = vpop.f32.mrf.mxu0
      %3170 = vmatprep.mubr.bf16.mxu0 0
      %3171 = vmatmul.mubr.bf16.gmra.mxu0 %v3023
      %v3172 = vpop.f32.mrf.mxu0
      %v3173 = vadd.f32 %v2980, %v3172
      %v3174 = vpop.f32.mrf.mxu0
      %v3175 = vpop.f32.mrf.mxu0
      %v3176 = vadd.f32 %v2980, %v3175
      %v3177 = vpop.f32.mrf.mxu0
      %3178 = vmatprep.mubr.bf16.mxu0 0
      %3179 = vmatmul.mubr.bf16.gmra.mxu0 %v3026
      %v3180 = vpop.f32.mrf.mxu0
      %v3181 = vadd.f32 %v2980, %v3180
      %v3182 = vpop.f32.mrf.mxu0
      %v3183 = vpop.f32.mrf.mxu0
      %v3184 = vadd.f32 %v2980, %v3183
      %v3185 = vpop.f32.mrf.mxu0
      %3186 = vmatprep.mubr.bf16.mxu0 0
      %3187 = vmatmul.mubr.bf16.gmra.mxu0 %v3029
      %v3188 = vpop.f32.mrf.mxu0
      %v3189 = vadd.f32 %v2980, %v3188
      %v3190 = vpop.f32.mrf.mxu0
      %v3191 = vpop.f32.mrf.mxu0
      %v3192 = vadd.f32 %v2980, %v3191
      %v3193 = vpop.f32.mrf.mxu0
      %3194 = vdwg.mxu0
      %v3195 = vadd.f32 %v3069, %v2943
      %v3196 = vadd.f32 %v3072, %v2944
      %v3197 = vadd.f32 %v3077, %v2945
      %v3198 = vadd.f32 %v3080, %v2946
      %v3199 = vadd.f32 %v3085, %v2947
      %v3200 = vadd.f32 %v3088, %v2948
      %v3201 = vadd.f32 %v3093, %v2949
      %v3202 = vadd.f32 %v3096, %v2950
      %v3203 = vadd.f32 %v3101, %v2951
      %v3204 = vadd.f32 %v3104, %v2952
      %v3205 = vadd.f32 %v3109, %v2953
      %v3206 = vadd.f32 %v3112, %v2954
      %v3207 = vadd.f32 %v3117, %v2955
      %v3208 = vadd.f32 %v3120, %v2956
      %v3209 = vadd.f32 %v3125, %v2957
      %v3210 = vadd.f32 %v3128, %v2958
      %v3211 = vadd.f32 %v3133, %v2959
      %v3212 = vadd.f32 %v3136, %v2960
      %v3213 = vadd.f32 %v3141, %v2961
      %v3214 = vadd.f32 %v3144, %v2962
      %v3215 = vadd.f32 %v3149, %v2963
      %v3216 = vadd.f32 %v3152, %v2964
      %v3217 = vadd.f32 %v3157, %v2965
      %v3218 = vadd.f32 %v3160, %v2966
      %v3219 = vadd.f32 %v3165, %v2967
      %v3220 = vadd.f32 %v3168, %v2968
      %v3221 = vadd.f32 %v3173, %v2969
      %v3222 = vadd.f32 %v3176, %v2970
      %v3223 = vadd.f32 %v3181, %v2971
      %v3224 = vadd.f32 %v3184, %v2972
      %v3225 = vadd.f32 %v3189, %v2973
      %v3226 = vadd.f32 %v3192, %v2974
      %v3227 = vmax.f32 %v3195, 0.0
      %v3228 = vmax.f32 %v3196, 0.0
      %v3229 = vmax.f32 %v3197, 0.0
      %v3230 = vmax.f32 %v3198, 0.0
      %v3231 = vmax.f32 %v3199, 0.0
      %v3232 = vmax.f32 %v3200, 0.0
      %v3233 = vmax.f32 %v3201, 0.0
      %v3234 = vmax.f32 %v3202, 0.0
      %v3235 = vmax.f32 %v3203, 0.0
      %v3236 = vmax.f32 %v3204, 0.0
      %v3237 = vmax.f32 %v3205, 0.0
      %v3238 = vmax.f32 %v3206, 0.0
      %v3239 = vmax.f32 %v3207, 0.0
      %v3240 = vmax.f32 %v3208, 0.0
      %v3241 = vmax.f32 %v3209, 0.0
      %v3242 = vmax.f32 %v3210, 0.0
      %v3243 = vmax.f32 %v3211, 0.0
      %v3244 = vmax.f32 %v3212, 0.0
      %v3245 = vmax.f32 %v3213, 0.0
      %v3246 = vmax.f32 %v3214, 0.0
      %v3247 = vmax.f32 %v3215, 0.0
      %v3248 = vmax.f32 %v3216, 0.0
      %v3249 = vmax.f32 %v3217, 0.0
      %v3250 = vmax.f32 %v3218, 0.0
      %v3251 = vmax.f32 %v3219, 0.0
      %v3252 = vmax.f32 %v3220, 0.0
      %v3253 = vmax.f32 %v3221, 0.0
      %v3254 = vmax.f32 %v3222, 0.0
      %v3255 = vmax.f32 %v3223, 0.0
      %v3256 = vmax.f32 %v3224, 0.0
      %v3257 = vmax.f32 %v3225, 0.0
      %v3258 = vmax.f32 %v3226, 0.0
      %v3259 = vpack.c.bf16 %v3228, %v3227
      %v3260 = vpack.c.bf16 %v3230, %v3229
      %v3261 = vpack.c.bf16 %v3232, %v3231
      %v3262 = vpack.c.bf16 %v3234, %v3233
      %v3263 = vpack.c.bf16 %v3236, %v3235
      %v3264 = vpack.c.bf16 %v3238, %v3237
      %v3265 = vpack.c.bf16 %v3240, %v3239
      %v3266 = vpack.c.bf16 %v3242, %v3241
      %v3267 = vpack.c.bf16 %v3244, %v3243
      %v3268 = vpack.c.bf16 %v3246, %v3245
      %v3269 = vpack.c.bf16 %v3248, %v3247
      %v3270 = vpack.c.bf16 %v3250, %v3249
      %v3271 = vpack.c.bf16 %v3252, %v3251
      %v3272 = vpack.c.bf16 %v3254, %v3253
      %v3273 = vpack.c.bf16 %v3256, %v3255
      %v3274 = vpack.c.bf16 %v3258, %v3257
      %v3291 = vunpack.c.l.b16 %v3259
      %v3292 = vunpack.c.h.b16 %v3259
      %v3293 = vunpack.c.l.b16 %v3260
      %v3294 = vunpack.c.h.b16 %v3260
      %v3295 = vunpack.c.l.b16 %v3261
      %v3296 = vunpack.c.h.b16 %v3261
      %v3297 = vunpack.c.l.b16 %v3262
      %v3298 = vunpack.c.h.b16 %v3262
      %v3299 = vunpack.c.l.b16 %v3263
      %v3300 = vunpack.c.h.b16 %v3263
      %v3301 = vunpack.c.l.b16 %v3264
      %v3302 = vunpack.c.h.b16 %v3264
      %v3303 = vunpack.c.l.b16 %v3265
      %v3304 = vunpack.c.h.b16 %v3265
      %v3305 = vunpack.c.l.b16 %v3266
      %v3306 = vunpack.c.h.b16 %v3266
      %v3307 = vunpack.c.l.b16 %v3267
      %v3308 = vunpack.c.h.b16 %v3267
      %v3309 = vunpack.c.l.b16 %v3268
      %v3310 = vunpack.c.h.b16 %v3268
      %v3311 = vunpack.c.l.b16 %v3269
      %v3312 = vunpack.c.h.b16 %v3269
      %v3313 = vunpack.c.l.b16 %v3270
      %v3314 = vunpack.c.h.b16 %v3270
      %v3315 = vunpack.c.l.b16 %v3271
      %v3316 = vunpack.c.h.b16 %v3271
      %v3317 = vunpack.c.l.b16 %v3272
      %v3318 = vunpack.c.h.b16 %v3272
      %v3319 = vunpack.c.l.b16 %v3273
      %v3320 = vunpack.c.h.b16 %v3273
      %v3321 = vunpack.c.l.b16 %v3274
      %v3322 = vunpack.c.h.b16 %v3274
      %v3323 = vpack.c.b16 %v3291, %v3291
      %v3324 = vpack.c.b16 %v3292, %v3292
      %v3325 = vpack.c.b16 %v3293, %v3293
      %v3326 = vpack.c.b16 %v3294, %v3294
      %v3327 = vpack.c.b16 %v3295, %v3295
      %v3328 = vpack.c.b16 %v3296, %v3296
      %v3329 = vpack.c.b16 %v3297, %v3297
      %v3330 = vpack.c.b16 %v3298, %v3298
      %v3331 = vpack.c.b16 %v3299, %v3299
      %v3332 = vpack.c.b16 %v3300, %v3300
      %v3333 = vpack.c.b16 %v3301, %v3301
      %v3334 = vpack.c.b16 %v3302, %v3302
      %v3335 = vpack.c.b16 %v3303, %v3303
      %v3336 = vpack.c.b16 %v3304, %v3304
      %v3337 = vpack.c.b16 %v3305, %v3305
      %v3338 = vpack.c.b16 %v3306, %v3306
      %v3339 = vpack.c.b16 %v3307, %v3307
      %v3340 = vpack.c.b16 %v3308, %v3308
      %v3341 = vpack.c.b16 %v3309, %v3309
      %v3342 = vpack.c.b16 %v3310, %v3310
      %v3343 = vpack.c.b16 %v3311, %v3311
      %v3344 = vpack.c.b16 %v3312, %v3312
      %v3345 = vpack.c.b16 %v3313, %v3313
      %v3346 = vpack.c.b16 %v3314, %v3314
      %v3347 = vpack.c.b16 %v3315, %v3315
      %v3348 = vpack.c.b16 %v3316, %v3316
      %v3349 = vpack.c.b16 %v3317, %v3317
      %v3350 = vpack.c.b16 %v3318, %v3318
      %v3351 = vpack.c.b16 %v3319, %v3319
      %v3352 = vpack.c.b16 %v3320, %v3320
      %v3353 = vpack.c.b16 %v3321, %v3321
      %v3354 = vpack.c.b16 %v3322, %v3322
      %vm3387 = vcmask 125952
      %3388 = vst.msk [vmem:[%s278] sm:$0xf] %vm3387, %v3323
      %3389 = vst.msk [vmem:[%s278 + $0x4] sm:$0xf] %vm3387, %v3324
      %3390 = vst.msk [vmem:[%s278 + $0x8] sm:$0xf] %vm3387, %v3325
      %3391 = vst.msk [vmem:[%s278 + $0xc] sm:$0xf] %vm3387, %v3326
      %3392 = vst.msk [vmem:[%s278 + $0x10] sm:$0xf] %vm3387, %v3327
      %3393 = vst.msk [vmem:[%s278 + $0x14] sm:$0xf] %vm3387, %v3328
      %3394 = vst.msk [vmem:[%s278 + $0x18] sm:$0xf] %vm3387, %v3329
      %3395 = vst.msk [vmem:[%s278 + $0x1c] sm:$0xf] %vm3387, %v3330
      %3396 = vst.msk [vmem:[%s278 + $0x20] sm:$0xf] %vm3387, %v3331
      %3397 = vst.msk [vmem:[%s278 + $0x24] sm:$0xf] %vm3387, %v3332
      %3398 = vst.msk [vmem:[%s278 + $0x28] sm:$0xf] %vm3387, %v3333
      %3399 = vst.msk [vmem:[%s278 + $0x2c] sm:$0xf] %vm3387, %v3334
      %3400 = vst.msk [vmem:[%s278 + $0x30] sm:$0xf] %vm3387, %v3335
      %3401 = vst.msk [vmem:[%s278 + $0x34] sm:$0xf] %vm3387, %v3336
      %3402 = vst.msk [vmem:[%s278 + $0x38] sm:$0xf] %vm3387, %v3337
      %3403 = vst.msk [vmem:[%s278 + $0x3c] sm:$0xf] %vm3387, %v3338
      %3404 = vst.msk [vmem:[%s278 + $0x40] sm:$0xf] %vm3387, %v3339
      %3405 = vst.msk [vmem:[%s278 + $0x44] sm:$0xf] %vm3387, %v3340
      %3406 = vst.msk [vmem:[%s278 + $0x48] sm:$0xf] %vm3387, %v3341
      %3407 = vst.msk [vmem:[%s278 + $0x4c] sm:$0xf] %vm3387, %v3342
      %3408 = vst.msk [vmem:[%s278 + $0x50] sm:$0xf] %vm3387, %v3343
      %3409 = vst.msk [vmem:[%s278 + $0x54] sm:$0xf] %vm3387, %v3344
      %3410 = vst.msk [vmem:[%s278 + $0x58] sm:$0xf] %vm3387, %v3345
      %3411 = vst.msk [vmem:[%s278 + $0x5c] sm:$0xf] %vm3387, %v3346
      %3412 = vst.msk [vmem:[%s278 + $0x60] sm:$0xf] %vm3387, %v3347
      %3413 = vst.msk [vmem:[%s278 + $0x64] sm:$0xf] %vm3387, %v3348
      %3414 = vst.msk [vmem:[%s278 + $0x68] sm:$0xf] %vm3387, %v3349
      %3415 = vst.msk [vmem:[%s278 + $0x6c] sm:$0xf] %vm3387, %v3350
      %3416 = vst.msk [vmem:[%s278 + $0x70] sm:$0xf] %vm3387, %v3351
      %3417 = vst.msk [vmem:[%s278 + $0x74] sm:$0xf] %vm3387, %v3352
      %3418 = vst.msk [vmem:[%s278 + $0x78] sm:$0xf] %vm3387, %v3353
      %3419 = vst.msk [vmem:[%s278 + $0x7c] sm:$0xf] %vm3387, %v3354
      %p3420 = scmp.lt.s32.totalorder %s18, 1
      %s3421 = scalar_select %p3420, %s18, 1
      %s3422 = smul.addr %s3421, 32
      %s3423 = smul.addr %s3422, 4
      %s3424 = scalar_lea.vmem %s7, %s3423
      // Predicated region
      $region49: #{bottleneck_forward.1} parent=47 // pred_check
        %p3425 = pneg %p188
      $region50: #{bottleneck_forward.1} parent=47 // pred_check_branch
        %3427 = sbr.rel (%p3425) target = $region52
      $region51: #{bottleneck_forward.1} parent=47 // pred_region
        _
      $region52: #{bottleneck_forward.1} parent=47 // pred_fallthru
        _
    $region48: #{bottleneck_forward.1} parent=5 // pred_fallthru
      _
    %p3428 = scmp.le.s32.totalorder 2, %s13
    // Predicated region
    $region53: #{bottleneck_forward.1} parent=5 // pred_check
      %p3429 = pneg %p3428
    $region54: #{bottleneck_forward.1} parent=5 // pred_check_branch
      %3431 = sbr.rel (%p3429) target = $region56
    $region55: #{bottleneck_forward.1} parent=5 // pred_region
      %s3432 = ssub.s32 %s13, 2
      // Predicated region
      $region57: #{bottleneck_forward.1} parent=55 // pred_check
        %p3433 = pneg %p194
      $region58: #{bottleneck_forward.1} parent=55 // pred_check_branch
        %3435 = sbr.rel (%p3433) target = $region60
      $region59: #{bottleneck_forward.1} parent=55 // pred_region
        %p3436 = scmp.lt.s32.totalorder %s19, 1
        %s3437 = scalar_select %p3436, %s19, 1
        %s3438 = smul.addr %s3437, 32
        %s3439 = smul.addr %s3438, 4
        %s3440 = scalar_lea.vmem %s7, %s3439
      $region60: #{bottleneck_forward.1} parent=55 // pred_fallthru
        _
    $region56: #{bottleneck_forward.1} parent=5 // pred_fallthru
      _
  $region6: #{bottleneck_forward.1} parent=0 // loop_footer
    %s17 = sadd.s32 1, %s13
  $region7: #{bottleneck_forward.1} parent=0 // loop_footer_branch
    %12 = sbr.rel target = $region3
  $region8: #{bottleneck_forward.1} parent=0 // loop_exit
    _

</llo_original>
